<compile_context>
chip_gen: v7x
topology: tpu7x:2x2x1
jax: 0.10.0
libtpu: 0.0.40
codegen_flags: <defaults>
</compile_context>

<pallas_src>
import math
import functools

import jax
import jax.numpy as jnp
from jax.experimental import pallas as pl
from jax.experimental.pallas import tpu as pltpu

EPS = 1e-6
NEG_INF = -1e9


# ---------------------------------------------------------------------------
# In-kernel helpers (pure functions on loaded values).
# ---------------------------------------------------------------------------
def _layernorm_f32(x, gamma, beta, eps):
    """Annotated-Transformer LayerNorm: unbiased std (ddof=1), eps added to std."""
    d = x.shape[-1]
    mean = jnp.mean(x, axis=-1, keepdims=True)
    xc = x - mean
    var = jnp.sum(xc * xc, axis=-1, keepdims=True) / (d - 1)
    std = jnp.sqrt(var)
    return gamma * xc / (std + eps) + beta


def _mha_heads(hq, hkv, mask, wq, bq, wk, bk, wv, bv, ctx_ref, *, num_heads, scale):
    """Multi-head attention core for one batch element.

    Projections are single lane-dense (T, D) @ (D, D) MXU matmuls; the head split
    is a static (unrolled) loop over lane slices; per-head outputs are written into
    the (Tq, D) VMEM scratch so the output projection sees a lane-dense operand.
    """
    q = jnp.dot(hq, wq, preferred_element_type=jnp.float32) + bq     # (Tq, D)
    k = jnp.dot(hkv, wk, preferred_element_type=jnp.float32) + bk    # (Tk, D)
    v = jnp.dot(hkv, wv, preferred_element_type=jnp.float32) + bv    # (Tk, D)
    dk = q.shape[-1] // num_heads
    for h in range(num_heads):
        lo = h * dk
        qh = q[:, lo:lo + dk]
        kh = k[:, lo:lo + dk]
        vh = v[:, lo:lo + dk]
        s = jax.lax.dot_general(qh, kh, (((1,), (1,)), ((), ())),
                                preferred_element_type=jnp.float32) * scale
        s = jnp.where(mask > 0, s, NEG_INF)              # masked_fill(mask == 0, -1e9)
        s = s - jnp.max(s, axis=-1, keepdims=True)
        p = jnp.exp(s)
        p = p * pl.reciprocal(jnp.sum(p, axis=-1, keepdims=True), approx=True)
        ctx_ref[:, pl.ds(lo, dk)] = jnp.dot(p, vh, preferred_element_type=jnp.float32)


# ---------------------------------------------------------------------------
# Fused self-attention sublayer: x + Wo(attn(LN(x), LN(x), LN(x), mask))
# ---------------------------------------------------------------------------
def _self_attn_sublayer_kernel(x_ref, m_ref, g_ref, b_ref,
                               wq_ref, bq_ref, wk_ref, bk_ref,
                               wv_ref, bv_ref, wo_ref, bo_ref,
                               o_ref, ctx_ref, *, num_heads, scale, eps):
    x = x_ref[0].astype(jnp.float32)           # (T, D)
    mask = m_ref[0]                            # (T, T)
    h = _layernorm_f32(x, g_ref[...], b_ref[...], eps)
    _mha_heads(h, h, mask,
               wq_ref[...], bq_ref[...], wk_ref[...], bk_ref[...],
               wv_ref[...], bv_ref[...], ctx_ref,
               num_heads=num_heads, scale=scale)
    y = x + jnp.dot(ctx_ref[...], wo_ref[...],
                    preferred_element_type=jnp.float32) + bo_ref[...]
    o_ref[0] = y.astype(o_ref.dtype)


def self_attn_sublayer(x, mask, ln_g, ln_b, p, *, num_heads):
    B, T, D = x.shape
    Tm, Tk = mask.shape[-2], mask.shape[-1]
    scale = 1.0 / math.sqrt(D // num_heads)
    kernel = functools.partial(_self_attn_sublayer_kernel,
                               num_heads=num_heads, scale=scale, eps=EPS)
    w_spec = pl.BlockSpec((D, D), lambda b: (0, 0))
    v_spec = pl.BlockSpec((1, D), lambda b: (0, 0))
    return pl.pallas_call(
        kernel,
        out_shape=jax.ShapeDtypeStruct((B, T, D), x.dtype),
        grid=(B,),
        in_specs=[
            pl.BlockSpec((1, T, D), lambda b: (b, 0, 0)),     # x (residual + LN input)
            pl.BlockSpec((1, Tm, Tk), lambda b: (b, 0, 0)),   # compact mask, shared by heads
            v_spec, v_spec,                                   # LN gamma / beta
            w_spec, v_spec,                                   # Wq / bq
            w_spec, v_spec,                                   # Wk / bk
            w_spec, v_spec,                                   # Wv / bv
            w_spec, v_spec,                                   # Wo / bo
        ],
        out_specs=pl.BlockSpec((1, T, D), lambda b: (b, 0, 0)),
        scratch_shapes=[pltpu.VMEM((T, D), jnp.float32)],
        compiler_params=pltpu.CompilerParams(dimension_semantics=("parallel",)),
    )(x, mask, ln_g, ln_b, p["wq"], p["bq"], p["wk"], p["bk"],
      p["wv"], p["bv"], p["wo"], p["bo"])


# ---------------------------------------------------------------------------
# Fused cross-attention sublayer: x + Wo(attn(LN(x), memory, memory, mask))
# ---------------------------------------------------------------------------
def _cross_attn_sublayer_kernel(x_ref, mem_ref, m_ref, g_ref, b_ref,
                                wq_ref, bq_ref, wk_ref, bk_ref,
                                wv_ref, bv_ref, wo_ref, bo_ref,
                                o_ref, ctx_ref, *, num_heads, scale, eps):
    x = x_ref[0].astype(jnp.float32)           # (Tq, D)
    mem = mem_ref[0].astype(jnp.float32)       # (Tk, D)
    mask = m_ref[0]                            # (1, Tk) or (Tq, Tk)
    h = _layernorm_f32(x, g_ref[...], b_ref[...], eps)
    _mha_heads(h, mem, mask,
               wq_ref[...], bq_ref[...], wk_ref[...], bk_ref[...],
               wv_ref[...], bv_ref[...], ctx_ref,
               num_heads=num_heads, scale=scale)
    y = x + jnp.dot(ctx_ref[...], wo_ref[...],
                    preferred_element_type=jnp.float32) + bo_ref[...]
    o_ref[0] = y.astype(o_ref.dtype)


def cross_attn_sublayer(x, memory, mask, ln_g, ln_b, p, *, num_heads):
    B, T, D = x.shape
    S = memory.shape[1]
    Tm, Tk = mask.shape[-2], mask.shape[-1]
    scale = 1.0 / math.sqrt(D // num_heads)
    kernel = functools.partial(_cross_attn_sublayer_kernel,
                               num_heads=num_heads, scale=scale, eps=EPS)
    w_spec = pl.BlockSpec((D, D), lambda b: (0, 0))
    v_spec = pl.BlockSpec((1, D), lambda b: (0, 0))
    return pl.pallas_call(
        kernel,
        out_shape=jax.ShapeDtypeStruct((B, T, D), x.dtype),
        grid=(B,),
        in_specs=[
            pl.BlockSpec((1, T, D), lambda b: (b, 0, 0)),     # x
            pl.BlockSpec((1, S, D), lambda b: (b, 0, 0)),     # memory (not normed)
            pl.BlockSpec((1, Tm, Tk), lambda b: (b, 0, 0)),   # compact mask
            v_spec, v_spec,
            w_spec, v_spec,
            w_spec, v_spec,
            w_spec, v_spec,
            w_spec, v_spec,
        ],
        out_specs=pl.BlockSpec((1, T, D), lambda b: (b, 0, 0)),
        scratch_shapes=[pltpu.VMEM((T, D), jnp.float32)],
        compiler_params=pltpu.CompilerParams(dimension_semantics=("parallel",)),
    )(x, memory, mask, ln_g, ln_b, p["wq"], p["bq"], p["wk"], p["bk"],
      p["wv"], p["bv"], p["wo"], p["bo"])


# ---------------------------------------------------------------------------
# Fused FFN sublayer: x + (relu(LN(x) @ W1 + b1) @ W2 + b2), row-tiled over B*T.
# ---------------------------------------------------------------------------
def _ffn_sublayer_kernel(x_ref, g_ref, b_ref, w1_ref, b1_ref, w2_ref, b2_ref,
                         o_ref, *, eps):
    x = x_ref[...].astype(jnp.float32)         # (tile_n, D)
    h = _layernorm_f32(x, g_ref[...], b_ref[...], eps)
    a = jnp.dot(h, w1_ref[...], preferred_element_type=jnp.float32) + b1_ref[...]
    a = jnp.maximum(a, 0.0)
    y = x + jnp.dot(a, w2_ref[...], preferred_element_type=jnp.float32) + b2_ref[...]
    o_ref[...] = y.astype(o_ref.dtype)


def _row_tile(n, max_tile=512):
    """Largest row tile <= max_tile that evenly divides n (multiple of 8 if tiled)."""
    if n <= max_tile:
        return n
    for t in range(max_tile, 7, -8):
        if n % t == 0:
            return t
    return n


def ffn_sublayer(x2d, ln_g, ln_b, w1, b1, w2, b2):
    N, D = x2d.shape
    Dff = w1.shape[1]
    tn = _row_tile(N)
    kernel = functools.partial(_ffn_sublayer_kernel, eps=EPS)
    return pl.pallas_call(
        kernel,
        out_shape=jax.ShapeDtypeStruct((N, D), x2d.dtype),
        grid=(N // tn,),
        in_specs=[
            pl.BlockSpec((tn, D), lambda i: (i, 0)),
            pl.BlockSpec((1, D), lambda i: (0, 0)),
            pl.BlockSpec((1, D), lambda i: (0, 0)),
            pl.BlockSpec((D, Dff), lambda i: (0, 0)),
            pl.BlockSpec((1, Dff), lambda i: (0, 0)),
            pl.BlockSpec((Dff, D), lambda i: (0, 0)),
            pl.BlockSpec((1, D), lambda i: (0, 0)),
        ],
        out_specs=pl.BlockSpec((tn, D), lambda i: (i, 0)),
        compiler_params=pltpu.CompilerParams(dimension_semantics=("parallel",)),
    )(x2d, ln_g, ln_b, w1, b1, w2, b2)


# ---------------------------------------------------------------------------
# DecoderLayer forward: 3 pre-norm residual sub-layers (self-attn, src-attn, FFN).
# num_heads is a static Python int (NOT part of the traced params pytree).
# ---------------------------------------------------------------------------
def decoder_layer(x, memory, src_mask, tgt_mask, params, *, num_heads):
    B, T, D = x.shape
    x = self_attn_sublayer(x, tgt_mask, params["ln0_g"], params["ln0_b"],
                           params["self_attn"], num_heads=num_heads)
    x = cross_attn_sublayer(x, memory, src_mask, params["ln1_g"], params["ln1_b"],
                            params["src_attn"], num_heads=num_heads)
    x = ffn_sublayer(x.reshape(B * T, D), params["ln2_g"], params["ln2_b"],
                     params["ff_w1"], params["ff_b1"],
                     params["ff_w2"], params["ff_b2"]).reshape(B, T, D)
    return x


# ---------------------------------------------------------------------------
# Deterministic parameter construction (weights only; no Python ints in pytree).
# ---------------------------------------------------------------------------
def init_params(key, d_model, d_ff):
    def lin(k, din, dout, scale=0.02):
        kw, kb = jax.random.split(k)
        w = scale * jax.random.normal(kw, (din, dout), jnp.float32)
        b = scale * jax.random.normal(kb, (1, dout), jnp.float32)
        return w, b

    def attn_params(k):
        ks = jax.random.split(k, 4)
        wq, bq = lin(ks[0], d_model, d_model)
        wk, bk = lin(ks[1], d_model, d_model)
        wv, bv = lin(ks[2], d_model, d_model)
        wo, bo = lin(ks[3], d_model, d_model)
        return dict(wq=wq, bq=bq, wk=wk, bk=bk, wv=wv, bv=bv, wo=wo, bo=bo)

    k_sa, k_ca, k_f1, k_f2 = jax.random.split(key, 4)
    params = {"self_attn": attn_params(k_sa), "src_attn": attn_params(k_ca)}
    params["ff_w1"], params["ff_b1"] = lin(k_f1, d_model, d_ff)
    params["ff_w2"], params["ff_b2"] = lin(k_f2, d_ff, d_model)
    for i in range(3):
        params[f"ln{i}_g"] = jnp.ones((1, d_model), jnp.float32)
        params[f"ln{i}_b"] = jnp.zeros((1, d_model), jnp.float32)
    return params


if __name__ == "__main__":
    B, T, S = 2, 8, 12          # batch, tgt seq, src seq
    D, D_FF, H = 32, 64, 4      # model dim, ffn dim, heads

    root = jax.random.PRNGKey(0)
    k_x, k_m, k_p = jax.random.split(root, 3)

    x = jax.random.normal(k_x, (B, T, D), jnp.float32)
    memory = jax.random.normal(k_m, (B, S, D), jnp.float32)

    # tgt_mask: causal (B, T, T); src_mask: all-ones padding mask (B, 1, S)
    tgt_mask = jnp.broadcast_to(jnp.tril(jnp.ones((T, T), jnp.float32)), (B, T, T))
    src_mask = jnp.ones((B, 1, S), jnp.float32)

    params = init_params(k_p, D, D_FF)

    fwd = jax.jit(functools.partial(decoder_layer, num_heads=H))
    out = fwd(x, memory, src_mask, tgt_mask, params)
    out = jax.block_until_ready(out)

    assert out.shape == (B, T, D)
    assert bool(jnp.all(jnp.isfinite(out)))
    print("KERNEL_OK")
</pallas_src>

<mosaic_0001>
module attributes {stable_mosaic.version = 11 : i64} {
  func.func @_cross_attn_sublayer_kernel(%arg0: i32, %arg1: memref<1x8x32xf32, #tpu.memory_space<vmem>>, %arg2: memref<1x12x32xf32, #tpu.memory_space<vmem>>, %arg3: memref<1x1x12xf32, #tpu.memory_space<vmem>>, %arg4: memref<1x32xf32, #tpu.memory_space<vmem>>, %arg5: memref<1x32xf32, #tpu.memory_space<vmem>>, %arg6: memref<32x32xf32, #tpu.memory_space<vmem>>, %arg7: memref<1x32xf32, #tpu.memory_space<vmem>>, %arg8: memref<32x32xf32, #tpu.memory_space<vmem>>, %arg9: memref<1x32xf32, #tpu.memory_space<vmem>>, %arg10: memref<32x32xf32, #tpu.memory_space<vmem>>, %arg11: memref<1x32xf32, #tpu.memory_space<vmem>>, %arg12: memref<32x32xf32, #tpu.memory_space<vmem>>, %arg13: memref<1x32xf32, #tpu.memory_space<vmem>>, %arg14: memref<1x8x32xf32, #tpu.memory_space<vmem>>, %arg15: memref<8x32xf32, #tpu.memory_space<vmem>>) attributes {dimension_semantics = [#tpu.dimension_semantics<parallel>], iteration_bounds = array<i64: 2>, scalar_prefetch = 0 : i64, scratch_operands = 1 : i64, tpu.core_type = #tpu.core_type<tc>, window_params = [{transform_indices = @transform_0, window_bounds = array<i64: 1, 8, 32>}, {transform_indices = @transform_1, window_bounds = array<i64: 1, 12, 32>}, {transform_indices = @transform_2, window_bounds = array<i64: 1, 1, 12>}, {pipeline_mode = #tpu.pipeline_mode<synchronous>, transform_indices = @transform_3, window_bounds = array<i64: 1, 32>}, {pipeline_mode = #tpu.pipeline_mode<synchronous>, transform_indices = @transform_4, window_bounds = array<i64: 1, 32>}, {pipeline_mode = #tpu.pipeline_mode<synchronous>, transform_indices = @transform_5, window_bounds = array<i64: 32, 32>}, {pipeline_mode = #tpu.pipeline_mode<synchronous>, transform_indices = @transform_6, window_bounds = array<i64: 1, 32>}, {pipeline_mode = #tpu.pipeline_mode<synchronous>, transform_indices = @transform_7, window_bounds = array<i64: 32, 32>}, {pipeline_mode = #tpu.pipeline_mode<synchronous>, transform_indices = @transform_8, window_bounds = array<i64: 1, 32>}, {pipeline_mode = #tpu.pipeline_mode<synchronous>, transform_indices = @transform_9, window_bounds = array<i64: 32, 32>}, {pipeline_mode = #tpu.pipeline_mode<synchronous>, transform_indices = @transform_10, window_bounds = array<i64: 1, 32>}, {pipeline_mode = #tpu.pipeline_mode<synchronous>, transform_indices = @transform_11, window_bounds = array<i64: 32, 32>}, {pipeline_mode = #tpu.pipeline_mode<synchronous>, transform_indices = @transform_12, window_bounds = array<i64: 1, 32>}, {transform_indices = @transform_13, window_bounds = array<i64: 1, 8, 32>}]} {
    %c0 = arith.constant 0 : index
    %c0_0 = arith.constant 0 : index
    %c0_1 = arith.constant 0 : index
    %0 = vector.load %arg1[%c0, %c0_0, %c0_1] : memref<1x8x32xf32, #tpu.memory_space<vmem>>, vector<1x8x32xf32>
    %1 = vector.shape_cast %0 : vector<1x8x32xf32> to vector<8x32xf32>
    %c0_2 = arith.constant 0 : index
    %c0_3 = arith.constant 0 : index
    %c0_4 = arith.constant 0 : index
    %2 = vector.load %arg2[%c0_2, %c0_3, %c0_4] : memref<1x12x32xf32, #tpu.memory_space<vmem>>, vector<1x12x32xf32>
    %3 = vector.shape_cast %2 : vector<1x12x32xf32> to vector<12x32xf32>
    %c0_5 = arith.constant 0 : index
    %c0_6 = arith.constant 0 : index
    %c0_7 = arith.constant 0 : index
    %4 = vector.load %arg3[%c0_5, %c0_6, %c0_7] : memref<1x1x12xf32, #tpu.memory_space<vmem>>, vector<1x1x12xf32>
    %5 = vector.shape_cast %4 : vector<1x1x12xf32> to vector<1x12xf32>
    %c0_8 = arith.constant 0 : index
    %c0_9 = arith.constant 0 : index
    %6 = vector.load %arg4[%c0_8, %c0_9] : memref<1x32xf32, #tpu.memory_space<vmem>>, vector<1x32xf32>
    %c0_10 = arith.constant 0 : index
    %c0_11 = arith.constant 0 : index
    %7 = vector.load %arg5[%c0_10, %c0_11] : memref<1x32xf32, #tpu.memory_space<vmem>>, vector<1x32xf32>
    %cst = arith.constant dense<0.000000e+00> : vector<8xf32>
    %8 = vector.multi_reduction <add>, %1, %cst [1] : vector<8x32xf32> to vector<8xf32>
    %9 = vector.shape_cast %8 : vector<8xf32> to vector<8x1xf32>
    %cst_12 = arith.constant 3.200000e+01 : f32
    %10 = vector.broadcast %cst_12 : f32 to vector<8x1xf32>
    %11 = arith.divf %9, %10 : vector<8x1xf32>
    %12 = vector.broadcast %11 : vector<8x1xf32> to vector<8x32xf32>
    %13 = arith.subf %1, %12 : vector<8x32xf32>
    %14 = arith.mulf %13, %13 : vector<8x32xf32>
    %cst_13 = arith.constant dense<0.000000e+00> : vector<8xf32>
    %15 = vector.multi_reduction <add>, %14, %cst_13 [1] : vector<8x32xf32> to vector<8xf32>
    %16 = vector.shape_cast %15 : vector<8xf32> to vector<8x1xf32>
    %cst_14 = arith.constant 3.100000e+01 : f32
    %17 = vector.broadcast %cst_14 : f32 to vector<8x1xf32>
    %18 = arith.divf %16, %17 : vector<8x1xf32>
    %19 = math.sqrt %18 : vector<8x1xf32>
    %20 = vector.broadcast %6 : vector<1x32xf32> to vector<8x32xf32>
    %21 = arith.mulf %20, %13 : vector<8x32xf32>
    %cst_15 = arith.constant 9.99999997E-7 : f32
    %22 = vector.broadcast %cst_15 : f32 to vector<8x1xf32>
    %23 = arith.addf %19, %22 : vector<8x1xf32>
    %24 = vector.broadcast %23 : vector<8x1xf32> to vector<8x32xf32>
    %25 = arith.divf %21, %24 : vector<8x32xf32>
    %26 = vector.broadcast %7 : vector<1x32xf32> to vector<8x32xf32>
    %27 = arith.addf %25, %26 : vector<8x32xf32>
    %c0_16 = arith.constant 0 : index
    %c0_17 = arith.constant 0 : index
    %28 = vector.load %arg6[%c0_16, %c0_17] : memref<32x32xf32, #tpu.memory_space<vmem>>, vector<32x32xf32>
    %c0_18 = arith.constant 0 : index
    %c0_19 = arith.constant 0 : index
    %29 = vector.load %arg7[%c0_18, %c0_19] : memref<1x32xf32, #tpu.memory_space<vmem>>, vector<1x32xf32>
    %c0_20 = arith.constant 0 : index
    %c0_21 = arith.constant 0 : index
    %30 = vector.load %arg8[%c0_20, %c0_21] : memref<32x32xf32, #tpu.memory_space<vmem>>, vector<32x32xf32>
    %c0_22 = arith.constant 0 : index
    %c0_23 = arith.constant 0 : index
    %31 = vector.load %arg9[%c0_22, %c0_23] : memref<1x32xf32, #tpu.memory_space<vmem>>, vector<1x32xf32>
    %c0_24 = arith.constant 0 : index
    %c0_25 = arith.constant 0 : index
    %32 = vector.load %arg10[%c0_24, %c0_25] : memref<32x32xf32, #tpu.memory_space<vmem>>, vector<32x32xf32>
    %c0_26 = arith.constant 0 : index
    %c0_27 = arith.constant 0 : index
    %33 = vector.load %arg11[%c0_26, %c0_27] : memref<1x32xf32, #tpu.memory_space<vmem>>, vector<1x32xf32>
    %cst_28 = arith.constant dense<0.000000e+00> : vector<8x32xf32>
    %34 = tpu.matmul %27, %28, %cst_28 {dimension_numbers = #tpu.dot_dimension_numbers<[1], [0], [0], [1], [0, 0, 1, 1], [], []>} : vector<8x32xf32>, vector<32x32xf32>, vector<8x32xf32> -> vector<8x32xf32>
    %35 = vector.broadcast %29 : vector<1x32xf32> to vector<8x32xf32>
    %36 = arith.addf %34, %35 : vector<8x32xf32>
    %cst_29 = arith.constant dense<0.000000e+00> : vector<12x32xf32>
    %37 = tpu.matmul %3, %30, %cst_29 {dimension_numbers = #tpu.dot_dimension_numbers<[1], [0], [0], [1], [0, 0, 1, 1], [], []>} : vector<12x32xf32>, vector<32x32xf32>, vector<12x32xf32> -> vector<12x32xf32>
    %38 = vector.broadcast %31 : vector<1x32xf32> to vector<12x32xf32>
    %39 = arith.addf %37, %38 : vector<12x32xf32>
    %cst_30 = arith.constant dense<0.000000e+00> : vector<12x32xf32>
    %40 = tpu.matmul %3, %32, %cst_30 {dimension_numbers = #tpu.dot_dimension_numbers<[1], [0], [0], [1], [0, 0, 1, 1], [], []>} : vector<12x32xf32>, vector<32x32xf32>, vector<12x32xf32> -> vector<12x32xf32>
    %41 = vector.broadcast %33 : vector<1x32xf32> to vector<12x32xf32>
    %42 = arith.addf %40, %41 : vector<12x32xf32>
    %43 = vector.extract_strided_slice %36 {offsets = [0, 0], sizes = [8, 8], strides = [1, 1]} : vector<8x32xf32> to vector<8x8xf32>
    %44 = vector.extract_strided_slice %39 {offsets = [0, 0], sizes = [12, 8], strides = [1, 1]} : vector<12x32xf32> to vector<12x8xf32>
    %45 = vector.extract_strided_slice %42 {offsets = [0, 0], sizes = [12, 8], strides = [1, 1]} : vector<12x32xf32> to vector<12x8xf32>
    %cst_31 = arith.constant dense<0.000000e+00> : vector<8x12xf32>
    %46 = tpu.matmul %43, %44, %cst_31 {dimension_numbers = #tpu.dot_dimension_numbers<[1], [1], [0], [0], [0, 0, 1, 0], [], []>} : vector<8x8xf32>, vector<12x8xf32>, vector<8x12xf32> -> vector<8x12xf32>
    %cst_32 = arith.constant 0.353553385 : f32
    %47 = vector.broadcast %cst_32 : f32 to vector<8x12xf32>
    %48 = arith.mulf %46, %47 : vector<8x12xf32>
    %cst_33 = arith.constant 0.000000e+00 : f32
    %49 = vector.broadcast %cst_33 : f32 to vector<1x12xf32>
    %50 = arith.cmpf ogt, %5, %49 : vector<1x12xf32>
    %cst_34 = arith.constant -1.000000e+09 : f32
    %51 = vector.shape_cast %50 : vector<1x12xi1> to vector<1x12xi1>
    %52 = vector.broadcast %51 : vector<1x12xi1> to vector<8x12xi1>
    %53 = vector.broadcast %cst_34 : f32 to vector<8x12xf32>
    %54 = arith.select %52, %48, %53 : vector<8x12xi1>, vector<8x12xf32>
    %cst_35 = arith.constant dense<0xFF800000> : vector<8xf32>
    %55 = vector.multi_reduction <maximumf>, %54, %cst_35 [1] : vector<8x12xf32> to vector<8xf32>
    %56 = vector.shape_cast %55 : vector<8xf32> to vector<8x1xf32>
    %57 = vector.broadcast %56 : vector<8x1xf32> to vector<8x12xf32>
    %58 = arith.subf %54, %57 : vector<8x12xf32>
    %59 = math.exp %58 : vector<8x12xf32>
    %cst_36 = arith.constant dense<0.000000e+00> : vector<8xf32>
    %60 = vector.multi_reduction <add>, %59, %cst_36 [1] : vector<8x12xf32> to vector<8xf32>
    %61 = vector.shape_cast %60 : vector<8xf32> to vector<8x1xf32>
    %62 = tpu.reciprocal %61 {approx = true} : vector<8x1xf32> -> vector<8x1xf32>
    %63 = vector.broadcast %62 : vector<8x1xf32> to vector<8x12xf32>
    %64 = arith.mulf %59, %63 : vector<8x12xf32>
    %cst_37 = arith.constant dense<0.000000e+00> : vector<8x8xf32>
    %65 = tpu.matmul %64, %45, %cst_37 {dimension_numbers = #tpu.dot_dimension_numbers<[1], [0], [0], [1], [0, 0, 1, 1], [], []>} : vector<8x12xf32>, vector<12x8xf32>, vector<8x8xf32> -> vector<8x8xf32>
    %c0_38 = arith.constant 0 : index
    %c0_39 = arith.constant 0 : index
    %66 = vector.load %arg15[%c0_38, %c0_39] : memref<8x32xf32, #tpu.memory_space<vmem>>, vector<8x8xf32>
    tpu.vector_store %arg15[%c0_38, %c0_39], %65 {strides = array<i32>} : memref<8x32xf32, #tpu.memory_space<vmem>>, vector<8x8xf32>,
    %67 = vector.extract_strided_slice %36 {offsets = [0, 8], sizes = [8, 8], strides = [1, 1]} : vector<8x32xf32> to vector<8x8xf32>
    %68 = vector.extract_strided_slice %39 {offsets = [0, 8], sizes = [12, 8], strides = [1, 1]} : vector<12x32xf32> to vector<12x8xf32>
    %69 = vector.extract_strided_slice %42 {offsets = [0, 8], sizes = [12, 8], strides = [1, 1]} : vector<12x32xf32> to vector<12x8xf32>
    %cst_40 = arith.constant dense<0.000000e+00> : vector<8x12xf32>
    %70 = tpu.matmul %67, %68, %cst_40 {dimension_numbers = #tpu.dot_dimension_numbers<[1], [1], [0], [0], [0, 0, 1, 0], [], []>} : vector<8x8xf32>, vector<12x8xf32>, vector<8x12xf32> -> vector<8x12xf32>
    %cst_41 = arith.constant 0.353553385 : f32
    %71 = vector.broadcast %cst_41 : f32 to vector<8x12xf32>
    %72 = arith.mulf %70, %71 : vector<8x12xf32>
    %cst_42 = arith.constant 0.000000e+00 : f32
    %73 = vector.broadcast %cst_42 : f32 to vector<1x12xf32>
    %74 = arith.cmpf ogt, %5, %73 : vector<1x12xf32>
    %cst_43 = arith.constant -1.000000e+09 : f32
    %75 = vector.shape_cast %74 : vector<1x12xi1> to vector<1x12xi1>
    %76 = vector.broadcast %75 : vector<1x12xi1> to vector<8x12xi1>
    %77 = vector.broadcast %cst_43 : f32 to vector<8x12xf32>
    %78 = arith.select %76, %72, %77 : vector<8x12xi1>, vector<8x12xf32>
    %cst_44 = arith.constant dense<0xFF800000> : vector<8xf32>
    %79 = vector.multi_reduction <maximumf>, %78, %cst_44 [1] : vector<8x12xf32> to vector<8xf32>
    %80 = vector.shape_cast %79 : vector<8xf32> to vector<8x1xf32>
    %81 = vector.broadcast %80 : vector<8x1xf32> to vector<8x12xf32>
    %82 = arith.subf %78, %81 : vector<8x12xf32>
    %83 = math.exp %82 : vector<8x12xf32>
    %cst_45 = arith.constant dense<0.000000e+00> : vector<8xf32>
    %84 = vector.multi_reduction <add>, %83, %cst_45 [1] : vector<8x12xf32> to vector<8xf32>
    %85 = vector.shape_cast %84 : vector<8xf32> to vector<8x1xf32>
    %86 = tpu.reciprocal %85 {approx = true} : vector<8x1xf32> -> vector<8x1xf32>
    %87 = vector.broadcast %86 : vector<8x1xf32> to vector<8x12xf32>
    %88 = arith.mulf %83, %87 : vector<8x12xf32>
    %cst_46 = arith.constant dense<0.000000e+00> : vector<8x8xf32>
    %89 = tpu.matmul %88, %69, %cst_46 {dimension_numbers = #tpu.dot_dimension_numbers<[1], [0], [0], [1], [0, 0, 1, 1], [], []>} : vector<8x12xf32>, vector<12x8xf32>, vector<8x8xf32> -> vector<8x8xf32>
    %c0_47 = arith.constant 0 : index
    %c8 = arith.constant 8 : index
    %90 = vector.load %arg15[%c0_47, %c8] : memref<8x32xf32, #tpu.memory_space<vmem>>, vector<8x8xf32>
    tpu.vector_store %arg15[%c0_47, %c8], %89 {strides = array<i32>} : memref<8x32xf32, #tpu.memory_space<vmem>>, vector<8x8xf32>,
    %91 = vector.extract_strided_slice %36 {offsets = [0, 16], sizes = [8, 8], strides = [1, 1]} : vector<8x32xf32> to vector<8x8xf32>
    %92 = vector.extract_strided_slice %39 {offsets = [0, 16], sizes = [12, 8], strides = [1, 1]} : vector<12x32xf32> to vector<12x8xf32>
    %93 = vector.extract_strided_slice %42 {offsets = [0, 16], sizes = [12, 8], strides = [1, 1]} : vector<12x32xf32> to vector<12x8xf32>
    %cst_48 = arith.constant dense<0.000000e+00> : vector<8x12xf32>
    %94 = tpu.matmul %91, %92, %cst_48 {dimension_numbers = #tpu.dot_dimension_numbers<[1], [1], [0], [0], [0, 0, 1, 0], [], []>} : vector<8x8xf32>, vector<12x8xf32>, vector<8x12xf32> -> vector<8x12xf32>
    %cst_49 = arith.constant 0.353553385 : f32
    %95 = vector.broadcast %cst_49 : f32 to vector<8x12xf32>
    %96 = arith.mulf %94, %95 : vector<8x12xf32>
    %cst_50 = arith.constant 0.000000e+00 : f32
    %97 = vector.broadcast %cst_50 : f32 to vector<1x12xf32>
    %98 = arith.cmpf ogt, %5, %97 : vector<1x12xf32>
    %cst_51 = arith.constant -1.000000e+09 : f32
    %99 = vector.shape_cast %98 : vector<1x12xi1> to vector<1x12xi1>
    %100 = vector.broadcast %99 : vector<1x12xi1> to vector<8x12xi1>
    %101 = vector.broadcast %cst_51 : f32 to vector<8x12xf32>
    %102 = arith.select %100, %96, %101 : vector<8x12xi1>, vector<8x12xf32>
    %cst_52 = arith.constant dense<0xFF800000> : vector<8xf32>
    %103 = vector.multi_reduction <maximumf>, %102, %cst_52 [1] : vector<8x12xf32> to vector<8xf32>
    %104 = vector.shape_cast %103 : vector<8xf32> to vector<8x1xf32>
    %105 = vector.broadcast %104 : vector<8x1xf32> to vector<8x12xf32>
    %106 = arith.subf %102, %105 : vector<8x12xf32>
    %107 = math.exp %106 : vector<8x12xf32>
    %cst_53 = arith.constant dense<0.000000e+00> : vector<8xf32>
    %108 = vector.multi_reduction <add>, %107, %cst_53 [1] : vector<8x12xf32> to vector<8xf32>
    %109 = vector.shape_cast %108 : vector<8xf32> to vector<8x1xf32>
    %110 = tpu.reciprocal %109 {approx = true} : vector<8x1xf32> -> vector<8x1xf32>
    %111 = vector.broadcast %110 : vector<8x1xf32> to vector<8x12xf32>
    %112 = arith.mulf %107, %111 : vector<8x12xf32>
    %cst_54 = arith.constant dense<0.000000e+00> : vector<8x8xf32>
    %113 = tpu.matmul %112, %93, %cst_54 {dimension_numbers = #tpu.dot_dimension_numbers<[1], [0], [0], [1], [0, 0, 1, 1], [], []>} : vector<8x12xf32>, vector<12x8xf32>, vector<8x8xf32> -> vector<8x8xf32>
    %c0_55 = arith.constant 0 : index
    %c16 = arith.constant 16 : index
    %114 = vector.load %arg15[%c0_55, %c16] : memref<8x32xf32, #tpu.memory_space<vmem>>, vector<8x8xf32>
    tpu.vector_store %arg15[%c0_55, %c16], %113 {strides = array<i32>} : memref<8x32xf32, #tpu.memory_space<vmem>>, vector<8x8xf32>,
    %115 = vector.extract_strided_slice %36 {offsets = [0, 24], sizes = [8, 8], strides = [1, 1]} : vector<8x32xf32> to vector<8x8xf32>
    %116 = vector.extract_strided_slice %39 {offsets = [0, 24], sizes = [12, 8], strides = [1, 1]} : vector<12x32xf32> to vector<12x8xf32>
    %117 = vector.extract_strided_slice %42 {offsets = [0, 24], sizes = [12, 8], strides = [1, 1]} : vector<12x32xf32> to vector<12x8xf32>
    %cst_56 = arith.constant dense<0.000000e+00> : vector<8x12xf32>
    %118 = tpu.matmul %115, %116, %cst_56 {dimension_numbers = #tpu.dot_dimension_numbers<[1], [1], [0], [0], [0, 0, 1, 0], [], []>} : vector<8x8xf32>, vector<12x8xf32>, vector<8x12xf32> -> vector<8x12xf32>
    %cst_57 = arith.constant 0.353553385 : f32
    %119 = vector.broadcast %cst_57 : f32 to vector<8x12xf32>
    %120 = arith.mulf %118, %119 : vector<8x12xf32>
    %cst_58 = arith.constant 0.000000e+00 : f32
    %121 = vector.broadcast %cst_58 : f32 to vector<1x12xf32>
    %122 = arith.cmpf ogt, %5, %121 : vector<1x12xf32>
    %cst_59 = arith.constant -1.000000e+09 : f32
    %123 = vector.shape_cast %122 : vector<1x12xi1> to vector<1x12xi1>
    %124 = vector.broadcast %123 : vector<1x12xi1> to vector<8x12xi1>
    %125 = vector.broadcast %cst_59 : f32 to vector<8x12xf32>
    %126 = arith.select %124, %120, %125 : vector<8x12xi1>, vector<8x12xf32>
    %cst_60 = arith.constant dense<0xFF800000> : vector<8xf32>
    %127 = vector.multi_reduction <maximumf>, %126, %cst_60 [1] : vector<8x12xf32> to vector<8xf32>
    %128 = vector.shape_cast %127 : vector<8xf32> to vector<8x1xf32>
    %129 = vector.broadcast %128 : vector<8x1xf32> to vector<8x12xf32>
    %130 = arith.subf %126, %129 : vector<8x12xf32>
    %131 = math.exp %130 : vector<8x12xf32>
    %cst_61 = arith.constant dense<0.000000e+00> : vector<8xf32>
    %132 = vector.multi_reduction <add>, %131, %cst_61 [1] : vector<8x12xf32> to vector<8xf32>
    %133 = vector.shape_cast %132 : vector<8xf32> to vector<8x1xf32>
    %134 = tpu.reciprocal %133 {approx = true} : vector<8x1xf32> -> vector<8x1xf32>
    %135 = vector.broadcast %134 : vector<8x1xf32> to vector<8x12xf32>
    %136 = arith.mulf %131, %135 : vector<8x12xf32>
    %cst_62 = arith.constant dense<0.000000e+00> : vector<8x8xf32>
    %137 = tpu.matmul %136, %117, %cst_62 {dimension_numbers = #tpu.dot_dimension_numbers<[1], [0], [0], [1], [0, 0, 1, 1], [], []>} : vector<8x12xf32>, vector<12x8xf32>, vector<8x8xf32> -> vector<8x8xf32>
    %c0_63 = arith.constant 0 : index
    %c24 = arith.constant 24 : index
    %138 = vector.load %arg15[%c0_63, %c24] : memref<8x32xf32, #tpu.memory_space<vmem>>, vector<8x8xf32>
    tpu.vector_store %arg15[%c0_63, %c24], %137 {strides = array<i32>} : memref<8x32xf32, #tpu.memory_space<vmem>>, vector<8x8xf32>,
    %c0_64 = arith.constant 0 : index
    %c0_65 = arith.constant 0 : index
    %139 = vector.load %arg15[%c0_64, %c0_65] : memref<8x32xf32, #tpu.memory_space<vmem>>, vector<8x32xf32>
    %c0_66 = arith.constant 0 : index
    %c0_67 = arith.constant 0 : index
    %140 = vector.load %arg12[%c0_66, %c0_67] : memref<32x32xf32, #tpu.memory_space<vmem>>, vector<32x32xf32>
    %cst_68 = arith.constant dense<0.000000e+00> : vector<8x32xf32>
    %141 = tpu.matmul %139, %140, %cst_68 {dimension_numbers = #tpu.dot_dimension_numbers<[1], [0], [0], [1], [0, 0, 1, 1], [], []>} : vector<8x32xf32>, vector<32x32xf32>, vector<8x32xf32> -> vector<8x32xf32>
    %142 = arith.addf %1, %141 : vector<8x32xf32>
    %c0_69 = arith.constant 0 : index
    %c0_70 = arith.constant 0 : index
    %143 = vector.load %arg13[%c0_69, %c0_70] : memref<1x32xf32, #tpu.memory_space<vmem>>, vector<1x32xf32>
    %144 = vector.broadcast %143 : vector<1x32xf32> to vector<8x32xf32>
    %145 = arith.addf %142, %144 : vector<8x32xf32>
    %c0_71 = arith.constant 0 : index
    %c0_72 = arith.constant 0 : index
    %c0_73 = arith.constant 0 : index
    %146 = vector.load %arg14[%c0_71, %c0_72, %c0_73] : memref<1x8x32xf32, #tpu.memory_space<vmem>>, vector<1x8x32xf32>
    %147 = vector.shape_cast %146 : vector<1x8x32xf32> to vector<8x32xf32>
    %148 = vector.shape_cast %145 : vector<8x32xf32> to vector<1x8x32xf32>
    tpu.vector_store %arg14[%c0_71, %c0_72, %c0_73], %148 {strides = array<i32>} : memref<1x8x32xf32, #tpu.memory_space<vmem>>, vector<1x8x32xf32>,
    return
  }
  func.func @transform_0(%arg0: i32) -> (i32, i32, i32) {
    %c0_i32 = arith.constant 0 : i32
    %c0_i32_0 = arith.constant 0 : i32
    %c0_i32_1 = arith.constant 0 : i32
    return %arg0, %c0_i32, %c0_i32_0 : i32, i32, i32
  }
  func.func @transform_1(%arg0: i32) -> (i32, i32, i32) {
    %c0_i32 = arith.constant 0 : i32
    %c0_i32_0 = arith.constant 0 : i32
    %c0_i32_1 = arith.constant 0 : i32
    return %arg0, %c0_i32, %c0_i32_0 : i32, i32, i32
  }
  func.func @transform_2(%arg0: i32) -> (i32, i32, i32) {
    %c0_i32 = arith.constant 0 : i32
    %c0_i32_0 = arith.constant 0 : i32
    %c0_i32_1 = arith.constant 0 : i32
    return %arg0, %c0_i32, %c0_i32_0 : i32, i32, i32
  }
  func.func @transform_3(%arg0: i32) -> (i32, i32) {
    %c0_i32 = arith.constant 0 : i32
    %c0_i32_0 = arith.constant 0 : i32
    %c0_i32_1 = arith.constant 0 : i32
    return %c0_i32, %c0_i32_0 : i32, i32
  }
  func.func @transform_4(%arg0: i32) -> (i32, i32) {
    %c0_i32 = arith.constant 0 : i32
    %c0_i32_0 = arith.constant 0 : i32
    %c0_i32_1 = arith.constant 0 : i32
    return %c0_i32, %c0_i32_0 : i32, i32
  }
  func.func @transform_5(%arg0: i32) -> (i32, i32) {
    %c0_i32 = arith.constant 0 : i32
    %c0_i32_0 = arith.constant 0 : i32
    %c0_i32_1 = arith.constant 0 : i32
    return %c0_i32, %c0_i32_0 : i32, i32
  }
  func.func @transform_6(%arg0: i32) -> (i32, i32) {
    %c0_i32 = arith.constant 0 : i32
    %c0_i32_0 = arith.constant 0 : i32
    %c0_i32_1 = arith.constant 0 : i32
    return %c0_i32, %c0_i32_0 : i32, i32
  }
  func.func @transform_7(%arg0: i32) -> (i32, i32) {
    %c0_i32 = arith.constant 0 : i32
    %c0_i32_0 = arith.constant 0 : i32
    %c0_i32_1 = arith.constant 0 : i32
    return %c0_i32, %c0_i32_0 : i32, i32
  }
  func.func @transform_8(%arg0: i32) -> (i32, i32) {
    %c0_i32 = arith.constant 0 : i32
    %c0_i32_0 = arith.constant 0 : i32
    %c0_i32_1 = arith.constant 0 : i32
    return %c0_i32, %c0_i32_0 : i32, i32
  }
  func.func @transform_9(%arg0: i32) -> (i32, i32) {
    %c0_i32 = arith.constant 0 : i32
    %c0_i32_0 = arith.constant 0 : i32
    %c0_i32_1 = arith.constant 0 : i32
    return %c0_i32, %c0_i32_0 : i32, i32
  }
  func.func @transform_10(%arg0: i32) -> (i32, i32) {
    %c0_i32 = arith.constant 0 : i32
    %c0_i32_0 = arith.constant 0 : i32
    %c0_i32_1 = arith.constant 0 : i32
    return %c0_i32, %c0_i32_0 : i32, i32
  }
  func.func @transform_11(%arg0: i32) -> (i32, i32) {
    %c0_i32 = arith.constant 0 : i32
    %c0_i32_0 = arith.constant 0 : i32
    %c0_i32_1 = arith.constant 0 : i32
    return %c0_i32, %c0_i32_0 : i32, i32
  }
  func.func @transform_12(%arg0: i32) -> (i32, i32) {
    %c0_i32 = arith.constant 0 : i32
    %c0_i32_0 = arith.constant 0 : i32
    %c0_i32_1 = arith.constant 0 : i32
    return %c0_i32, %c0_i32_0 : i32, i32
  }
  func.func @transform_13(%arg0: i32) -> (i32, i32, i32) {
    %c0_i32 = arith.constant 0 : i32
    %c0_i32_0 = arith.constant 0 : i32
    %c0_i32_1 = arith.constant 0 : i32
    return %arg0, %c0_i32, %c0_i32_0 : i32, i32, i32
  }
}

module attributes {stable_mosaic.version = 11 : i64} {
  func.func @_self_attn_sublayer_kernel(%arg0: i32, %arg1: memref<1x8x32xf32, #tpu.memory_space<vmem>>, %arg2: memref<1x8x8xf32, #tpu.memory_space<vmem>>, %arg3: memref<1x32xf32, #tpu.memory_space<vmem>>, %arg4: memref<1x32xf32, #tpu.memory_space<vmem>>, %arg5: memref<32x32xf32, #tpu.memory_space<vmem>>, %arg6: memref<1x32xf32, #tpu.memory_space<vmem>>, %arg7: memref<32x32xf32, #tpu.memory_space<vmem>>, %arg8: memref<1x32xf32, #tpu.memory_space<vmem>>, %arg9: memref<32x32xf32, #tpu.memory_space<vmem>>, %arg10: memref<1x32xf32, #tpu.memory_space<vmem>>, %arg11: memref<32x32xf32, #tpu.memory_space<vmem>>, %arg12: memref<1x32xf32, #tpu.memory_space<vmem>>, %arg13: memref<1x8x32xf32, #tpu.memory_space<vmem>>, %arg14: memref<8x32xf32, #tpu.memory_space<vmem>>) attributes {dimension_semantics = [#tpu.dimension_semantics<parallel>], iteration_bounds = array<i64: 2>, scalar_prefetch = 0 : i64, scratch_operands = 1 : i64, tpu.core_type = #tpu.core_type<tc>, window_params = [{transform_indices = @transform_0, window_bounds = array<i64: 1, 8, 32>}, {transform_indices = @transform_1, window_bounds = array<i64: 1, 8, 8>}, {pipeline_mode = #tpu.pipeline_mode<synchronous>, transform_indices = @transform_2, window_bounds = array<i64: 1, 32>}, {pipeline_mode = #tpu.pipeline_mode<synchronous>, transform_indices = @transform_3, window_bounds = array<i64: 1, 32>}, {pipeline_mode = #tpu.pipeline_mode<synchronous>, transform_indices = @transform_4, window_bounds = array<i64: 32, 32>}, {pipeline_mode = #tpu.pipeline_mode<synchronous>, transform_indices = @transform_5, window_bounds = array<i64: 1, 32>}, {pipeline_mode = #tpu.pipeline_mode<synchronous>, transform_indices = @transform_6, window_bounds = array<i64: 32, 32>}, {pipeline_mode = #tpu.pipeline_mode<synchronous>, transform_indices = @transform_7, window_bounds = array<i64: 1, 32>}, {pipeline_mode = #tpu.pipeline_mode<synchronous>, transform_indices = @transform_8, window_bounds = array<i64: 32, 32>}, {pipeline_mode = #tpu.pipeline_mode<synchronous>, transform_indices = @transform_9, window_bounds = array<i64: 1, 32>}, {pipeline_mode = #tpu.pipeline_mode<synchronous>, transform_indices = @transform_10, window_bounds = array<i64: 32, 32>}, {pipeline_mode = #tpu.pipeline_mode<synchronous>, transform_indices = @transform_11, window_bounds = array<i64: 1, 32>}, {transform_indices = @transform_12, window_bounds = array<i64: 1, 8, 32>}]} {
    %c0 = arith.constant 0 : index
    %c0_0 = arith.constant 0 : index
    %c0_1 = arith.constant 0 : index
    %0 = vector.load %arg1[%c0, %c0_0, %c0_1] : memref<1x8x32xf32, #tpu.memory_space<vmem>>, vector<1x8x32xf32>
    %1 = vector.shape_cast %0 : vector<1x8x32xf32> to vector<8x32xf32>
    %c0_2 = arith.constant 0 : index
    %c0_3 = arith.constant 0 : index
    %c0_4 = arith.constant 0 : index
    %2 = vector.load %arg2[%c0_2, %c0_3, %c0_4] : memref<1x8x8xf32, #tpu.memory_space<vmem>>, vector<1x8x8xf32>
    %3 = vector.shape_cast %2 : vector<1x8x8xf32> to vector<8x8xf32>
    %c0_5 = arith.constant 0 : index
    %c0_6 = arith.constant 0 : index
    %4 = vector.load %arg3[%c0_5, %c0_6] : memref<1x32xf32, #tpu.memory_space<vmem>>, vector<1x32xf32>
    %c0_7 = arith.constant 0 : index
    %c0_8 = arith.constant 0 : index
    %5 = vector.load %arg4[%c0_7, %c0_8] : memref<1x32xf32, #tpu.memory_space<vmem>>, vector<1x32xf32>
    %cst = arith.constant dense<0.000000e+00> : vector<8xf32>
    %6 = vector.multi_reduction <add>, %1, %cst [1] : vector<8x32xf32> to vector<8xf32>
    %7 = vector.shape_cast %6 : vector<8xf32> to vector<8x1xf32>
    %cst_9 = arith.constant 3.200000e+01 : f32
    %8 = vector.broadcast %cst_9 : f32 to vector<8x1xf32>
    %9 = arith.divf %7, %8 : vector<8x1xf32>
    %10 = vector.broadcast %9 : vector<8x1xf32> to vector<8x32xf32>
    %11 = arith.subf %1, %10 : vector<8x32xf32>
    %12 = arith.mulf %11, %11 : vector<8x32xf32>
    %cst_10 = arith.constant dense<0.000000e+00> : vector<8xf32>
    %13 = vector.multi_reduction <add>, %12, %cst_10 [1] : vector<8x32xf32> to vector<8xf32>
    %14 = vector.shape_cast %13 : vector<8xf32> to vector<8x1xf32>
    %cst_11 = arith.constant 3.100000e+01 : f32
    %15 = vector.broadcast %cst_11 : f32 to vector<8x1xf32>
    %16 = arith.divf %14, %15 : vector<8x1xf32>
    %17 = math.sqrt %16 : vector<8x1xf32>
    %18 = vector.broadcast %4 : vector<1x32xf32> to vector<8x32xf32>
    %19 = arith.mulf %18, %11 : vector<8x32xf32>
    %cst_12 = arith.constant 9.99999997E-7 : f32
    %20 = vector.broadcast %cst_12 : f32 to vector<8x1xf32>
    %21 = arith.addf %17, %20 : vector<8x1xf32>
    %22 = vector.broadcast %21 : vector<8x1xf32> to vector<8x32xf32>
    %23 = arith.divf %19, %22 : vector<8x32xf32>
    %24 = vector.broadcast %5 : vector<1x32xf32> to vector<8x32xf32>
    %25 = arith.addf %23, %24 : vector<8x32xf32>
    %c0_13 = arith.constant 0 : index
    %c0_14 = arith.constant 0 : index
    %26 = vector.load %arg5[%c0_13, %c0_14] : memref<32x32xf32, #tpu.memory_space<vmem>>, vector<32x32xf32>
    %c0_15 = arith.constant 0 : index
    %c0_16 = arith.constant 0 : index
    %27 = vector.load %arg6[%c0_15, %c0_16] : memref<1x32xf32, #tpu.memory_space<vmem>>, vector<1x32xf32>
    %c0_17 = arith.constant 0 : index
    %c0_18 = arith.constant 0 : index
    %28 = vector.load %arg7[%c0_17, %c0_18] : memref<32x32xf32, #tpu.memory_space<vmem>>, vector<32x32xf32>
    %c0_19 = arith.constant 0 : index
    %c0_20 = arith.constant 0 : index
    %29 = vector.load %arg8[%c0_19, %c0_20] : memref<1x32xf32, #tpu.memory_space<vmem>>, vector<1x32xf32>
    %c0_21 = arith.constant 0 : index
    %c0_22 = arith.constant 0 : index
    %30 = vector.load %arg9[%c0_21, %c0_22] : memref<32x32xf32, #tpu.memory_space<vmem>>, vector<32x32xf32>
    %c0_23 = arith.constant 0 : index
    %c0_24 = arith.constant 0 : index
    %31 = vector.load %arg10[%c0_23, %c0_24] : memref<1x32xf32, #tpu.memory_space<vmem>>, vector<1x32xf32>
    %cst_25 = arith.constant dense<0.000000e+00> : vector<8x32xf32>
    %32 = tpu.matmul %25, %26, %cst_25 {dimension_numbers = #tpu.dot_dimension_numbers<[1], [0], [0], [1], [0, 0, 1, 1], [], []>} : vector<8x32xf32>, vector<32x32xf32>, vector<8x32xf32> -> vector<8x32xf32>
    %33 = vector.broadcast %27 : vector<1x32xf32> to vector<8x32xf32>
    %34 = arith.addf %32, %33 : vector<8x32xf32>
    %cst_26 = arith.constant dense<0.000000e+00> : vector<8x32xf32>
    %35 = tpu.matmul %25, %28, %cst_26 {dimension_numbers = #tpu.dot_dimension_numbers<[1], [0], [0], [1], [0, 0, 1, 1], [], []>} : vector<8x32xf32>, vector<32x32xf32>, vector<8x32xf32> -> vector<8x32xf32>
    %36 = vector.broadcast %29 : vector<1x32xf32> to vector<8x32xf32>
    %37 = arith.addf %35, %36 : vector<8x32xf32>
    %cst_27 = arith.constant dense<0.000000e+00> : vector<8x32xf32>
    %38 = tpu.matmul %25, %30, %cst_27 {dimension_numbers = #tpu.dot_dimension_numbers<[1], [0], [0], [1], [0, 0, 1, 1], [], []>} : vector<8x32xf32>, vector<32x32xf32>, vector<8x32xf32> -> vector<8x32xf32>
    %39 = vector.broadcast %31 : vector<1x32xf32> to vector<8x32xf32>
    %40 = arith.addf %38, %39 : vector<8x32xf32>
    %41 = vector.extract_strided_slice %34 {offsets = [0, 0], sizes = [8, 8], strides = [1, 1]} : vector<8x32xf32> to vector<8x8xf32>
    %42 = vector.extract_strided_slice %37 {offsets = [0, 0], sizes = [8, 8], strides = [1, 1]} : vector<8x32xf32> to vector<8x8xf32>
    %43 = vector.extract_strided_slice %40 {offsets = [0, 0], sizes = [8, 8], strides = [1, 1]} : vector<8x32xf32> to vector<8x8xf32>
    %cst_28 = arith.constant dense<0.000000e+00> : vector<8x8xf32>
    %44 = tpu.matmul %41, %42, %cst_28 {dimension_numbers = #tpu.dot_dimension_numbers<[1], [1], [0], [0], [0, 0, 1, 0], [], []>} : vector<8x8xf32>, vector<8x8xf32>, vector<8x8xf32> -> vector<8x8xf32>
    %cst_29 = arith.constant 0.353553385 : f32
    %45 = vector.broadcast %cst_29 : f32 to vector<8x8xf32>
    %46 = arith.mulf %44, %45 : vector<8x8xf32>
    %cst_30 = arith.constant 0.000000e+00 : f32
    %47 = vector.broadcast %cst_30 : f32 to vector<8x8xf32>
    %48 = arith.cmpf ogt, %3, %47 : vector<8x8xf32>
    %cst_31 = arith.constant -1.000000e+09 : f32
    %49 = vector.broadcast %cst_31 : f32 to vector<8x8xf32>
    %50 = arith.select %48, %46, %49 : vector<8x8xi1>, vector<8x8xf32>
    %cst_32 = arith.constant dense<0xFF800000> : vector<8xf32>
    %51 = vector.multi_reduction <maximumf>, %50, %cst_32 [1] : vector<8x8xf32> to vector<8xf32>
    %52 = vector.shape_cast %51 : vector<8xf32> to vector<8x1xf32>
    %53 = vector.broadcast %52 : vector<8x1xf32> to vector<8x8xf32>
    %54 = arith.subf %50, %53 : vector<8x8xf32>
    %55 = math.exp %54 : vector<8x8xf32>
    %cst_33 = arith.constant dense<0.000000e+00> : vector<8xf32>
    %56 = vector.multi_reduction <add>, %55, %cst_33 [1] : vector<8x8xf32> to vector<8xf32>
    %57 = vector.shape_cast %56 : vector<8xf32> to vector<8x1xf32>
    %58 = tpu.reciprocal %57 {approx = true} : vector<8x1xf32> -> vector<8x1xf32>
    %59 = vector.broadcast %58 : vector<8x1xf32> to vector<8x8xf32>
    %60 = arith.mulf %55, %59 : vector<8x8xf32>
    %cst_34 = arith.constant dense<0.000000e+00> : vector<8x8xf32>
    %61 = tpu.matmul %60, %43, %cst_34 {dimension_numbers = #tpu.dot_dimension_numbers<[1], [0], [0], [1], [0, 0, 1, 1], [], []>} : vector<8x8xf32>, vector<8x8xf32>, vector<8x8xf32> -> vector<8x8xf32>
    %c0_35 = arith.constant 0 : index
    %c0_36 = arith.constant 0 : index
    %62 = vector.load %arg14[%c0_35, %c0_36] : memref<8x32xf32, #tpu.memory_space<vmem>>, vector<8x8xf32>
    tpu.vector_store %arg14[%c0_35, %c0_36], %61 {strides = array<i32>} : memref<8x32xf32, #tpu.memory_space<vmem>>, vector<8x8xf32>,
    %63 = vector.extract_strided_slice %34 {offsets = [0, 8], sizes = [8, 8], strides = [1, 1]} : vector<8x32xf32> to vector<8x8xf32>
    %64 = vector.extract_strided_slice %37 {offsets = [0, 8], sizes = [8, 8], strides = [1, 1]} : vector<8x32xf32> to vector<8x8xf32>
    %65 = vector.extract_strided_slice %40 {offsets = [0, 8], sizes = [8, 8], strides = [1, 1]} : vector<8x32xf32> to vector<8x8xf32>
    %cst_37 = arith.constant dense<0.000000e+00> : vector<8x8xf32>
    %66 = tpu.matmul %63, %64, %cst_37 {dimension_numbers = #tpu.dot_dimension_numbers<[1], [1], [0], [0], [0, 0, 1, 0], [], []>} : vector<8x8xf32>, vector<8x8xf32>, vector<8x8xf32> -> vector<8x8xf32>
    %cst_38 = arith.constant 0.353553385 : f32
    %67 = vector.broadcast %cst_38 : f32 to vector<8x8xf32>
    %68 = arith.mulf %66, %67 : vector<8x8xf32>
    %cst_39 = arith.constant 0.000000e+00 : f32
    %69 = vector.broadcast %cst_39 : f32 to vector<8x8xf32>
    %70 = arith.cmpf ogt, %3, %69 : vector<8x8xf32>
    %cst_40 = arith.constant -1.000000e+09 : f32
    %71 = vector.broadcast %cst_40 : f32 to vector<8x8xf32>
    %72 = arith.select %70, %68, %71 : vector<8x8xi1>, vector<8x8xf32>
    %cst_41 = arith.constant dense<0xFF800000> : vector<8xf32>
    %73 = vector.multi_reduction <maximumf>, %72, %cst_41 [1] : vector<8x8xf32> to vector<8xf32>
    %74 = vector.shape_cast %73 : vector<8xf32> to vector<8x1xf32>
    %75 = vector.broadcast %74 : vector<8x1xf32> to vector<8x8xf32>
    %76 = arith.subf %72, %75 : vector<8x8xf32>
    %77 = math.exp %76 : vector<8x8xf32>
    %cst_42 = arith.constant dense<0.000000e+00> : vector<8xf32>
    %78 = vector.multi_reduction <add>, %77, %cst_42 [1] : vector<8x8xf32> to vector<8xf32>
    %79 = vector.shape_cast %78 : vector<8xf32> to vector<8x1xf32>
    %80 = tpu.reciprocal %79 {approx = true} : vector<8x1xf32> -> vector<8x1xf32>
    %81 = vector.broadcast %80 : vector<8x1xf32> to vector<8x8xf32>
    %82 = arith.mulf %77, %81 : vector<8x8xf32>
    %cst_43 = arith.constant dense<0.000000e+00> : vector<8x8xf32>
    %83 = tpu.matmul %82, %65, %cst_43 {dimension_numbers = #tpu.dot_dimension_numbers<[1], [0], [0], [1], [0, 0, 1, 1], [], []>} : vector<8x8xf32>, vector<8x8xf32>, vector<8x8xf32> -> vector<8x8xf32>
    %c0_44 = arith.constant 0 : index
    %c8 = arith.constant 8 : index
    %84 = vector.load %arg14[%c0_44, %c8] : memref<8x32xf32, #tpu.memory_space<vmem>>, vector<8x8xf32>
    tpu.vector_store %arg14[%c0_44, %c8], %83 {strides = array<i32>} : memref<8x32xf32, #tpu.memory_space<vmem>>, vector<8x8xf32>,
    %85 = vector.extract_strided_slice %34 {offsets = [0, 16], sizes = [8, 8], strides = [1, 1]} : vector<8x32xf32> to vector<8x8xf32>
    %86 = vector.extract_strided_slice %37 {offsets = [0, 16], sizes = [8, 8], strides = [1, 1]} : vector<8x32xf32> to vector<8x8xf32>
    %87 = vector.extract_strided_slice %40 {offsets = [0, 16], sizes = [8, 8], strides = [1, 1]} : vector<8x32xf32> to vector<8x8xf32>
    %cst_45 = arith.constant dense<0.000000e+00> : vector<8x8xf32>
    %88 = tpu.matmul %85, %86, %cst_45 {dimension_numbers = #tpu.dot_dimension_numbers<[1], [1], [0], [0], [0, 0, 1, 0], [], []>} : vector<8x8xf32>, vector<8x8xf32>, vector<8x8xf32> -> vector<8x8xf32>
    %cst_46 = arith.constant 0.353553385 : f32
    %89 = vector.broadcast %cst_46 : f32 to vector<8x8xf32>
    %90 = arith.mulf %88, %89 : vector<8x8xf32>
    %cst_47 = arith.constant 0.000000e+00 : f32
    %91 = vector.broadcast %cst_47 : f32 to vector<8x8xf32>
    %92 = arith.cmpf ogt, %3, %91 : vector<8x8xf32>
    %cst_48 = arith.constant -1.000000e+09 : f32
    %93 = vector.broadcast %cst_48 : f32 to vector<8x8xf32>
    %94 = arith.select %92, %90, %93 : vector<8x8xi1>, vector<8x8xf32>
    %cst_49 = arith.constant dense<0xFF800000> : vector<8xf32>
    %95 = vector.multi_reduction <maximumf>, %94, %cst_49 [1] : vector<8x8xf32> to vector<8xf32>
    %96 = vector.shape_cast %95 : vector<8xf32> to vector<8x1xf32>
    %97 = vector.broadcast %96 : vector<8x1xf32> to vector<8x8xf32>
    %98 = arith.subf %94, %97 : vector<8x8xf32>
    %99 = math.exp %98 : vector<8x8xf32>
    %cst_50 = arith.constant dense<0.000000e+00> : vector<8xf32>
    %100 = vector.multi_reduction <add>, %99, %cst_50 [1] : vector<8x8xf32> to vector<8xf32>
    %101 = vector.shape_cast %100 : vector<8xf32> to vector<8x1xf32>
    %102 = tpu.reciprocal %101 {approx = true} : vector<8x1xf32> -> vector<8x1xf32>
    %103 = vector.broadcast %102 : vector<8x1xf32> to vector<8x8xf32>
    %104 = arith.mulf %99, %103 : vector<8x8xf32>
    %cst_51 = arith.constant dense<0.000000e+00> : vector<8x8xf32>
    %105 = tpu.matmul %104, %87, %cst_51 {dimension_numbers = #tpu.dot_dimension_numbers<[1], [0], [0], [1], [0, 0, 1, 1], [], []>} : vector<8x8xf32>, vector<8x8xf32>, vector<8x8xf32> -> vector<8x8xf32>
    %c0_52 = arith.constant 0 : index
    %c16 = arith.constant 16 : index
    %106 = vector.load %arg14[%c0_52, %c16] : memref<8x32xf32, #tpu.memory_space<vmem>>, vector<8x8xf32>
    tpu.vector_store %arg14[%c0_52, %c16], %105 {strides = array<i32>} : memref<8x32xf32, #tpu.memory_space<vmem>>, vector<8x8xf32>,
    %107 = vector.extract_strided_slice %34 {offsets = [0, 24], sizes = [8, 8], strides = [1, 1]} : vector<8x32xf32> to vector<8x8xf32>
    %108 = vector.extract_strided_slice %37 {offsets = [0, 24], sizes = [8, 8], strides = [1, 1]} : vector<8x32xf32> to vector<8x8xf32>
    %109 = vector.extract_strided_slice %40 {offsets = [0, 24], sizes = [8, 8], strides = [1, 1]} : vector<8x32xf32> to vector<8x8xf32>
    %cst_53 = arith.constant dense<0.000000e+00> : vector<8x8xf32>
    %110 = tpu.matmul %107, %108, %cst_53 {dimension_numbers = #tpu.dot_dimension_numbers<[1], [1], [0], [0], [0, 0, 1, 0], [], []>} : vector<8x8xf32>, vector<8x8xf32>, vector<8x8xf32> -> vector<8x8xf32>
    %cst_54 = arith.constant 0.353553385 : f32
    %111 = vector.broadcast %cst_54 : f32 to vector<8x8xf32>
    %112 = arith.mulf %110, %111 : vector<8x8xf32>
    %cst_55 = arith.constant 0.000000e+00 : f32
    %113 = vector.broadcast %cst_55 : f32 to vector<8x8xf32>
    %114 = arith.cmpf ogt, %3, %113 : vector<8x8xf32>
    %cst_56 = arith.constant -1.000000e+09 : f32
    %115 = vector.broadcast %cst_56 : f32 to vector<8x8xf32>
    %116 = arith.select %114, %112, %115 : vector<8x8xi1>, vector<8x8xf32>
    %cst_57 = arith.constant dense<0xFF800000> : vector<8xf32>
    %117 = vector.multi_reduction <maximumf>, %116, %cst_57 [1] : vector<8x8xf32> to vector<8xf32>
    %118 = vector.shape_cast %117 : vector<8xf32> to vector<8x1xf32>
    %119 = vector.broadcast %118 : vector<8x1xf32> to vector<8x8xf32>
    %120 = arith.subf %116, %119 : vector<8x8xf32>
    %121 = math.exp %120 : vector<8x8xf32>
    %cst_58 = arith.constant dense<0.000000e+00> : vector<8xf32>
    %122 = vector.multi_reduction <add>, %121, %cst_58 [1] : vector<8x8xf32> to vector<8xf32>
    %123 = vector.shape_cast %122 : vector<8xf32> to vector<8x1xf32>
    %124 = tpu.reciprocal %123 {approx = true} : vector<8x1xf32> -> vector<8x1xf32>
    %125 = vector.broadcast %124 : vector<8x1xf32> to vector<8x8xf32>
    %126 = arith.mulf %121, %125 : vector<8x8xf32>
    %cst_59 = arith.constant dense<0.000000e+00> : vector<8x8xf32>
    %127 = tpu.matmul %126, %109, %cst_59 {dimension_numbers = #tpu.dot_dimension_numbers<[1], [0], [0], [1], [0, 0, 1, 1], [], []>} : vector<8x8xf32>, vector<8x8xf32>, vector<8x8xf32> -> vector<8x8xf32>
    %c0_60 = arith.constant 0 : index
    %c24 = arith.constant 24 : index
    %128 = vector.load %arg14[%c0_60, %c24] : memref<8x32xf32, #tpu.memory_space<vmem>>, vector<8x8xf32>
    tpu.vector_store %arg14[%c0_60, %c24], %127 {strides = array<i32>} : memref<8x32xf32, #tpu.memory_space<vmem>>, vector<8x8xf32>,
    %c0_61 = arith.constant 0 : index
    %c0_62 = arith.constant 0 : index
    %129 = vector.load %arg14[%c0_61, %c0_62] : memref<8x32xf32, #tpu.memory_space<vmem>>, vector<8x32xf32>
    %c0_63 = arith.constant 0 : index
    %c0_64 = arith.constant 0 : index
    %130 = vector.load %arg11[%c0_63, %c0_64] : memref<32x32xf32, #tpu.memory_space<vmem>>, vector<32x32xf32>
    %cst_65 = arith.constant dense<0.000000e+00> : vector<8x32xf32>
    %131 = tpu.matmul %129, %130, %cst_65 {dimension_numbers = #tpu.dot_dimension_numbers<[1], [0], [0], [1], [0, 0, 1, 1], [], []>} : vector<8x32xf32>, vector<32x32xf32>, vector<8x32xf32> -> vector<8x32xf32>
    %132 = arith.addf %1, %131 : vector<8x32xf32>
    %c0_66 = arith.constant 0 : index
    %c0_67 = arith.constant 0 : index
    %133 = vector.load %arg12[%c0_66, %c0_67] : memref<1x32xf32, #tpu.memory_space<vmem>>, vector<1x32xf32>
    %134 = vector.broadcast %133 : vector<1x32xf32> to vector<8x32xf32>
    %135 = arith.addf %132, %134 : vector<8x32xf32>
    %c0_68 = arith.constant 0 : index
    %c0_69 = arith.constant 0 : index
    %c0_70 = arith.constant 0 : index
    %136 = vector.load %arg13[%c0_68, %c0_69, %c0_70] : memref<1x8x32xf32, #tpu.memory_space<vmem>>, vector<1x8x32xf32>
    %137 = vector.shape_cast %136 : vector<1x8x32xf32> to vector<8x32xf32>
    %138 = vector.shape_cast %135 : vector<8x32xf32> to vector<1x8x32xf32>
    tpu.vector_store %arg13[%c0_68, %c0_69, %c0_70], %138 {strides = array<i32>} : memref<1x8x32xf32, #tpu.memory_space<vmem>>, vector<1x8x32xf32>,
    return
  }
  func.func @transform_0(%arg0: i32) -> (i32, i32, i32) {
    %c0_i32 = arith.constant 0 : i32
    %c0_i32_0 = arith.constant 0 : i32
    %c0_i32_1 = arith.constant 0 : i32
    return %arg0, %c0_i32, %c0_i32_0 : i32, i32, i32
  }
  func.func @transform_1(%arg0: i32) -> (i32, i32, i32) {
    %c0_i32 = arith.constant 0 : i32
    %c0_i32_0 = arith.constant 0 : i32
    %c0_i32_1 = arith.constant 0 : i32
    return %arg0, %c0_i32, %c0_i32_0 : i32, i32, i32
  }
  func.func @transform_2(%arg0: i32) -> (i32, i32) {
    %c0_i32 = arith.constant 0 : i32
    %c0_i32_0 = arith.constant 0 : i32
    %c0_i32_1 = arith.constant 0 : i32
    return %c0_i32, %c0_i32_0 : i32, i32
  }
  func.func @transform_3(%arg0: i32) -> (i32, i32) {
    %c0_i32 = arith.constant 0 : i32
    %c0_i32_0 = arith.constant 0 : i32
    %c0_i32_1 = arith.constant 0 : i32
    return %c0_i32, %c0_i32_0 : i32, i32
  }
  func.func @transform_4(%arg0: i32) -> (i32, i32) {
    %c0_i32 = arith.constant 0 : i32
    %c0_i32_0 = arith.constant 0 : i32
    %c0_i32_1 = arith.constant 0 : i32
    return %c0_i32, %c0_i32_0 : i32, i32
  }
  func.func @transform_5(%arg0: i32) -> (i32, i32) {
    %c0_i32 = arith.constant 0 : i32
    %c0_i32_0 = arith.constant 0 : i32
    %c0_i32_1 = arith.constant 0 : i32
    return %c0_i32, %c0_i32_0 : i32, i32
  }
  func.func @transform_6(%arg0: i32) -> (i32, i32) {
    %c0_i32 = arith.constant 0 : i32
    %c0_i32_0 = arith.constant 0 : i32
    %c0_i32_1 = arith.constant 0 : i32
    return %c0_i32, %c0_i32_0 : i32, i32
  }
  func.func @transform_7(%arg0: i32) -> (i32, i32) {
    %c0_i32 = arith.constant 0 : i32
    %c0_i32_0 = arith.constant 0 : i32
    %c0_i32_1 = arith.constant 0 : i32
    return %c0_i32, %c0_i32_0 : i32, i32
  }
  func.func @transform_8(%arg0: i32) -> (i32, i32) {
    %c0_i32 = arith.constant 0 : i32
    %c0_i32_0 = arith.constant 0 : i32
    %c0_i32_1 = arith.constant 0 : i32
    return %c0_i32, %c0_i32_0 : i32, i32
  }
  func.func @transform_9(%arg0: i32) -> (i32, i32) {
    %c0_i32 = arith.constant 0 : i32
    %c0_i32_0 = arith.constant 0 : i32
    %c0_i32_1 = arith.constant 0 : i32
    return %c0_i32, %c0_i32_0 : i32, i32
  }
  func.func @transform_10(%arg0: i32) -> (i32, i32) {
    %c0_i32 = arith.constant 0 : i32
    %c0_i32_0 = arith.constant 0 : i32
    %c0_i32_1 = arith.constant 0 : i32
    return %c0_i32, %c0_i32_0 : i32, i32
  }
  func.func @transform_11(%arg0: i32) -> (i32, i32) {
    %c0_i32 = arith.constant 0 : i32
    %c0_i32_0 = arith.constant 0 : i32
    %c0_i32_1 = arith.constant 0 : i32
    return %c0_i32, %c0_i32_0 : i32, i32
  }
  func.func @transform_12(%arg0: i32) -> (i32, i32, i32) {
    %c0_i32 = arith.constant 0 : i32
    %c0_i32_0 = arith.constant 0 : i32
    %c0_i32_1 = arith.constant 0 : i32
    return %arg0, %c0_i32, %c0_i32_0 : i32, i32, i32
  }
}

module attributes {stable_mosaic.version = 11 : i64} {
  func.func @_ffn_sublayer_kernel(%arg0: i32, %arg1: memref<16x32xf32, #tpu.memory_space<vmem>>, %arg2: memref<1x32xf32, #tpu.memory_space<vmem>>, %arg3: memref<1x32xf32, #tpu.memory_space<vmem>>, %arg4: memref<32x64xf32, #tpu.memory_space<vmem>>, %arg5: memref<1x64xf32, #tpu.memory_space<vmem>>, %arg6: memref<64x32xf32, #tpu.memory_space<vmem>>, %arg7: memref<1x32xf32, #tpu.memory_space<vmem>>, %arg8: memref<16x32xf32, #tpu.memory_space<vmem>>) attributes {dimension_semantics = [#tpu.dimension_semantics<parallel>], iteration_bounds = array<i64: 1>, scalar_prefetch = 0 : i64, scratch_operands = 0 : i64, tpu.core_type = #tpu.core_type<tc>, window_params = [{transform_indices = @transform_0, window_bounds = array<i64: 16, 32>}, {pipeline_mode = #tpu.pipeline_mode<synchronous>, transform_indices = @transform_1, window_bounds = array<i64: 1, 32>}, {pipeline_mode = #tpu.pipeline_mode<synchronous>, transform_indices = @transform_2, window_bounds = array<i64: 1, 32>}, {pipeline_mode = #tpu.pipeline_mode<synchronous>, transform_indices = @transform_3, window_bounds = array<i64: 32, 64>}, {pipeline_mode = #tpu.pipeline_mode<synchronous>, transform_indices = @transform_4, window_bounds = array<i64: 1, 64>}, {pipeline_mode = #tpu.pipeline_mode<synchronous>, transform_indices = @transform_5, window_bounds = array<i64: 64, 32>}, {pipeline_mode = #tpu.pipeline_mode<synchronous>, transform_indices = @transform_6, window_bounds = array<i64: 1, 32>}, {transform_indices = @transform_7, window_bounds = array<i64: 16, 32>}]} {
    %c0 = arith.constant 0 : index
    %c0_0 = arith.constant 0 : index
    %0 = vector.load %arg1[%c0, %c0_0] : memref<16x32xf32, #tpu.memory_space<vmem>>, vector<16x32xf32>
    %c0_1 = arith.constant 0 : index
    %c0_2 = arith.constant 0 : index
    %1 = vector.load %arg2[%c0_1, %c0_2] : memref<1x32xf32, #tpu.memory_space<vmem>>, vector<1x32xf32>
    %c0_3 = arith.constant 0 : index
    %c0_4 = arith.constant 0 : index
    %2 = vector.load %arg3[%c0_3, %c0_4] : memref<1x32xf32, #tpu.memory_space<vmem>>, vector<1x32xf32>
    %cst = arith.constant dense<0.000000e+00> : vector<16xf32>
    %3 = vector.multi_reduction <add>, %0, %cst [1] : vector<16x32xf32> to vector<16xf32>
    %4 = vector.shape_cast %3 : vector<16xf32> to vector<16x1xf32>
    %cst_5 = arith.constant 3.200000e+01 : f32
    %5 = vector.broadcast %cst_5 : f32 to vector<16x1xf32>
    %6 = arith.divf %4, %5 : vector<16x1xf32>
    %7 = vector.broadcast %6 : vector<16x1xf32> to vector<16x32xf32>
    %8 = arith.subf %0, %7 : vector<16x32xf32>
    %9 = arith.mulf %8, %8 : vector<16x32xf32>
    %cst_6 = arith.constant dense<0.000000e+00> : vector<16xf32>
    %10 = vector.multi_reduction <add>, %9, %cst_6 [1] : vector<16x32xf32> to vector<16xf32>
    %11 = vector.shape_cast %10 : vector<16xf32> to vector<16x1xf32>
    %cst_7 = arith.constant 3.100000e+01 : f32
    %12 = vector.broadcast %cst_7 : f32 to vector<16x1xf32>
    %13 = arith.divf %11, %12 : vector<16x1xf32>
    %14 = math.sqrt %13 : vector<16x1xf32>
    %15 = vector.broadcast %1 : vector<1x32xf32> to vector<16x32xf32>
    %16 = arith.mulf %15, %8 : vector<16x32xf32>
    %cst_8 = arith.constant 9.99999997E-7 : f32
    %17 = vector.broadcast %cst_8 : f32 to vector<16x1xf32>
    %18 = arith.addf %14, %17 : vector<16x1xf32>
    %19 = vector.broadcast %18 : vector<16x1xf32> to vector<16x32xf32>
    %20 = arith.divf %16, %19 : vector<16x32xf32>
    %21 = vector.broadcast %2 : vector<1x32xf32> to vector<16x32xf32>
    %22 = arith.addf %20, %21 : vector<16x32xf32>
    %c0_9 = arith.constant 0 : index
    %c0_10 = arith.constant 0 : index
    %23 = vector.load %arg4[%c0_9, %c0_10] : memref<32x64xf32, #tpu.memory_space<vmem>>, vector<32x64xf32>
    %cst_11 = arith.constant dense<0.000000e+00> : vector<16x64xf32>
    %24 = tpu.matmul %22, %23, %cst_11 {dimension_numbers = #tpu.dot_dimension_numbers<[1], [0], [0], [1], [0, 0, 1, 1], [], []>} : vector<16x32xf32>, vector<32x64xf32>, vector<16x64xf32> -> vector<16x64xf32>
    %c0_12 = arith.constant 0 : index
    %c0_13 = arith.constant 0 : index
    %25 = vector.load %arg5[%c0_12, %c0_13] : memref<1x64xf32, #tpu.memory_space<vmem>>, vector<1x64xf32>
    %26 = vector.broadcast %25 : vector<1x64xf32> to vector<16x64xf32>
    %27 = arith.addf %24, %26 : vector<16x64xf32>
    %cst_14 = arith.constant 0.000000e+00 : f32
    %28 = vector.broadcast %cst_14 : f32 to vector<16x64xf32>
    %29 = arith.maximumf %27, %28 : vector<16x64xf32>
    %c0_15 = arith.constant 0 : index
    %c0_16 = arith.constant 0 : index
    %30 = vector.load %arg6[%c0_15, %c0_16] : memref<64x32xf32, #tpu.memory_space<vmem>>, vector<64x32xf32>
    %cst_17 = arith.constant dense<0.000000e+00> : vector<16x32xf32>
    %31 = tpu.matmul %29, %30, %cst_17 {dimension_numbers = #tpu.dot_dimension_numbers<[1], [0], [0], [1], [0, 0, 1, 1], [], []>} : vector<16x64xf32>, vector<64x32xf32>, vector<16x32xf32> -> vector<16x32xf32>
    %32 = arith.addf %0, %31 : vector<16x32xf32>
    %c0_18 = arith.constant 0 : index
    %c0_19 = arith.constant 0 : index
    %33 = vector.load %arg7[%c0_18, %c0_19] : memref<1x32xf32, #tpu.memory_space<vmem>>, vector<1x32xf32>
    %34 = vector.broadcast %33 : vector<1x32xf32> to vector<16x32xf32>
    %35 = arith.addf %32, %34 : vector<16x32xf32>
    %c0_20 = arith.constant 0 : index
    %c0_21 = arith.constant 0 : index
    %36 = vector.load %arg8[%c0_20, %c0_21] : memref<16x32xf32, #tpu.memory_space<vmem>>, vector<16x32xf32>
    tpu.vector_store %arg8[%c0_20, %c0_21], %35 {strides = array<i32>} : memref<16x32xf32, #tpu.memory_space<vmem>>, vector<16x32xf32>,
    return
  }
  func.func @transform_0(%arg0: i32) -> (i32, i32) {
    %c0_i32 = arith.constant 0 : i32
    %c0_i32_0 = arith.constant 0 : i32
    return %arg0, %c0_i32 : i32, i32
  }
  func.func @transform_1(%arg0: i32) -> (i32, i32) {
    %c0_i32 = arith.constant 0 : i32
    %c0_i32_0 = arith.constant 0 : i32
    %c0_i32_1 = arith.constant 0 : i32
    return %c0_i32, %c0_i32_0 : i32, i32
  }
  func.func @transform_2(%arg0: i32) -> (i32, i32) {
    %c0_i32 = arith.constant 0 : i32
    %c0_i32_0 = arith.constant 0 : i32
    %c0_i32_1 = arith.constant 0 : i32
    return %c0_i32, %c0_i32_0 : i32, i32
  }
  func.func @transform_3(%arg0: i32) -> (i32, i32) {
    %c0_i32 = arith.constant 0 : i32
    %c0_i32_0 = arith.constant 0 : i32
    %c0_i32_1 = arith.constant 0 : i32
    return %c0_i32, %c0_i32_0 : i32, i32
  }
  func.func @transform_4(%arg0: i32) -> (i32, i32) {
    %c0_i32 = arith.constant 0 : i32
    %c0_i32_0 = arith.constant 0 : i32
    %c0_i32_1 = arith.constant 0 : i32
    return %c0_i32, %c0_i32_0 : i32, i32
  }
  func.func @transform_5(%arg0: i32) -> (i32, i32) {
    %c0_i32 = arith.constant 0 : i32
    %c0_i32_0 = arith.constant 0 : i32
    %c0_i32_1 = arith.constant 0 : i32
    return %c0_i32, %c0_i32_0 : i32, i32
  }
  func.func @transform_6(%arg0: i32) -> (i32, i32) {
    %c0_i32 = arith.constant 0 : i32
    %c0_i32_0 = arith.constant 0 : i32
    %c0_i32_1 = arith.constant 0 : i32
    return %c0_i32, %c0_i32_0 : i32, i32
  }
  func.func @transform_7(%arg0: i32) -> (i32, i32) {
    %c0_i32 = arith.constant 0 : i32
    %c0_i32_0 = arith.constant 0 : i32
    return %arg0, %c0_i32 : i32, i32
  }
}

</mosaic_0001>

<llo_original>
// kernel: decoder_layer.5
$region0: #{decoder_layer.5}
  #allocation0 [shape = 'u32[]', space=smem, size = 0x4, offset = 0x4, fixed_abs, tag = 'smem constant byte address 0x4 - core index']
  #allocation1 [shape = 'u32[144,128]{1,0:T(1,128)}', space=vmem, size = 0x12000, scoped, tag = 'internal scratch']
  %s0 = inlined_call_operand.vmem [shape: f32[16,32], index: 0, kind: input, shape index: {}]
  %s1 = inlined_call_operand.vmem [shape: f32[1,32], index: 1, kind: input, shape index: {}]
  %s2 = inlined_call_operand.vmem [shape: f32[1,32], index: 2, kind: input, shape index: {}]
  %s3 = inlined_call_operand.vmem [shape: f32[32,64], index: 3, kind: input, shape index: {}]
  %s4 = inlined_call_operand.vmem [shape: f32[1,64], index: 4, kind: input, shape index: {}]
  %s5 = inlined_call_operand.vmem [shape: f32[64,32], index: 5, kind: input, shape index: {}]
  %s6 = inlined_call_operand.vmem [shape: f32[1,32], index: 6, kind: input, shape index: {}]
  %s7 = inlined_call_operand.hbm [shape: f32[16,32], index: 7, kind: output, shape index: {}]
  %s8 = sld [smem:[#allocation0]]
  $region38: #{decoder_layer.5} parent=0
    _
  %s10 = ssub.s32 1, %s8
  %s11 = scalar_select 0, %s10, %s8
  $region1: #{decoder_layer.5} parent=0
    #allocation2 [shape = 'u8[8192]{0}', space=vmem, size = 0x2000, scoped, tag = 'output window, operand 0, single buffered']
    #allocation3 [shape = 's32[1]{0}', space=sflag, size = 0x4, scoped, tag = 'scoped memory for decoder_layer.5']
    %12 = vsyncpa [#allocation3], 0
    // Predicated region
    $region2: #{decoder_layer.5} parent=1 // pred_check
      _
    $region3: #{decoder_layer.5} parent=1 // pred_check_branch
      %14 = sbr.rel (0) target = $region5
    $region4: #{decoder_layer.5} parent=1 // pred_region
      _
    $region5: #{decoder_layer.5} parent=1 // pred_fallthru
      _
    // Predicated region
    $region6: #{decoder_layer.5} parent=1 // pred_check
      _
    $region7: #{decoder_layer.5} parent=1 // pred_check_branch
      %16 = sbr.rel (0) target = $region9
    $region8: #{decoder_layer.5} parent=1 // pred_region
      _
    $region9: #{decoder_layer.5} parent=1 // pred_fallthru
      _
    // Predicated region
    $region10: #{decoder_layer.5} parent=1 // pred_check
      _
    $region11: #{decoder_layer.5} parent=1 // pred_check_branch
      %18 = sbr.rel (0) target = $region13
    $region12: #{decoder_layer.5} parent=1 // pred_region
      _
    $region13: #{decoder_layer.5} parent=1 // pred_fallthru
      _
    // Predicated region
    $region14: #{decoder_layer.5} parent=1 // pred_check
      _
    $region15: #{decoder_layer.5} parent=1 // pred_check_branch
      %20 = sbr.rel (0) target = $region17
    $region16: #{decoder_layer.5} parent=1 // pred_region
      _
    $region17: #{decoder_layer.5} parent=1 // pred_fallthru
      _
    // Predicated region
    $region18: #{decoder_layer.5} parent=1 // pred_check
      _
    $region19: #{decoder_layer.5} parent=1 // pred_check_branch
      %22 = sbr.rel (0) target = $region21
    $region20: #{decoder_layer.5} parent=1 // pred_region
      _
    $region21: #{decoder_layer.5} parent=1 // pred_fallthru
      _
    // Predicated region
    $region22: #{decoder_layer.5} parent=1 // pred_check
      _
    $region23: #{decoder_layer.5} parent=1 // pred_check_branch
      %24 = sbr.rel (0) target = $region25
    $region24: #{decoder_layer.5} parent=1 // pred_region
      _
    $region25: #{decoder_layer.5} parent=1 // pred_fallthru
      _
    // Predicated region
    $region26: #{decoder_layer.5} parent=1 // pred_check
      _
    $region27: #{decoder_layer.5} parent=1 // pred_check_branch
      %26 = sbr.rel (0) target = $region29
    $region28: #{decoder_layer.5} parent=1 // pred_region
      _
    $region29: #{decoder_layer.5} parent=1 // pred_fallthru
      _
    %v27 = vld [vmem:[%s0] sm:$0xff]
    %v28 = vld [vmem:[%s0 + $0x8] sm:$0xff]
    %v29 = vld [vmem:[%s1] sm:$0x1]
    %v30 = vld [vmem:[%s2] sm:$0x1]
    %vm31 = vcmask 261120
    %v32 = vsel %vm31, %v27, 0.0
    %33 = vadd.xlane.f32.xlu0 %v32
    %v34 = vpop.xlane.xlu0 %33
    %v35 = vsel %vm31, %v28, 0.0
    %36 = vadd.xlane.f32.xlu0 %v35
    %v37 = vpop.xlane.xlu0 %36
    %v38 = vrcp.pop 32.0
    %v39 = vmul.f32 %v34, %v38
    %v40 = vmul.f32 %v37, %v38
    %v41 = vsub.f32 %v27, %v39
    %v42 = vsub.f32 %v28, %v40
    %v43 = vmul.f32 %v41, %v41
    %v44 = vmul.f32 %v42, %v42
    %v45 = vsel %vm31, %v43, 0.0
    %46 = vadd.xlane.f32.xlu0 %v45
    %v47 = vpop.xlane.xlu0 %46
    %v48 = vsel %vm31, %v44, 0.0
    %49 = vadd.xlane.f32.xlu0 %v48
    %v50 = vpop.xlane.xlu0 %49
    %v51 = vrcp.pop 31.0
    %v52 = vmul.f32 %v47, %v51
    %v53 = vmul.f32 %v50, %v51
    %v54 = vrsqrt.pop %v52
    %v55 = vmul.f32 %v52, %v54
    %vm56 = vcmp.eq.f32.partialorder %v52, inf
    %v57 = vsel %vm56, %v52, %v55
    %vm58 = vcmp.eq.f32.partialorder %v52, 0.0
    %v59 = vand.u32 %v52, 2147483648
    %v60 = vsel %vm58, %v59, %v57
    %v61 = vrsqrt.pop %v53
    %v62 = vmul.f32 %v53, %v61
    %vm63 = vcmp.eq.f32.partialorder %v53, inf
    %v64 = vsel %vm63, %v53, %v62
    %vm65 = vcmp.eq.f32.partialorder %v53, 0.0
    %v66 = vand.u32 %v53, 2147483648
    %v67 = vsel %vm65, %v66, %v64
    %v69 = vlaneseq
    %v70 = vshrl.u32 %v69, 7
    %v71 = vsub.s32 0, %v70
    %v72 = vrot.slane %v29, %v71
    %v74 = vmul.f32 %v72, %v41
    %v75 = vmul.f32 %v72, %v42
    %v76 = vadd.f32 %v60, 1e-06
    %v77 = vadd.f32 %v67, 1e-06
    %v78 = vrcp.pop %v76
    %v79 = vmul.f32 %v74, %v78
    %v80 = vrcp.pop %v77
    %v81 = vmul.f32 %v75, %v80
    %v83 = vlaneseq
    %v84 = vshrl.u32 %v83, 7
    %v85 = vsub.s32 0, %v84
    %v86 = vrot.slane %v30, %v85
    %v88 = vadd.f32 %v79, %v86
    %v89 = vadd.f32 %v81, %v86
    %v90 = vld [vmem:[%s3] sm:$0xff]
    %v91 = vld [vmem:[%s3 + $0x8] sm:$0xff]
    %v92 = vld [vmem:[%s3 + $0x10] sm:$0xff]
    %v93 = vld [vmem:[%s3 + $0x18] sm:$0xff]
    %v94 = vld [vmem:[%s4] sm:$0x1]
    %v96 = vlaneseq
    %v97 = vshrl.u32 %v96, 7
    %v98 = vsub.s32 0, %v97
    %v99 = vrot.slane %v94, %v98
    %v102 = vsel %vm31, %v88, 0
    %v105 = vsel %vm31, %v89, 0
    %107 = vmatprep.subr.mxu0 0.0
    %108 = vmatpush1.msra.mxu0 %v90
    %109 = vmatprep.subr.mxu0 0.0
    %110 = vmatpush1.msra.mxu0 %v91
    %111 = vmatprep.subr.mxu0 0.0
    %112 = vmatpush1.msra.mxu0 %v92
    %113 = vmatprep.subr.mxu0 0.0
    %114 = vmatpush1.msra.mxu0 %v93
    %115 = vmatprep.subr.mxu0 0.0
    %116 = vmatpush1.msra.mxu0 0.0
    %117 = vmatprep.subr.mxu0 0.0
    %118 = vmatpush1.msra.mxu0 0.0
    %119 = vmatprep.subr.mxu0 0.0
    %120 = vmatpush1.msra.mxu0 0.0
    %121 = vmatprep.subr.mxu0 0.0
    %122 = vmatpush1.msra.mxu0 0.0
    %123 = vmatprep.subr.mxu0 0.0
    %124 = vmatpush1.msra.mxu0 0.0
    %125 = vmatprep.subr.mxu0 0.0
    %126 = vmatpush1.msra.mxu0 0.0
    %127 = vmatprep.subr.mxu0 0.0
    %128 = vmatpush1.msra.mxu0 0.0
    %129 = vmatprep.subr.mxu0 0.0
    %130 = vmatpush1.msra.mxu0 0.0
    %131 = vmatprep.subr.mxu0 0.0
    %132 = vmatpush1.msra.mxu0 0.0
    %133 = vmatprep.subr.mxu0 0.0
    %134 = vmatpush1.msra.mxu0 0.0
    %135 = vmatprep.subr.mxu0 0.0
    %136 = vmatpush1.msra.mxu0 0.0
    %137 = vmatprep.subr.mxu0 0.0
    %138 = vmatpush1.msra.mxu0 0.0
    %139 = vmatprep.subr.mxu0 0.0
    %140 = vmatpush1.msra.mxu0 0.0
    %141 = vmatprep.subr.mxu0 0.0
    %142 = vmatpush1.msra.mxu0 0.0
    %143 = vmatprep.subr.mxu0 0.0
    %144 = vmatpush1.msra.mxu0 0.0
    %145 = vmatprep.subr.mxu0 0.0
    %146 = vmatpush1.msra.mxu0 0.0
    %147 = vmatprep.subr.mxu0 0.0
    %148 = vmatpush1.msra.mxu0 0.0
    %149 = vmatprep.subr.mxu0 0.0
    %150 = vmatpush1.msra.mxu0 0.0
    %151 = vmatprep.subr.mxu0 0.0
    %152 = vmatpush1.msra.mxu0 0.0
    %153 = vmatprep.subr.mxu0 0.0
    %154 = vmatpush1.msra.mxu0 0.0
    %155 = vmatprep.subr.mxu0 0.0
    %156 = vmatpush1.msra.mxu0 0.0
    %157 = vmatprep.subr.mxu0 0.0
    %158 = vmatpush1.msra.mxu0 0.0
    %159 = vmatprep.subr.mxu0 0.0
    %160 = vmatpush1.msra.mxu0 0.0
    %161 = vmatprep.subr.mxu0 0.0
    %162 = vmatpush1.msra.mxu0 0.0
    %163 = vmatprep.subr.mxu0 0.0
    %164 = vmatpush1.msra.mxu0 0.0
    %165 = vmatprep.subr.mxu0 0.0
    %166 = vmatpush1.msra.mxu0 0.0
    %167 = vmatprep.subr.mxu0 0.0
    %168 = vmatpush1.msra.mxu0 0.0
    %169 = vmatprep.subr.mxu0 0.0
    %170 = vmatpush1.msra.mxu0 0.0
    %171 = vmatprep.mubr.f32.mxu0 0.0
    %172 = vmatmul.mubr.f32.gmra.mrb[0].mxu0 %v102
    %v173 = vpop.f32.mrb[0].mxu0
    %v174 = vadd.f32 %v99, %v173
    %v175 = vpop.f32.mrb[0].mxu0
    %176 = vmatprep.mubr.f32.mxu0 0.0
    %177 = vmatmul.mubr.f32.gmra.mrb[0].mxu0 %v105
    %v178 = vpop.f32.mrb[0].mxu0
    %v179 = vadd.f32 %v99, %v178
    %v180 = vpop.f32.mrb[0].mxu0
    %181 = vdwg.mxu0
    %v182 = vmax.f32 %v174, 0.0
    %v183 = vmax.f32 %v179, 0.0
    %v184 = vld [vmem:[%s5] sm:$0xff]
    %v185 = vld [vmem:[%s5 + $0x8] sm:$0xff]
    %v186 = vld [vmem:[%s5 + $0x10] sm:$0xff]
    %v187 = vld [vmem:[%s5 + $0x18] sm:$0xff]
    %v188 = vld [vmem:[%s5 + $0x20] sm:$0xff]
    %v189 = vld [vmem:[%s5 + $0x28] sm:$0xff]
    %v190 = vld [vmem:[%s5 + $0x30] sm:$0xff]
    %v191 = vld [vmem:[%s5 + $0x38] sm:$0xff]
    %vm192 = vcmask 523264
    %v194 = vsel %vm192, %v182, 0
    %v197 = vsel %vm192, %v183, 0
    %199 = vmatprep.subr.mxu0 0.0
    %200 = vmatpush1.msra.mxu0 %v184
    %201 = vmatprep.subr.mxu0 0.0
    %202 = vmatpush1.msra.mxu0 %v185
    %203 = vmatprep.subr.mxu0 0.0
    %204 = vmatpush1.msra.mxu0 %v186
    %205 = vmatprep.subr.mxu0 0.0
    %206 = vmatpush1.msra.mxu0 %v187
    %207 = vmatprep.subr.mxu0 0.0
    %208 = vmatpush1.msra.mxu0 %v188
    %209 = vmatprep.subr.mxu0 0.0
    %210 = vmatpush1.msra.mxu0 %v189
    %211 = vmatprep.subr.mxu0 0.0
    %212 = vmatpush1.msra.mxu0 %v190
    %213 = vmatprep.subr.mxu0 0.0
    %214 = vmatpush1.msra.mxu0 %v191
    %215 = vmatprep.subr.mxu0 0.0
    %216 = vmatpush1.msra.mxu0 0.0
    %217 = vmatprep.subr.mxu0 0.0
    %218 = vmatpush1.msra.mxu0 0.0
    %219 = vmatprep.subr.mxu0 0.0
    %220 = vmatpush1.msra.mxu0 0.0
    %221 = vmatprep.subr.mxu0 0.0
    %222 = vmatpush1.msra.mxu0 0.0
    %223 = vmatprep.subr.mxu0 0.0
    %224 = vmatpush1.msra.mxu0 0.0
    %225 = vmatprep.subr.mxu0 0.0
    %226 = vmatpush1.msra.mxu0 0.0
    %227 = vmatprep.subr.mxu0 0.0
    %228 = vmatpush1.msra.mxu0 0.0
    %229 = vmatprep.subr.mxu0 0.0
    %230 = vmatpush1.msra.mxu0 0.0
    %231 = vmatprep.subr.mxu0 0.0
    %232 = vmatpush1.msra.mxu0 0.0
    %233 = vmatprep.subr.mxu0 0.0
    %234 = vmatpush1.msra.mxu0 0.0
    %235 = vmatprep.subr.mxu0 0.0
    %236 = vmatpush1.msra.mxu0 0.0
    %237 = vmatprep.subr.mxu0 0.0
    %238 = vmatpush1.msra.mxu0 0.0
    %239 = vmatprep.subr.mxu0 0.0
    %240 = vmatpush1.msra.mxu0 0.0
    %241 = vmatprep.subr.mxu0 0.0
    %242 = vmatpush1.msra.mxu0 0.0
    %243 = vmatprep.subr.mxu0 0.0
    %244 = vmatpush1.msra.mxu0 0.0
    %245 = vmatprep.subr.mxu0 0.0
    %246 = vmatpush1.msra.mxu0 0.0
    %247 = vmatprep.subr.mxu0 0.0
    %248 = vmatpush1.msra.mxu0 0.0
    %249 = vmatprep.subr.mxu0 0.0
    %250 = vmatpush1.msra.mxu0 0.0
    %251 = vmatprep.subr.mxu0 0.0
    %252 = vmatpush1.msra.mxu0 0.0
    %253 = vmatprep.subr.mxu0 0.0
    %254 = vmatpush1.msra.mxu0 0.0
    %255 = vmatprep.subr.mxu0 0.0
    %256 = vmatpush1.msra.mxu0 0.0
    %257 = vmatprep.subr.mxu0 0.0
    %258 = vmatpush1.msra.mxu0 0.0
    %259 = vmatprep.subr.mxu0 0.0
    %260 = vmatpush1.msra.mxu0 0.0
    %261 = vmatprep.subr.mxu0 0.0
    %262 = vmatpush1.msra.mxu0 0.0
    %263 = vmatprep.mubr.f32.mxu0 0.0
    %264 = vmatmul.mubr.f32.gmra.mrb[0].mxu0 %v194
    %v265 = vpop.f32.mrb[0].mxu0
    %v266 = vadd.f32 0.0, %v265
    %v267 = vpop.f32.mrb[0].mxu0
    %268 = vmatprep.mubr.f32.mxu0 0.0
    %269 = vmatmul.mubr.f32.gmra.mrb[0].mxu0 %v197
    %v270 = vpop.f32.mrb[0].mxu0
    %v271 = vadd.f32 0.0, %v270
    %v272 = vpop.f32.mrb[0].mxu0
    %273 = vdwg.mxu0
    %v274 = vadd.f32 %v27, %v266
    %v275 = vadd.f32 %v28, %v271
    %v276 = vld [vmem:[%s6] sm:$0x1]
    %v278 = vlaneseq
    %v279 = vshrl.u32 %v278, 7
    %v280 = vsub.s32 0, %v279
    %v281 = vrot.slane %v276, %v280
    %v283 = vadd.f32 %v274, %v281
    %v284 = vadd.f32 %v275, %v281
    %285 = vst.msk [vmem:[#allocation2] sm:$0xff] %vm31, %v283
    %286 = vst.msk [vmem:[#allocation2 + $0x8] sm:$0xff] %vm31, %v284
    // Predicated region
    $region30: #{decoder_layer.5} parent=1 // pred_check
      _
    $region31: #{decoder_layer.5} parent=1 // pred_check_branch
      %288 = sbr.rel (0) target = $region33
    $region32: #{decoder_layer.5} parent=1 // pred_region
      %s290 = ssub.s32 256, 256
      %291 = vsyncadd [#allocation3], %s290
      %s292 = sshll.u32 [#allocation2], 4
      %s293 = int_to_ptr.vmem [resolvable:$true] %s292
      %298 = dma.vmem_to_hbm [thread:$0]  %s293, 256, %s7, [#allocation3], 128, 128, 8
    $region33: #{decoder_layer.5} parent=1 // pred_fallthru
      _
    // Predicated region
    $region34: #{decoder_layer.5} parent=1 // pred_check
      _
    $region35: #{decoder_layer.5} parent=1 // pred_check_branch
      %300 = sbr.rel (0) target = $region37
    $region36: #{decoder_layer.5} parent=1 // pred_region
      %301 = dma.done [#allocation3], 256
    $region37: #{decoder_layer.5} parent=1 // pred_fallthru
      _
    %302 = vsyncpa [#allocation3], 1

// kernel: decoder_layer.3
$region0: #{decoder_layer.3}
  #allocation0 [shape = 'u32[]', space=smem, size = 0x4, offset = 0x4, fixed_abs, tag = 'smem constant byte address 0x4 - core index']
  #allocation1 [shape = 'u32[144,128]{1,0:T(1,128)}', space=vmem, size = 0x12000, scoped, tag = 'internal scratch']
  #allocation2 [shape = 'f32[8,32]{1,0:T(8,128)}', space=vmem, size = 0x1000, scoped, tag = 'scratch operand']
  %s0 = inlined_call_operand.hbm [shape: f32[2,8,32], index: 0, kind: input, shape index: {}]
  %s1 = inlined_call_operand.hbm [shape: f32[2,8,8], index: 1, kind: input, shape index: {}]
  %s2 = inlined_call_operand.hbm [shape: f32[1,32], index: 2, kind: input, shape index: {}]
  %s3 = inlined_call_operand.hbm [shape: f32[1,32], index: 3, kind: input, shape index: {}]
  %s4 = inlined_call_operand.vmem [shape: f32[32,32], index: 4, kind: input, shape index: {}]
  %s5 = inlined_call_operand.hbm [shape: f32[1,32], index: 5, kind: input, shape index: {}]
  %s6 = inlined_call_operand.vmem [shape: f32[32,32], index: 6, kind: input, shape index: {}]
  %s7 = inlined_call_operand.hbm [shape: f32[1,32], index: 7, kind: input, shape index: {}]
  %s8 = inlined_call_operand.hbm [shape: f32[32,32], index: 8, kind: input, shape index: {}]
  %s9 = inlined_call_operand.hbm [shape: f32[1,32], index: 9, kind: input, shape index: {}]
  %s10 = inlined_call_operand.hbm [shape: f32[32,32], index: 10, kind: input, shape index: {}]
  %s11 = inlined_call_operand.hbm [shape: f32[1,32], index: 11, kind: input, shape index: {}]
  %s12 = inlined_call_operand.vmem [shape: f32[2,8,32], index: 12, kind: output, shape index: {}]
  %s13 = sld [smem:[#allocation0]]
  $region121: #{decoder_layer.3} parent=0
    _
  %s15 = ssub.s32 1, %s13
  %s16 = scalar_select 0, %s15, %s13
  $region1: #{decoder_layer.3} parent=0
    #allocation3 [shape = 'u8[8192]{0}', space=vmem, size = 0x2000, scoped, tag = 'input window, operand 0']
    #allocation4 [shape = 's32[2]{0}', space=sflag, size = 0x8, scoped, tag = 'scoped memory for decoder_layer.3']
    #allocation5 [shape = 'u8[8192]{0}', space=vmem, size = 0x2000, scoped, tag = 'input window, operand 1']
    #allocation6 [shape = 's32[2]{0}', space=sflag, size = 0x8, scoped, tag = 'scoped memory for decoder_layer.3']
    #allocation7 [shape = 'u8[512]{0}', space=vmem, size = 0x400, scoped, tag = 'input window, operand 2, single buffered']
    #allocation8 [shape = 'u8[512]{0}', space=vmem, size = 0x400, scoped, tag = 'input window, operand 3, single buffered']
    #allocation9 [shape = 's32[1]{0}', space=sflag, size = 0x4, scoped, tag = 'scoped memory for decoder_layer.3']
    #allocation10 [shape = 'u8[512]{0}', space=vmem, size = 0x400, scoped, tag = 'input window, operand 5, single buffered']
    #allocation11 [shape = 'u8[512]{0}', space=vmem, size = 0x400, scoped, tag = 'input window, operand 7, single buffered']
    #allocation12 [shape = 's32[1]{0}', space=sflag, size = 0x4, scoped, tag = 'scoped memory for decoder_layer.3']
    #allocation13 [shape = 'u8[16384]{0}', space=vmem, size = 0x4000, scoped, tag = 'input window, operand 8, single buffered']
    #allocation14 [shape = 'u8[512]{0}', space=vmem, size = 0x400, scoped, tag = 'input window, operand 9, single buffered']
    #allocation15 [shape = 's32[1]{0}', space=sflag, size = 0x4, scoped, tag = 'scoped memory for decoder_layer.3']
    #allocation16 [shape = 'u8[16384]{0}', space=vmem, size = 0x4000, scoped, tag = 'input window, operand 10, single buffered']
    #allocation17 [shape = 'u8[512]{0}', space=vmem, size = 0x400, scoped, tag = 'input window, operand 11, single buffered']
    #allocation18 [shape = 's32[1]{0}', space=sflag, size = 0x4, scoped, tag = 'scoped memory for decoder_layer.3']
    %17 = vsyncpa [#allocation4], 0
    %s18 = scalar_lea.sflag [#allocation4], 1
    %19 = vsyncpa %s18, 0
    %20 = vsyncpa [#allocation6], 0
    %s21 = scalar_lea.sflag [#allocation6], 1
    %22 = vsyncpa %s21, 0
    %23 = vsyncpa [#allocation9], 0
    %24 = vsyncpa [#allocation12], 0
    %25 = vsyncpa [#allocation15], 0
    %26 = vsyncpa [#allocation18], 0
    loop: start=0, step=1, limit=4
    $region2: #{decoder_layer.3} parent=1 // loop_pre_header
      _
    $region3: #{decoder_layer.3} parent=1 // loop_header
      %s28 = sphi 0, %s32
      %p29 = scmp.ge.s32.totalorder %s28, 4
      %s38 = sphi 0, %s40
      %s41 = sphi 0, %s38
      %s42 = sphi 0, %s41
      %s58 = sphi 0, %s42
      %s64 = sphi 0, %s66
      %s67 = sphi 0, %s64
      %s68 = sphi 0, %s67
      %s84 = sphi 0, %s68
      %s88 = sphi 0, %s88
      %s90 = sphi 0, %s88
      %s91 = sphi 0, %s90
      %s105 = sphi 0, %s91
      %s109 = sphi 0, %s109
      %s111 = sphi 0, %s109
      %s112 = sphi 0, %s111
      %s126 = sphi 0, %s112
      %s130 = sphi 0, %s130
      %s132 = sphi 0, %s130
      %s133 = sphi 0, %s132
      %s147 = sphi 0, %s133
      %s151 = sphi 0, %s151
      %s153 = sphi 0, %s151
      %s154 = sphi 0, %s153
      %s168 = sphi 0, %s154
      %s172 = sphi 0, %s172
      %s174 = sphi 0, %s172
      %s175 = sphi 0, %s174
      %s189 = sphi 0, %s175
      %s193 = sphi 0, %s193
      %s195 = sphi 0, %s193
      %s196 = sphi 0, %s195
      %s210 = sphi 0, %s196
      %s214 = sphi 0, %s214
      %s216 = sphi 0, %s214
      %s217 = sphi 0, %s216
      %s231 = sphi 0, %s217
      %s235 = sphi 0, %s235
      %s237 = sphi 0, %s235
      %s238 = sphi 0, %s237
      %s252 = sphi 0, %s238
      %s256 = sphi 0, %s256
      %s258 = sphi 0, %s256
      %s259 = sphi 0, %s258
      %s273 = sphi 0, %s259
      %s277 = sphi 0, %s277
      %s279 = sphi 0, %s277
      %s280 = sphi 0, %s279
      %s294 = sphi 0, %s280
      %s300 = sphi 0, %s302
      %s303 = sphi 0, %s300
      %s304 = sphi 0, %s303
      %s320 = sphi 0, %s304
    $region4: #{decoder_layer.3} parent=1 // loop_header_branch
      %31 = sbr.rel (%p29) target = $region8
    $region5: #{decoder_layer.3} parent=1 // loop_body
      %s33 = ssub.s32 %s28, 1
      %s34 = ssub.s32 %s28, 2
      %s35 = sadd.s32 %s28, 1
      %s36 = ssub.s32 %s28, %s35
      %p37 = scmp.eq.s32.totalorder %s36, 0
      %s39 = sadd.s32 %s38, 1
      %s40 = scalar_select %p37, %s38, %s39
      %p43 = pneg %p37
      %p44 = scmp.eq.s32.totalorder %s28, 1
      %p45 = por %p43, %p44
      %p46 = scmp.ne.s32.totalorder %s38, %s41
      %p47 = scmp.eq.s32.totalorder %s28, 0
      %p48 = por %p46, %p47
      %p49 = scmp.ne.s32.totalorder %s38, %s41
      %p50 = scmp.eq.s32.totalorder %s33, 1
      %p51 = por %p49, %p50
      %p52 = scmp.ne.s32.totalorder %s41, %s42
      %p53 = scmp.eq.s32.totalorder %s33, 0
      %p54 = por %p52, %p53
      %p55 = scmp.ne.s32.totalorder %s41, %s42
      %p56 = scmp.eq.s32.totalorder %s34, 1
      %p57 = por %p55, %p56
      %p59 = scmp.ne.s32.totalorder %s42, %s58
      %p60 = scmp.eq.s32.totalorder %s34, 0
      %p61 = por %p59, %p60
      %s62 = ssub.s32 %s28, %s35
      %p63 = scmp.eq.s32.totalorder %s62, 0
      %s65 = sadd.s32 %s64, 1
      %s66 = scalar_select %p63, %s64, %s65
      %p69 = pneg %p63
      %p70 = scmp.eq.s32.totalorder %s28, 1
      %p71 = por %p69, %p70
      %p72 = scmp.ne.s32.totalorder %s64, %s67
      %p73 = scmp.eq.s32.totalorder %s28, 0
      %p74 = por %p72, %p73
      %p75 = scmp.ne.s32.totalorder %s64, %s67
      %p76 = scmp.eq.s32.totalorder %s33, 1
      %p77 = por %p75, %p76
      %p78 = scmp.ne.s32.totalorder %s67, %s68
      %p79 = scmp.eq.s32.totalorder %s33, 0
      %p80 = por %p78, %p79
      %p81 = scmp.ne.s32.totalorder %s67, %s68
      %p82 = scmp.eq.s32.totalorder %s34, 1
      %p83 = por %p81, %p82
      %p85 = scmp.ne.s32.totalorder %s68, %s84
      %p86 = scmp.eq.s32.totalorder %s34, 0
      %p87 = por %p85, %p86
      %s89 = sadd.s32 %s88, 1
      %p92 = scmp.eq.s32.totalorder %s28, 1
      %p93 = scmp.ne.s32.totalorder %s88, %s90
      %p94 = scmp.eq.s32.totalorder %s28, 0
      %p95 = por %p93, %p94
      %p96 = scmp.ne.s32.totalorder %s88, %s90
      %p97 = scmp.eq.s32.totalorder %s33, 1
      %p98 = por %p96, %p97
      %p99 = scmp.ne.s32.totalorder %s90, %s91
      %p100 = scmp.eq.s32.totalorder %s33, 0
      %p101 = por %p99, %p100
      %p102 = scmp.ne.s32.totalorder %s90, %s91
      %p103 = scmp.eq.s32.totalorder %s34, 1
      %p104 = por %p102, %p103
      %p106 = scmp.ne.s32.totalorder %s91, %s105
      %p107 = scmp.eq.s32.totalorder %s34, 0
      %p108 = por %p106, %p107
      %s110 = sadd.s32 %s109, 1
      %p113 = scmp.eq.s32.totalorder %s28, 1
      %p114 = scmp.ne.s32.totalorder %s109, %s111
      %p115 = scmp.eq.s32.totalorder %s28, 0
      %p116 = por %p114, %p115
      %p117 = scmp.ne.s32.totalorder %s109, %s111
      %p118 = scmp.eq.s32.totalorder %s33, 1
      %p119 = por %p117, %p118
      %p120 = scmp.ne.s32.totalorder %s111, %s112
      %p121 = scmp.eq.s32.totalorder %s33, 0
      %p122 = por %p120, %p121
      %p123 = scmp.ne.s32.totalorder %s111, %s112
      %p124 = scmp.eq.s32.totalorder %s34, 1
      %p125 = por %p123, %p124
      %p127 = scmp.ne.s32.totalorder %s112, %s126
      %p128 = scmp.eq.s32.totalorder %s34, 0
      %p129 = por %p127, %p128
      %s131 = sadd.s32 %s130, 1
      %p134 = scmp.eq.s32.totalorder %s28, 1
      %p135 = scmp.ne.s32.totalorder %s130, %s132
      %p136 = scmp.eq.s32.totalorder %s28, 0
      %p137 = por %p135, %p136
      %p138 = scmp.ne.s32.totalorder %s130, %s132
      %p139 = scmp.eq.s32.totalorder %s33, 1
      %p140 = por %p138, %p139
      %p141 = scmp.ne.s32.totalorder %s132, %s133
      %p142 = scmp.eq.s32.totalorder %s33, 0
      %p143 = por %p141, %p142
      %p144 = scmp.ne.s32.totalorder %s132, %s133
      %p145 = scmp.eq.s32.totalorder %s34, 1
      %p146 = por %p144, %p145
      %p148 = scmp.ne.s32.totalorder %s133, %s147
      %p149 = scmp.eq.s32.totalorder %s34, 0
      %p150 = por %p148, %p149
      %s152 = sadd.s32 %s151, 1
      %p155 = scmp.eq.s32.totalorder %s28, 1
      %p156 = scmp.ne.s32.totalorder %s151, %s153
      %p157 = scmp.eq.s32.totalorder %s28, 0
      %p158 = por %p156, %p157
      %p159 = scmp.ne.s32.totalorder %s151, %s153
      %p160 = scmp.eq.s32.totalorder %s33, 1
      %p161 = por %p159, %p160
      %p162 = scmp.ne.s32.totalorder %s153, %s154
      %p163 = scmp.eq.s32.totalorder %s33, 0
      %p164 = por %p162, %p163
      %p165 = scmp.ne.s32.totalorder %s153, %s154
      %p166 = scmp.eq.s32.totalorder %s34, 1
      %p167 = por %p165, %p166
      %p169 = scmp.ne.s32.totalorder %s154, %s168
      %p170 = scmp.eq.s32.totalorder %s34, 0
      %p171 = por %p169, %p170
      %s173 = sadd.s32 %s172, 1
      %p176 = scmp.eq.s32.totalorder %s28, 1
      %p177 = scmp.ne.s32.totalorder %s172, %s174
      %p178 = scmp.eq.s32.totalorder %s28, 0
      %p179 = por %p177, %p178
      %p180 = scmp.ne.s32.totalorder %s172, %s174
      %p181 = scmp.eq.s32.totalorder %s33, 1
      %p182 = por %p180, %p181
      %p183 = scmp.ne.s32.totalorder %s174, %s175
      %p184 = scmp.eq.s32.totalorder %s33, 0
      %p185 = por %p183, %p184
      %p186 = scmp.ne.s32.totalorder %s174, %s175
      %p187 = scmp.eq.s32.totalorder %s34, 1
      %p188 = por %p186, %p187
      %p190 = scmp.ne.s32.totalorder %s175, %s189
      %p191 = scmp.eq.s32.totalorder %s34, 0
      %p192 = por %p190, %p191
      %s194 = sadd.s32 %s193, 1
      %p197 = scmp.eq.s32.totalorder %s28, 1
      %p198 = scmp.ne.s32.totalorder %s193, %s195
      %p199 = scmp.eq.s32.totalorder %s28, 0
      %p200 = por %p198, %p199
      %p201 = scmp.ne.s32.totalorder %s193, %s195
      %p202 = scmp.eq.s32.totalorder %s33, 1
      %p203 = por %p201, %p202
      %p204 = scmp.ne.s32.totalorder %s195, %s196
      %p205 = scmp.eq.s32.totalorder %s33, 0
      %p206 = por %p204, %p205
      %p207 = scmp.ne.s32.totalorder %s195, %s196
      %p208 = scmp.eq.s32.totalorder %s34, 1
      %p209 = por %p207, %p208
      %p211 = scmp.ne.s32.totalorder %s196, %s210
      %p212 = scmp.eq.s32.totalorder %s34, 0
      %p213 = por %p211, %p212
      %s215 = sadd.s32 %s214, 1
      %p218 = scmp.eq.s32.totalorder %s28, 1
      %p219 = scmp.ne.s32.totalorder %s214, %s216
      %p220 = scmp.eq.s32.totalorder %s28, 0
      %p221 = por %p219, %p220
      %p222 = scmp.ne.s32.totalorder %s214, %s216
      %p223 = scmp.eq.s32.totalorder %s33, 1
      %p224 = por %p222, %p223
      %p225 = scmp.ne.s32.totalorder %s216, %s217
      %p226 = scmp.eq.s32.totalorder %s33, 0
      %p227 = por %p225, %p226
      %p228 = scmp.ne.s32.totalorder %s216, %s217
      %p229 = scmp.eq.s32.totalorder %s34, 1
      %p230 = por %p228, %p229
      %p232 = scmp.ne.s32.totalorder %s217, %s231
      %p233 = scmp.eq.s32.totalorder %s34, 0
      %p234 = por %p232, %p233
      %s236 = sadd.s32 %s235, 1
      %p239 = scmp.eq.s32.totalorder %s28, 1
      %p240 = scmp.ne.s32.totalorder %s235, %s237
      %p241 = scmp.eq.s32.totalorder %s28, 0
      %p242 = por %p240, %p241
      %p243 = scmp.ne.s32.totalorder %s235, %s237
      %p244 = scmp.eq.s32.totalorder %s33, 1
      %p245 = por %p243, %p244
      %p246 = scmp.ne.s32.totalorder %s237, %s238
      %p247 = scmp.eq.s32.totalorder %s33, 0
      %p248 = por %p246, %p247
      %p249 = scmp.ne.s32.totalorder %s237, %s238
      %p250 = scmp.eq.s32.totalorder %s34, 1
      %p251 = por %p249, %p250
      %p253 = scmp.ne.s32.totalorder %s238, %s252
      %p254 = scmp.eq.s32.totalorder %s34, 0
      %p255 = por %p253, %p254
      %s257 = sadd.s32 %s256, 1
      %p260 = scmp.eq.s32.totalorder %s28, 1
      %p261 = scmp.ne.s32.totalorder %s256, %s258
      %p262 = scmp.eq.s32.totalorder %s28, 0
      %p263 = por %p261, %p262
      %p264 = scmp.ne.s32.totalorder %s256, %s258
      %p265 = scmp.eq.s32.totalorder %s33, 1
      %p266 = por %p264, %p265
      %p267 = scmp.ne.s32.totalorder %s258, %s259
      %p268 = scmp.eq.s32.totalorder %s33, 0
      %p269 = por %p267, %p268
      %p270 = scmp.ne.s32.totalorder %s258, %s259
      %p271 = scmp.eq.s32.totalorder %s34, 1
      %p272 = por %p270, %p271
      %p274 = scmp.ne.s32.totalorder %s259, %s273
      %p275 = scmp.eq.s32.totalorder %s34, 0
      %p276 = por %p274, %p275
      %s278 = sadd.s32 %s277, 1
      %p281 = scmp.eq.s32.totalorder %s28, 1
      %p282 = scmp.ne.s32.totalorder %s277, %s279
      %p283 = scmp.eq.s32.totalorder %s28, 0
      %p284 = por %p282, %p283
      %p285 = scmp.ne.s32.totalorder %s277, %s279
      %p286 = scmp.eq.s32.totalorder %s33, 1
      %p287 = por %p285, %p286
      %p288 = scmp.ne.s32.totalorder %s279, %s280
      %p289 = scmp.eq.s32.totalorder %s33, 0
      %p290 = por %p288, %p289
      %p291 = scmp.ne.s32.totalorder %s279, %s280
      %p292 = scmp.eq.s32.totalorder %s34, 1
      %p293 = por %p291, %p292
      %p295 = scmp.ne.s32.totalorder %s280, %s294
      %p296 = scmp.eq.s32.totalorder %s34, 0
      %p297 = por %p295, %p296
      %s298 = ssub.s32 %s28, %s35
      %p299 = scmp.eq.s32.totalorder %s298, 0
      %s301 = sadd.s32 %s300, 1
      %s302 = scalar_select %p299, %s300, %s301
      %p305 = pneg %p299
      %p306 = scmp.eq.s32.totalorder %s28, 1
      %p307 = por %p305, %p306
      %p308 = scmp.ne.s32.totalorder %s300, %s303
      %p309 = scmp.eq.s32.totalorder %s28, 0
      %p310 = por %p308, %p309
      %p311 = scmp.ne.s32.totalorder %s300, %s303
      %p312 = scmp.eq.s32.totalorder %s33, 1
      %p313 = por %p311, %p312
      %p314 = scmp.ne.s32.totalorder %s303, %s304
      %p315 = scmp.eq.s32.totalorder %s33, 0
      %p316 = por %p314, %p315
      %p317 = scmp.ne.s32.totalorder %s303, %s304
      %p318 = scmp.eq.s32.totalorder %s34, 1
      %p319 = por %p317, %p318
      %p321 = scmp.ne.s32.totalorder %s304, %s320
      %p322 = scmp.eq.s32.totalorder %s34, 0
      %p323 = por %p321, %p322
      %p324 = scmp.le.s32.totalorder 1, %s28
      %p325 = scmp.lt.s32.totalorder %s28, 3
      %p326 = pnand %p324, %p325
      %p327 = pneg %p326
      // Predicated region
      $region9: #{decoder_layer.3} parent=5 // pred_check
        _
      $region10: #{decoder_layer.3} parent=5 // pred_check_branch
        %329 = sbr.rel (%p326) target = $region12
      $region11: #{decoder_layer.3} parent=5 // pred_region
        %s330 = ssub.s32 %s28, 1
        // Predicated region
        $region13: #{decoder_layer.3} parent=11 // pred_check
          %p331 = pneg %p101
        $region14: #{decoder_layer.3} parent=11 // pred_check_branch
          %333 = sbr.rel (%p331) target = $region16
        $region15: #{decoder_layer.3} parent=11 // pred_region
          %s335 = ssub.s32 16, 16
          %336 = vsyncadd [#allocation6], %s335
          %s338 = sshll.u32 [#allocation7], 4
          %s339 = int_to_ptr.vmem [resolvable:$true] %s338
          %341 = dma.hbm_to_vmem [thread:$0]  %s2, 16, %s339, [#allocation6]
        $region16: #{decoder_layer.3} parent=11 // pred_fallthru
          _
        // Predicated region
        $region17: #{decoder_layer.3} parent=11 // pred_check
          %p342 = pneg %p122
        $region18: #{decoder_layer.3} parent=11 // pred_check_branch
          %344 = sbr.rel (%p342) target = $region20
        $region19: #{decoder_layer.3} parent=11 // pred_region
          %s346 = ssub.s32 16, 16
          %347 = vsyncadd [#allocation9], %s346
          %s349 = sshll.u32 [#allocation8], 4
          %s350 = int_to_ptr.vmem [resolvable:$true] %s349
          %352 = dma.hbm_to_vmem [thread:$0]  %s3, 16, %s350, [#allocation9]
        $region20: #{decoder_layer.3} parent=11 // pred_fallthru
          _
        // Predicated region
        $region21: #{decoder_layer.3} parent=11 // pred_check
          %p353 = pneg %p143
        $region22: #{decoder_layer.3} parent=11 // pred_check_branch
          %355 = sbr.rel (%p353) target = $region24
        $region23: #{decoder_layer.3} parent=11 // pred_region
          _
        $region24: #{decoder_layer.3} parent=11 // pred_fallthru
          _
        // Predicated region
        $region25: #{decoder_layer.3} parent=11 // pred_check
          %p356 = pneg %p164
        $region26: #{decoder_layer.3} parent=11 // pred_check_branch
          %358 = sbr.rel (%p356) target = $region28
        $region27: #{decoder_layer.3} parent=11 // pred_region
          %s360 = ssub.s32 16, 16
          %361 = vsyncadd [#allocation9], %s360
          %s363 = sshll.u32 [#allocation10], 4
          %s364 = int_to_ptr.vmem [resolvable:$true] %s363
          %366 = dma.hbm_to_vmem [thread:$0]  %s5, 16, %s364, [#allocation9]
        $region28: #{decoder_layer.3} parent=11 // pred_fallthru
          _
        // Predicated region
        $region29: #{decoder_layer.3} parent=11 // pred_check
          %p367 = pneg %p185
        $region30: #{decoder_layer.3} parent=11 // pred_check_branch
          %369 = sbr.rel (%p367) target = $region32
        $region31: #{decoder_layer.3} parent=11 // pred_region
          _
        $region32: #{decoder_layer.3} parent=11 // pred_fallthru
          _
        // Predicated region
        $region33: #{decoder_layer.3} parent=11 // pred_check
          %p370 = pneg %p206
        $region34: #{decoder_layer.3} parent=11 // pred_check_branch
          %372 = sbr.rel (%p370) target = $region36
        $region35: #{decoder_layer.3} parent=11 // pred_region
          %s374 = ssub.s32 16, 16
          %375 = vsyncadd [#allocation12], %s374
          %s377 = sshll.u32 [#allocation11], 4
          %s378 = int_to_ptr.vmem [resolvable:$true] %s377
          %380 = dma.hbm_to_vmem [thread:$0]  %s7, 16, %s378, [#allocation12]
        $region36: #{decoder_layer.3} parent=11 // pred_fallthru
          _
        // Predicated region
        $region37: #{decoder_layer.3} parent=11 // pred_check
          %p381 = pneg %p227
        $region38: #{decoder_layer.3} parent=11 // pred_check_branch
          %383 = sbr.rel (%p381) target = $region40
        $region39: #{decoder_layer.3} parent=11 // pred_region
          %s385 = ssub.s32 512, 512
          %386 = vsyncadd [#allocation12], %s385
          %s387 = sshll.u32 [#allocation13], 4
          %s388 = int_to_ptr.vmem [resolvable:$true] %s387
          %393 = dma.hbm_to_vmem [thread:$0]  %s8, 512, %s388, [#allocation12], 128, 128, 8
        $region40: #{decoder_layer.3} parent=11 // pred_fallthru
          _
        // Predicated region
        $region41: #{decoder_layer.3} parent=11 // pred_check
          %p394 = pneg %p248
        $region42: #{decoder_layer.3} parent=11 // pred_check_branch
          %396 = sbr.rel (%p394) target = $region44
        $region43: #{decoder_layer.3} parent=11 // pred_region
          %s398 = ssub.s32 16, 16
          %399 = vsyncadd [#allocation15], %s398
          %s401 = sshll.u32 [#allocation14], 4
          %s402 = int_to_ptr.vmem [resolvable:$true] %s401
          %404 = dma.hbm_to_vmem [thread:$0]  %s9, 16, %s402, [#allocation15]
        $region44: #{decoder_layer.3} parent=11 // pred_fallthru
          _
        // Predicated region
        $region45: #{decoder_layer.3} parent=11 // pred_check
          %p405 = pneg %p269
        $region46: #{decoder_layer.3} parent=11 // pred_check_branch
          %407 = sbr.rel (%p405) target = $region48
        $region47: #{decoder_layer.3} parent=11 // pred_region
          %s409 = ssub.s32 512, 512
          %410 = vsyncadd [#allocation15], %s409
          %s411 = sshll.u32 [#allocation16], 4
          %s412 = int_to_ptr.vmem [resolvable:$true] %s411
          %417 = dma.hbm_to_vmem [thread:$0]  %s10, 512, %s412, [#allocation15], 128, 128, 8
        $region48: #{decoder_layer.3} parent=11 // pred_fallthru
          _
        // Predicated region
        $region49: #{decoder_layer.3} parent=11 // pred_check
          %p418 = pneg %p290
        $region50: #{decoder_layer.3} parent=11 // pred_check_branch
          %420 = sbr.rel (%p418) target = $region52
        $region51: #{decoder_layer.3} parent=11 // pred_region
          %s422 = ssub.s32 16, 16
          %423 = vsyncadd [#allocation18], %s422
          %s425 = sshll.u32 [#allocation17], 4
          %s426 = int_to_ptr.vmem [resolvable:$true] %s425
          %428 = dma.hbm_to_vmem [thread:$0]  %s11, 16, %s426, [#allocation18]
        $region52: #{decoder_layer.3} parent=11 // pred_fallthru
          _
      $region12: #{decoder_layer.3} parent=5 // pred_fallthru
        _
      %p429 = scmp.lt.s32.totalorder %s28, 2
      // Predicated region
      $region53: #{decoder_layer.3} parent=5 // pred_check
        %p430 = pneg %p429
      $region54: #{decoder_layer.3} parent=5 // pred_check_branch
        %432 = sbr.rel (%p430) target = $region56
      $region55: #{decoder_layer.3} parent=5 // pred_region
        // Predicated region
        $region57: #{decoder_layer.3} parent=55 // pred_check
          %p433 = pneg %p48
        $region58: #{decoder_layer.3} parent=55 // pred_check_branch
          %435 = sbr.rel (%p433) target = $region60
        $region59: #{decoder_layer.3} parent=55 // pred_region
          %s436 = sand.u32 %s38, 1
          %s437 = scalar_lea.sflag [#allocation4], %s436
          %s438 = sand.u32 %s38, 1
          %s439 = smul.addr %s438, 8
          %s440 = scalar_lea.vmem [#allocation3], %s439
          %s442 = ssub.s32 128, 128
          %443 = vsyncadd %s437, %s442
          %s444 = smul.addr %s28, 128
          %s445 = scalar_lea.hbm %s0, %s444
          %s447 = sshll.u32 %s440, 4
          %s448 = int_to_ptr.vmem [resolvable:$true] %s447
          %450 = dma.hbm_to_vmem [thread:$0]  %s445, 128, %s448, %s437
        $region60: #{decoder_layer.3} parent=55 // pred_fallthru
          _
        // Predicated region
        $region61: #{decoder_layer.3} parent=55 // pred_check
          %p451 = pneg %p74
        $region62: #{decoder_layer.3} parent=55 // pred_check_branch
          %453 = sbr.rel (%p451) target = $region64
        $region63: #{decoder_layer.3} parent=55 // pred_region
          %s454 = sand.u32 %s28, 1
          %s455 = scalar_lea.sflag [#allocation6], %s454
          %s456 = sand.u32 %s64, 1
          %s457 = smul.addr %s456, 8
          %s458 = scalar_lea.vmem [#allocation5], %s457
          %s460 = ssub.s32 128, 128
          %461 = vsyncadd %s455, %s460
          %s462 = smul.addr %s28, 128
          %s463 = scalar_lea.hbm %s1, %s462
          %s465 = sshll.u32 %s458, 4
          %s466 = int_to_ptr.vmem [resolvable:$true] %s465
          %468 = dma.hbm_to_vmem [thread:$0]  %s463, 128, %s466, %s455
        $region64: #{decoder_layer.3} parent=55 // pred_fallthru
          _
      $region56: #{decoder_layer.3} parent=5 // pred_fallthru
        _
      %p469 = scmp.le.s32.totalorder 1, %s28
      %p470 = scmp.lt.s32.totalorder %s28, 3
      %p471 = pnand %p469, %p470
      %p472 = pneg %p471
      // Predicated region
      $region65: #{decoder_layer.3} parent=5 // pred_check
        _
      $region66: #{decoder_layer.3} parent=5 // pred_check_branch
        %474 = sbr.rel (%p471) target = $region68
      $region67: #{decoder_layer.3} parent=5 // pred_region
        %s475 = ssub.s32 %s28, 1
        %s476 = sand.u32 %s41, 1
        %s477 = scalar_lea.sflag [#allocation4], %s476
        %s478 = sand.u32 %s41, 1
        %s479 = smul.addr %s478, 8
        %s480 = scalar_lea.vmem [#allocation3], %s479
        // Predicated region
        $region69: #{decoder_layer.3} parent=67 // pred_check
          %p481 = pneg %p54
        $region70: #{decoder_layer.3} parent=67 // pred_check_branch
          %483 = sbr.rel (%p481) target = $region72
        $region71: #{decoder_layer.3} parent=67 // pred_region
          %484 = dma.done %s477, 128
        $region72: #{decoder_layer.3} parent=67 // pred_fallthru
          _
        %s485 = sand.u32 %s33, 1
        %s486 = scalar_lea.sflag [#allocation6], %s485
        %s487 = sand.u32 %s67, 1
        %s488 = smul.addr %s487, 8
        %s489 = scalar_lea.vmem [#allocation5], %s488
        // Predicated region
        $region73: #{decoder_layer.3} parent=67 // pred_check
          %p490 = pneg %p80
        $region74: #{decoder_layer.3} parent=67 // pred_check_branch
          %492 = sbr.rel (%p490) target = $region76
        $region75: #{decoder_layer.3} parent=67 // pred_region
          %493 = dma.done %s486, 128
        $region76: #{decoder_layer.3} parent=67 // pred_fallthru
          _
        // Predicated region
        $region77: #{decoder_layer.3} parent=67 // pred_check
          %p494 = pneg %p101
        $region78: #{decoder_layer.3} parent=67 // pred_check_branch
          %496 = sbr.rel (%p494) target = $region80
        $region79: #{decoder_layer.3} parent=67 // pred_region
          %497 = dma.done [#allocation6], 16
        $region80: #{decoder_layer.3} parent=67 // pred_fallthru
          _
        // Predicated region
        $region81: #{decoder_layer.3} parent=67 // pred_check
          %p498 = pneg %p122
        $region82: #{decoder_layer.3} parent=67 // pred_check_branch
          %500 = sbr.rel (%p498) target = $region84
        $region83: #{decoder_layer.3} parent=67 // pred_region
          %501 = dma.done [#allocation9], 16
        $region84: #{decoder_layer.3} parent=67 // pred_fallthru
          _
        // Predicated region
        $region85: #{decoder_layer.3} parent=67 // pred_check
          %p502 = pneg %p164
        $region86: #{decoder_layer.3} parent=67 // pred_check_branch
          %504 = sbr.rel (%p502) target = $region88
        $region87: #{decoder_layer.3} parent=67 // pred_region
          %505 = dma.done [#allocation9], 16
        $region88: #{decoder_layer.3} parent=67 // pred_fallthru
          _
        // Predicated region
        $region89: #{decoder_layer.3} parent=67 // pred_check
          %p506 = pneg %p206
        $region90: #{decoder_layer.3} parent=67 // pred_check_branch
          %508 = sbr.rel (%p506) target = $region92
        $region91: #{decoder_layer.3} parent=67 // pred_region
          %509 = dma.done [#allocation12], 16
        $region92: #{decoder_layer.3} parent=67 // pred_fallthru
          _
        // Predicated region
        $region93: #{decoder_layer.3} parent=67 // pred_check
          %p510 = pneg %p227
        $region94: #{decoder_layer.3} parent=67 // pred_check_branch
          %512 = sbr.rel (%p510) target = $region96
        $region95: #{decoder_layer.3} parent=67 // pred_region
          %513 = dma.done [#allocation12], 512
        $region96: #{decoder_layer.3} parent=67 // pred_fallthru
          _
        // Predicated region
        $region97: #{decoder_layer.3} parent=67 // pred_check
          %p514 = pneg %p248
        $region98: #{decoder_layer.3} parent=67 // pred_check_branch
          %516 = sbr.rel (%p514) target = $region100
        $region99: #{decoder_layer.3} parent=67 // pred_region
          %517 = dma.done [#allocation15], 16
        $region100: #{decoder_layer.3} parent=67 // pred_fallthru
          _
        // Predicated region
        $region101: #{decoder_layer.3} parent=67 // pred_check
          %p518 = pneg %p269
        $region102: #{decoder_layer.3} parent=67 // pred_check_branch
          %520 = sbr.rel (%p518) target = $region104
        $region103: #{decoder_layer.3} parent=67 // pred_region
          %521 = dma.done [#allocation15], 512
        $region104: #{decoder_layer.3} parent=67 // pred_fallthru
          _
        // Predicated region
        $region105: #{decoder_layer.3} parent=67 // pred_check
          %p522 = pneg %p290
        $region106: #{decoder_layer.3} parent=67 // pred_check_branch
          %524 = sbr.rel (%p522) target = $region108
        $region107: #{decoder_layer.3} parent=67 // pred_region
          %525 = dma.done [#allocation18], 16
        $region108: #{decoder_layer.3} parent=67 // pred_fallthru
          _
        %s526 = sand.u32 %s41, 1
        %s527 = scalar_lea.sflag [#allocation4], %s526
        %s528 = sand.u32 %s41, 1
        %s529 = smul.addr %s528, 8
        %s530 = scalar_lea.vmem [#allocation3], %s529
        %p531 = pneg %p54
        %p532 = pneg %p51
        %s533 = sand.u32 %s33, 1
        %s534 = scalar_lea.sflag [#allocation6], %s533
        %s535 = sand.u32 %s67, 1
        %s536 = smul.addr %s535, 8
        %s537 = scalar_lea.vmem [#allocation5], %s536
        %p538 = pneg %p80
        %p539 = pneg %p77
        %p540 = pneg %p101
        %p541 = pneg %p98
        %p542 = pneg %p122
        %p543 = pneg %p119
        %p544 = pneg %p143
        %p545 = pneg %p140
        %p546 = pneg %p164
        %p547 = pneg %p161
        %p548 = pneg %p185
        %p549 = pneg %p182
        %p550 = pneg %p206
        %p551 = pneg %p203
        %p552 = pneg %p227
        %p553 = pneg %p224
        %p554 = pneg %p248
        %p555 = pneg %p245
        %p556 = pneg %p269
        %p557 = pneg %p266
        %p558 = pneg %p290
        %p559 = pneg %p287
        %p560 = pneg %p316
        %p561 = pneg %p313
        %p562 = scmp.lt.s32.totalorder %s33, 1
        %s563 = scalar_select %p562, %s33, 1
        %s564 = smul.addr %s563, 8
        %s565 = scalar_lea.vmem %s12, %s564
        %p566 = scmp.lt.s32.totalorder %s33, 1
        %s567 = scalar_select %p566, %s33, 1
        %s568 = smul.addr %s567, 8
        %s569 = scalar_lea.vmem %s12, %s568
        %v570 = vld [vmem:[%s480] sm:$0xff]
        %v571 = vld [vmem:[%s489] sm:$0xff]
        %v572 = vld [vmem:[#allocation7] sm:$0x1]
        %v573 = vld [vmem:[#allocation8] sm:$0x1]
        %vm574 = vcmask 261120
        %v575 = vsel %vm574, %v570, 0.0
        %576 = vadd.xlane.f32.xlu0 %v575
        %v577 = vpop.xlane.xlu0 %576
        %v578 = vrcp.pop 32.0
        %v579 = vmul.f32 %v577, %v578
        %v580 = vsub.f32 %v570, %v579
        %v581 = vmul.f32 %v580, %v580
        %v582 = vsel %vm574, %v581, 0.0
        %583 = vadd.xlane.f32.xlu0 %v582
        %v584 = vpop.xlane.xlu0 %583
        %v585 = vrcp.pop 31.0
        %v586 = vmul.f32 %v584, %v585
        %v587 = vrsqrt.pop %v586
        %v588 = vmul.f32 %v586, %v587
        %vm589 = vcmp.eq.f32.partialorder %v586, inf
        %v590 = vsel %vm589, %v586, %v588
        %vm591 = vcmp.eq.f32.partialorder %v586, 0.0
        %v592 = vand.u32 %v586, 2147483648
        %v593 = vsel %vm591, %v592, %v590
        %v595 = vlaneseq
        %v596 = vshrl.u32 %v595, 7
        %v597 = vsub.s32 0, %v596
        %v598 = vrot.slane %v572, %v597
        %v600 = vmul.f32 %v598, %v580
        %v601 = vadd.f32 %v593, 1e-06
        %v602 = vrcp.pop %v601
        %v603 = vmul.f32 %v600, %v602
        %v605 = vlaneseq
        %v606 = vshrl.u32 %v605, 7
        %v607 = vsub.s32 0, %v606
        %v608 = vrot.slane %v573, %v607
        %v610 = vadd.f32 %v603, %v608
        %v611 = vld [vmem:[%s4] sm:$0xff]
        %v612 = vld [vmem:[%s4 + $0x8] sm:$0xff]
        %v613 = vld [vmem:[%s4 + $0x10] sm:$0xff]
        %v614 = vld [vmem:[%s4 + $0x18] sm:$0xff]
        %v615 = vld [vmem:[#allocation10] sm:$0x1]
        %v616 = vld [vmem:[%s6] sm:$0xff]
        %v617 = vld [vmem:[%s6 + $0x8] sm:$0xff]
        %v618 = vld [vmem:[%s6 + $0x10] sm:$0xff]
        %v619 = vld [vmem:[%s6 + $0x18] sm:$0xff]
        %v620 = vld [vmem:[#allocation11] sm:$0x1]
        %v621 = vld [vmem:[#allocation13] sm:$0xff]
        %v622 = vld [vmem:[#allocation13 + $0x8] sm:$0xff]
        %v623 = vld [vmem:[#allocation13 + $0x10] sm:$0xff]
        %v624 = vld [vmem:[#allocation13 + $0x18] sm:$0xff]
        %v625 = vld [vmem:[#allocation14] sm:$0x1]
        %v627 = vlaneseq
        %v628 = vshrl.u32 %v627, 7
        %v629 = vsub.s32 0, %v628
        %v630 = vrot.slane %v615, %v629
        %v633 = vsel %vm574, %v610, 0
        %635 = vmatprep.subr.mxu0 0.0
        %636 = vmatpush1.msra.mxu0 %v611
        %637 = vmatprep.subr.mxu0 0.0
        %638 = vmatpush1.msra.mxu0 %v612
        %639 = vmatprep.subr.mxu0 0.0
        %640 = vmatpush1.msra.mxu0 %v613
        %641 = vmatprep.subr.mxu0 0.0
        %642 = vmatpush1.msra.mxu0 %v614
        %643 = vmatprep.subr.mxu0 0.0
        %644 = vmatpush1.msra.mxu0 0.0
        %645 = vmatprep.subr.mxu0 0.0
        %646 = vmatpush1.msra.mxu0 0.0
        %647 = vmatprep.subr.mxu0 0.0
        %648 = vmatpush1.msra.mxu0 0.0
        %649 = vmatprep.subr.mxu0 0.0
        %650 = vmatpush1.msra.mxu0 0.0
        %651 = vmatprep.subr.mxu0 0.0
        %652 = vmatpush1.msra.mxu0 0.0
        %653 = vmatprep.subr.mxu0 0.0
        %654 = vmatpush1.msra.mxu0 0.0
        %655 = vmatprep.subr.mxu0 0.0
        %656 = vmatpush1.msra.mxu0 0.0
        %657 = vmatprep.subr.mxu0 0.0
        %658 = vmatpush1.msra.mxu0 0.0
        %659 = vmatprep.subr.mxu0 0.0
        %660 = vmatpush1.msra.mxu0 0.0
        %661 = vmatprep.subr.mxu0 0.0
        %662 = vmatpush1.msra.mxu0 0.0
        %663 = vmatprep.subr.mxu0 0.0
        %664 = vmatpush1.msra.mxu0 0.0
        %665 = vmatprep.subr.mxu0 0.0
        %666 = vmatpush1.msra.mxu0 0.0
        %667 = vmatprep.subr.mxu0 0.0
        %668 = vmatpush1.msra.mxu0 0.0
        %669 = vmatprep.subr.mxu0 0.0
        %670 = vmatpush1.msra.mxu0 0.0
        %671 = vmatprep.subr.mxu0 0.0
        %672 = vmatpush1.msra.mxu0 0.0
        %673 = vmatprep.subr.mxu0 0.0
        %674 = vmatpush1.msra.mxu0 0.0
        %675 = vmatprep.subr.mxu0 0.0
        %676 = vmatpush1.msra.mxu0 0.0
        %677 = vmatprep.subr.mxu0 0.0
        %678 = vmatpush1.msra.mxu0 0.0
        %679 = vmatprep.subr.mxu0 0.0
        %680 = vmatpush1.msra.mxu0 0.0
        %681 = vmatprep.subr.mxu0 0.0
        %682 = vmatpush1.msra.mxu0 0.0
        %683 = vmatprep.subr.mxu0 0.0
        %684 = vmatpush1.msra.mxu0 0.0
        %685 = vmatprep.subr.mxu0 0.0
        %686 = vmatpush1.msra.mxu0 0.0
        %687 = vmatprep.subr.mxu0 0.0
        %688 = vmatpush1.msra.mxu0 0.0
        %689 = vmatprep.subr.mxu0 0.0
        %690 = vmatpush1.msra.mxu0 0.0
        %691 = vmatprep.subr.mxu0 0.0
        %692 = vmatpush1.msra.mxu0 0.0
        %693 = vmatprep.subr.mxu0 0.0
        %694 = vmatpush1.msra.mxu0 0.0
        %695 = vmatprep.subr.mxu0 0.0
        %696 = vmatpush1.msra.mxu0 0.0
        %697 = vmatprep.subr.mxu0 0.0
        %698 = vmatpush1.msra.mxu0 0.0
        %699 = vmatprep.mubr.f32.mxu0 0.0
        %700 = vmatmul.mubr.f32.gmra.mrb[0].mxu0 %v633
        %v701 = vpop.f32.mrb[0].mxu0
        %v702 = vadd.f32 %v630, %v701
        %v703 = vpop.f32.mrb[0].mxu0
        %704 = vdwg.mxu0
        %v706 = vlaneseq
        %v707 = vshrl.u32 %v706, 7
        %v708 = vsub.s32 0, %v707
        %v709 = vrot.slane %v620, %v708
        %711 = vmatprep.subr.mxu0 0.0
        %712 = vmatpush1.msra.mxu0 %v616
        %713 = vmatprep.subr.mxu0 0.0
        %714 = vmatpush1.msra.mxu0 %v617
        %715 = vmatprep.subr.mxu0 0.0
        %716 = vmatpush1.msra.mxu0 %v618
        %717 = vmatprep.subr.mxu0 0.0
        %718 = vmatpush1.msra.mxu0 %v619
        %719 = vmatprep.subr.mxu0 0.0
        %720 = vmatpush1.msra.mxu0 0.0
        %721 = vmatprep.subr.mxu0 0.0
        %722 = vmatpush1.msra.mxu0 0.0
        %723 = vmatprep.subr.mxu0 0.0
        %724 = vmatpush1.msra.mxu0 0.0
        %725 = vmatprep.subr.mxu0 0.0
        %726 = vmatpush1.msra.mxu0 0.0
        %727 = vmatprep.subr.mxu0 0.0
        %728 = vmatpush1.msra.mxu0 0.0
        %729 = vmatprep.subr.mxu0 0.0
        %730 = vmatpush1.msra.mxu0 0.0
        %731 = vmatprep.subr.mxu0 0.0
        %732 = vmatpush1.msra.mxu0 0.0
        %733 = vmatprep.subr.mxu0 0.0
        %734 = vmatpush1.msra.mxu0 0.0
        %735 = vmatprep.subr.mxu0 0.0
        %736 = vmatpush1.msra.mxu0 0.0
        %737 = vmatprep.subr.mxu0 0.0
        %738 = vmatpush1.msra.mxu0 0.0
        %739 = vmatprep.subr.mxu0 0.0
        %740 = vmatpush1.msra.mxu0 0.0
        %741 = vmatprep.subr.mxu0 0.0
        %742 = vmatpush1.msra.mxu0 0.0
        %743 = vmatprep.subr.mxu0 0.0
        %744 = vmatpush1.msra.mxu0 0.0
        %745 = vmatprep.subr.mxu0 0.0
        %746 = vmatpush1.msra.mxu0 0.0
        %747 = vmatprep.subr.mxu0 0.0
        %748 = vmatpush1.msra.mxu0 0.0
        %749 = vmatprep.subr.mxu0 0.0
        %750 = vmatpush1.msra.mxu0 0.0
        %751 = vmatprep.subr.mxu0 0.0
        %752 = vmatpush1.msra.mxu0 0.0
        %753 = vmatprep.subr.mxu0 0.0
        %754 = vmatpush1.msra.mxu0 0.0
        %755 = vmatprep.subr.mxu0 0.0
        %756 = vmatpush1.msra.mxu0 0.0
        %757 = vmatprep.subr.mxu0 0.0
        %758 = vmatpush1.msra.mxu0 0.0
        %759 = vmatprep.subr.mxu0 0.0
        %760 = vmatpush1.msra.mxu0 0.0
        %761 = vmatprep.subr.mxu0 0.0
        %762 = vmatpush1.msra.mxu0 0.0
        %763 = vmatprep.subr.mxu0 0.0
        %764 = vmatpush1.msra.mxu0 0.0
        %765 = vmatprep.subr.mxu0 0.0
        %766 = vmatpush1.msra.mxu0 0.0
        %767 = vmatprep.subr.mxu0 0.0
        %768 = vmatpush1.msra.mxu0 0.0
        %769 = vmatprep.subr.mxu0 0.0
        %770 = vmatpush1.msra.mxu0 0.0
        %771 = vmatprep.subr.mxu0 0.0
        %772 = vmatpush1.msra.mxu0 0.0
        %773 = vmatprep.subr.mxu0 0.0
        %774 = vmatpush1.msra.mxu0 0.0
        %775 = vmatprep.mubr.f32.mxu0 0.0
        %776 = vmatmul.mubr.f32.gmra.mrb[0].mxu0 %v633
        %v777 = vpop.f32.mrb[0].mxu0
        %v778 = vadd.f32 %v709, %v777
        %v779 = vpop.f32.mrb[0].mxu0
        %780 = vdwg.mxu0
        %v782 = vlaneseq
        %v783 = vshrl.u32 %v782, 7
        %v784 = vsub.s32 0, %v783
        %v785 = vrot.slane %v625, %v784
        %787 = vmatprep.subr.mxu0 0.0
        %788 = vmatpush1.msra.mxu0 %v621
        %789 = vmatprep.subr.mxu0 0.0
        %790 = vmatpush1.msra.mxu0 %v622
        %791 = vmatprep.subr.mxu0 0.0
        %792 = vmatpush1.msra.mxu0 %v623
        %793 = vmatprep.subr.mxu0 0.0
        %794 = vmatpush1.msra.mxu0 %v624
        %795 = vmatprep.subr.mxu0 0.0
        %796 = vmatpush1.msra.mxu0 0.0
        %797 = vmatprep.subr.mxu0 0.0
        %798 = vmatpush1.msra.mxu0 0.0
        %799 = vmatprep.subr.mxu0 0.0
        %800 = vmatpush1.msra.mxu0 0.0
        %801 = vmatprep.subr.mxu0 0.0
        %802 = vmatpush1.msra.mxu0 0.0
        %803 = vmatprep.subr.mxu0 0.0
        %804 = vmatpush1.msra.mxu0 0.0
        %805 = vmatprep.subr.mxu0 0.0
        %806 = vmatpush1.msra.mxu0 0.0
        %807 = vmatprep.subr.mxu0 0.0
        %808 = vmatpush1.msra.mxu0 0.0
        %809 = vmatprep.subr.mxu0 0.0
        %810 = vmatpush1.msra.mxu0 0.0
        %811 = vmatprep.subr.mxu0 0.0
        %812 = vmatpush1.msra.mxu0 0.0
        %813 = vmatprep.subr.mxu0 0.0
        %814 = vmatpush1.msra.mxu0 0.0
        %815 = vmatprep.subr.mxu0 0.0
        %816 = vmatpush1.msra.mxu0 0.0
        %817 = vmatprep.subr.mxu0 0.0
        %818 = vmatpush1.msra.mxu0 0.0
        %819 = vmatprep.subr.mxu0 0.0
        %820 = vmatpush1.msra.mxu0 0.0
        %821 = vmatprep.subr.mxu0 0.0
        %822 = vmatpush1.msra.mxu0 0.0
        %823 = vmatprep.subr.mxu0 0.0
        %824 = vmatpush1.msra.mxu0 0.0
        %825 = vmatprep.subr.mxu0 0.0
        %826 = vmatpush1.msra.mxu0 0.0
        %827 = vmatprep.subr.mxu0 0.0
        %828 = vmatpush1.msra.mxu0 0.0
        %829 = vmatprep.subr.mxu0 0.0
        %830 = vmatpush1.msra.mxu0 0.0
        %831 = vmatprep.subr.mxu0 0.0
        %832 = vmatpush1.msra.mxu0 0.0
        %833 = vmatprep.subr.mxu0 0.0
        %834 = vmatpush1.msra.mxu0 0.0
        %835 = vmatprep.subr.mxu0 0.0
        %836 = vmatpush1.msra.mxu0 0.0
        %837 = vmatprep.subr.mxu0 0.0
        %838 = vmatpush1.msra.mxu0 0.0
        %839 = vmatprep.subr.mxu0 0.0
        %840 = vmatpush1.msra.mxu0 0.0
        %841 = vmatprep.subr.mxu0 0.0
        %842 = vmatpush1.msra.mxu0 0.0
        %843 = vmatprep.subr.mxu0 0.0
        %844 = vmatpush1.msra.mxu0 0.0
        %845 = vmatprep.subr.mxu0 0.0
        %846 = vmatpush1.msra.mxu0 0.0
        %847 = vmatprep.subr.mxu0 0.0
        %848 = vmatpush1.msra.mxu0 0.0
        %849 = vmatprep.subr.mxu0 0.0
        %850 = vmatpush1.msra.mxu0 0.0
        %851 = vmatprep.mubr.f32.mxu0 0.0
        %852 = vmatmul.mubr.f32.gmra.mrb[0].mxu0 %v633
        %v853 = vpop.f32.mrb[0].mxu0
        %v854 = vadd.f32 %v785, %v853
        %v855 = vpop.f32.mrb[0].mxu0
        %856 = vdwg.mxu0
        %vm857 = vcmask 64512
        %v859 = vsel %vm857, %v702, 0
        %v862 = vsel %vm857, %v778, 0
        %864 = vmatprep.subr.mxu0 0.0
        %865 = vmatpush1.xpose.msra.mxu0 %v862
        %866 = vmatprep.subr.mxu0 0.0
        %867 = vmatpush1.xpose.msra.mxu0 0.0
        %868 = vmatprep.subr.mxu0 0.0
        %869 = vmatpush1.xpose.msra.mxu0 0.0
        %870 = vmatprep.subr.mxu0 0.0
        %871 = vmatpush1.xpose.msra.mxu0 0.0
        %872 = vmatprep.subr.mxu0 0.0
        %873 = vmatpush1.xpose.msra.mxu0 0.0
        %874 = vmatprep.subr.mxu0 0.0
        %875 = vmatpush1.xpose.msra.mxu0 0.0
        %876 = vmatprep.subr.mxu0 0.0
        %877 = vmatpush1.xpose.msra.mxu0 0.0
        %878 = vmatprep.subr.mxu0 0.0
        %879 = vmatpush1.xpose.msra.mxu0 0.0
        %880 = vmatprep.subr.mxu0 0.0
        %881 = vmatpush1.xpose.msra.mxu0 0.0
        %882 = vmatprep.subr.mxu0 0.0
        %883 = vmatpush1.xpose.msra.mxu0 0.0
        %884 = vmatprep.subr.mxu0 0.0
        %885 = vmatpush1.xpose.msra.mxu0 0.0
        %886 = vmatprep.subr.mxu0 0.0
        %887 = vmatpush1.xpose.msra.mxu0 0.0
        %888 = vmatprep.subr.mxu0 0.0
        %889 = vmatpush1.xpose.msra.mxu0 0.0
        %890 = vmatprep.subr.mxu0 0.0
        %891 = vmatpush1.xpose.msra.mxu0 0.0
        %892 = vmatprep.subr.mxu0 0.0
        %893 = vmatpush1.xpose.msra.mxu0 0.0
        %894 = vmatprep.subr.mxu0 0.0
        %895 = vmatpush1.xpose.msra.mxu0 0.0
        %896 = vmatprep.subr.mxu0 0.0
        %897 = vmatpush1.xpose.msra.mxu0 0.0
        %898 = vmatprep.subr.mxu0 0.0
        %899 = vmatpush1.xpose.msra.mxu0 0.0
        %900 = vmatprep.subr.mxu0 0.0
        %901 = vmatpush1.xpose.msra.mxu0 0.0
        %902 = vmatprep.subr.mxu0 0.0
        %903 = vmatpush1.xpose.msra.mxu0 0.0
        %904 = vmatprep.subr.mxu0 0.0
        %905 = vmatpush1.xpose.msra.mxu0 0.0
        %906 = vmatprep.subr.mxu0 0.0
        %907 = vmatpush1.xpose.msra.mxu0 0.0
        %908 = vmatprep.subr.mxu0 0.0
        %909 = vmatpush1.xpose.msra.mxu0 0.0
        %910 = vmatprep.subr.mxu0 0.0
        %911 = vmatpush1.xpose.msra.mxu0 0.0
        %912 = vmatprep.subr.mxu0 0.0
        %913 = vmatpush1.xpose.msra.mxu0 0.0
        %914 = vmatprep.subr.mxu0 0.0
        %915 = vmatpush1.xpose.msra.mxu0 0.0
        %916 = vmatprep.subr.mxu0 0.0
        %917 = vmatpush1.xpose.msra.mxu0 0.0
        %918 = vmatprep.subr.mxu0 0.0
        %919 = vmatpush1.xpose.msra.mxu0 0.0
        %920 = vmatprep.subr.mxu0 0.0
        %921 = vmatpush1.xpose.msra.mxu0 0.0
        %922 = vmatprep.subr.mxu0 0.0
        %923 = vmatpush1.xpose.msra.mxu0 0.0
        %924 = vmatprep.subr.mxu0 0.0
        %925 = vmatpush1.xpose.msra.mxu0 0.0
        %926 = vmatprep.subr.mxu0 0.0
        %927 = vmatpush1.xpose.msra.mxu0 0.0
        %928 = vmatprep.mubr.f32.mxu0 0.0
        %929 = vmatmul.mubr.f32.gmra.mrb[0].mxu0 %v859
        %v930 = vpop.f32.mrb[0].mxu0
        %v931 = vadd.f32 0.0, %v930
        %v932 = vpop.f32.mrb[0].mxu0
        %933 = vdwg.mxu0
        %v934 = vmul.f32 %v931, 0.35355338
        %vm935 = vcmp.gt.f32.partialorder %v571, 0.0
        %v936 = vsel %vm935, %v934, -1e+09
        %v937 = vsel %vm857, %v936, -inf
        %938 = vmax.xlane.f32.xlu0 %v937
        %v939 = vpop.xlane.xlu0 %938
        %v940 = vsub.f32 %v936, %v939
        %v941 = vmul.f32 %v940, 1.442695
        %v942 = vpow.pop %v941
        %v943 = vsel %vm857, %v942, 0.0
        %944 = vadd.xlane.f32.xlu0 %v943
        %v945 = vpop.xlane.xlu0 %944
        %v946 = vrcp.pop %v945
        %v947 = vmul.f32 %v942, %v946
        %v949 = vsel %vm857, %v947, 0
        %951 = vmatprep.subr.mxu0 0.0
        %952 = vmatpush1.msra.mxu0 %v854
        %953 = vmatprep.subr.mxu0 0.0
        %954 = vmatpush1.msra.mxu0 0.0
        %955 = vmatprep.subr.mxu0 0.0
        %956 = vmatpush1.msra.mxu0 0.0
        %957 = vmatprep.subr.mxu0 0.0
        %958 = vmatpush1.msra.mxu0 0.0
        %959 = vmatprep.subr.mxu0 0.0
        %960 = vmatpush1.msra.mxu0 0.0
        %961 = vmatprep.subr.mxu0 0.0
        %962 = vmatpush1.msra.mxu0 0.0
        %963 = vmatprep.subr.mxu0 0.0
        %964 = vmatpush1.msra.mxu0 0.0
        %965 = vmatprep.subr.mxu0 0.0
        %966 = vmatpush1.msra.mxu0 0.0
        %967 = vmatprep.subr.mxu0 0.0
        %968 = vmatpush1.msra.mxu0 0.0
        %969 = vmatprep.subr.mxu0 0.0
        %970 = vmatpush1.msra.mxu0 0.0
        %971 = vmatprep.subr.mxu0 0.0
        %972 = vmatpush1.msra.mxu0 0.0
        %973 = vmatprep.subr.mxu0 0.0
        %974 = vmatpush1.msra.mxu0 0.0
        %975 = vmatprep.subr.mxu0 0.0
        %976 = vmatpush1.msra.mxu0 0.0
        %977 = vmatprep.subr.mxu0 0.0
        %978 = vmatpush1.msra.mxu0 0.0
        %979 = vmatprep.subr.mxu0 0.0
        %980 = vmatpush1.msra.mxu0 0.0
        %981 = vmatprep.subr.mxu0 0.0
        %982 = vmatpush1.msra.mxu0 0.0
        %983 = vmatprep.subr.mxu0 0.0
        %984 = vmatpush1.msra.mxu0 0.0
        %985 = vmatprep.subr.mxu0 0.0
        %986 = vmatpush1.msra.mxu0 0.0
        %987 = vmatprep.subr.mxu0 0.0
        %988 = vmatpush1.msra.mxu0 0.0
        %989 = vmatprep.subr.mxu0 0.0
        %990 = vmatpush1.msra.mxu0 0.0
        %991 = vmatprep.subr.mxu0 0.0
        %992 = vmatpush1.msra.mxu0 0.0
        %993 = vmatprep.subr.mxu0 0.0
        %994 = vmatpush1.msra.mxu0 0.0
        %995 = vmatprep.subr.mxu0 0.0
        %996 = vmatpush1.msra.mxu0 0.0
        %997 = vmatprep.subr.mxu0 0.0
        %998 = vmatpush1.msra.mxu0 0.0
        %999 = vmatprep.subr.mxu0 0.0
        %1000 = vmatpush1.msra.mxu0 0.0
        %1001 = vmatprep.subr.mxu0 0.0
        %1002 = vmatpush1.msra.mxu0 0.0
        %1003 = vmatprep.subr.mxu0 0.0
        %1004 = vmatpush1.msra.mxu0 0.0
        %1005 = vmatprep.subr.mxu0 0.0
        %1006 = vmatpush1.msra.mxu0 0.0
        %1007 = vmatprep.subr.mxu0 0.0
        %1008 = vmatpush1.msra.mxu0 0.0
        %1009 = vmatprep.subr.mxu0 0.0
        %1010 = vmatpush1.msra.mxu0 0.0
        %1011 = vmatprep.subr.mxu0 0.0
        %1012 = vmatpush1.msra.mxu0 0.0
        %1013 = vmatprep.subr.mxu0 0.0
        %1014 = vmatpush1.msra.mxu0 0.0
        %1015 = vmatprep.mubr.f32.mxu0 0.0
        %1016 = vmatmul.mubr.f32.gmra.mrb[0].mxu0 %v949
        %v1017 = vpop.f32.mrb[0].mxu0
        %v1018 = vadd.f32 0.0, %v1017
        %v1019 = vpop.f32.mrb[0].mxu0
        %1020 = vdwg.mxu0
        %1021 = vst.msk [vmem:[#allocation2] sm:$0xff] %vm857, %v1018
        %1022 = vrot.lane.b32.xlu0 %v702, 120
        %v1023 = vpop.permute.xlu0 %1022
        %1024 = vrot.lane.b32.xlu0 %v778, 120
        %v1025 = vpop.permute.xlu0 %1024
        %v1026 = vsel %vm857, %v1023, 0
        %v1028 = vsel %vm857, %v1025, 0
        %1030 = vmatprep.subr.mxu0 0.0
        %1031 = vmatpush1.xpose.msra.mxu0 %v1028
        %1032 = vmatprep.subr.mxu0 0.0
        %1033 = vmatpush1.xpose.msra.mxu0 0.0
        %1034 = vmatprep.subr.mxu0 0.0
        %1035 = vmatpush1.xpose.msra.mxu0 0.0
        %1036 = vmatprep.subr.mxu0 0.0
        %1037 = vmatpush1.xpose.msra.mxu0 0.0
        %1038 = vmatprep.subr.mxu0 0.0
        %1039 = vmatpush1.xpose.msra.mxu0 0.0
        %1040 = vmatprep.subr.mxu0 0.0
        %1041 = vmatpush1.xpose.msra.mxu0 0.0
        %1042 = vmatprep.subr.mxu0 0.0
        %1043 = vmatpush1.xpose.msra.mxu0 0.0
        %1044 = vmatprep.subr.mxu0 0.0
        %1045 = vmatpush1.xpose.msra.mxu0 0.0
        %1046 = vmatprep.subr.mxu0 0.0
        %1047 = vmatpush1.xpose.msra.mxu0 0.0
        %1048 = vmatprep.subr.mxu0 0.0
        %1049 = vmatpush1.xpose.msra.mxu0 0.0
        %1050 = vmatprep.subr.mxu0 0.0
        %1051 = vmatpush1.xpose.msra.mxu0 0.0
        %1052 = vmatprep.subr.mxu0 0.0
        %1053 = vmatpush1.xpose.msra.mxu0 0.0
        %1054 = vmatprep.subr.mxu0 0.0
        %1055 = vmatpush1.xpose.msra.mxu0 0.0
        %1056 = vmatprep.subr.mxu0 0.0
        %1057 = vmatpush1.xpose.msra.mxu0 0.0
        %1058 = vmatprep.subr.mxu0 0.0
        %1059 = vmatpush1.xpose.msra.mxu0 0.0
        %1060 = vmatprep.subr.mxu0 0.0
        %1061 = vmatpush1.xpose.msra.mxu0 0.0
        %1062 = vmatprep.subr.mxu0 0.0
        %1063 = vmatpush1.xpose.msra.mxu0 0.0
        %1064 = vmatprep.subr.mxu0 0.0
        %1065 = vmatpush1.xpose.msra.mxu0 0.0
        %1066 = vmatprep.subr.mxu0 0.0
        %1067 = vmatpush1.xpose.msra.mxu0 0.0
        %1068 = vmatprep.subr.mxu0 0.0
        %1069 = vmatpush1.xpose.msra.mxu0 0.0
        %1070 = vmatprep.subr.mxu0 0.0
        %1071 = vmatpush1.xpose.msra.mxu0 0.0
        %1072 = vmatprep.subr.mxu0 0.0
        %1073 = vmatpush1.xpose.msra.mxu0 0.0
        %1074 = vmatprep.subr.mxu0 0.0
        %1075 = vmatpush1.xpose.msra.mxu0 0.0
        %1076 = vmatprep.subr.mxu0 0.0
        %1077 = vmatpush1.xpose.msra.mxu0 0.0
        %1078 = vmatprep.subr.mxu0 0.0
        %1079 = vmatpush1.xpose.msra.mxu0 0.0
        %1080 = vmatprep.subr.mxu0 0.0
        %1081 = vmatpush1.xpose.msra.mxu0 0.0
        %1082 = vmatprep.subr.mxu0 0.0
        %1083 = vmatpush1.xpose.msra.mxu0 0.0
        %1084 = vmatprep.subr.mxu0 0.0
        %1085 = vmatpush1.xpose.msra.mxu0 0.0
        %1086 = vmatprep.subr.mxu0 0.0
        %1087 = vmatpush1.xpose.msra.mxu0 0.0
        %1088 = vmatprep.subr.mxu0 0.0
        %1089 = vmatpush1.xpose.msra.mxu0 0.0
        %1090 = vmatprep.subr.mxu0 0.0
        %1091 = vmatpush1.xpose.msra.mxu0 0.0
        %1092 = vmatprep.subr.mxu0 0.0
        %1093 = vmatpush1.xpose.msra.mxu0 0.0
        %1094 = vmatprep.mubr.f32.mxu0 0.0
        %1095 = vmatmul.mubr.f32.gmra.mrb[0].mxu0 %v1026
        %v1096 = vpop.f32.mrb[0].mxu0
        %v1097 = vadd.f32 0.0, %v1096
        %v1098 = vpop.f32.mrb[0].mxu0
        %1099 = vdwg.mxu0
        %v1100 = vmul.f32 %v1097, 0.35355338
        %v1101 = vsel %vm935, %v1100, -1e+09
        %v1102 = vsel %vm857, %v1101, -inf
        %1103 = vmax.xlane.f32.xlu0 %v1102
        %v1104 = vpop.xlane.xlu0 %1103
        %v1105 = vsub.f32 %v1101, %v1104
        %v1106 = vmul.f32 %v1105, 1.442695
        %v1107 = vpow.pop %v1106
        %v1108 = vsel %vm857, %v1107, 0.0
        %1109 = vadd.xlane.f32.xlu0 %v1108
        %v1110 = vpop.xlane.xlu0 %1109
        %v1111 = vrcp.pop %v1110
        %v1112 = vmul.f32 %v1107, %v1111
        %1114 = vrot.lane.b32.xlu0 %v854, 120
        %v1115 = vpop.permute.xlu0 %1114
        %v1118 = vsel %vm857, %v1112, 0
        %1120 = vmatprep.subr.mxu0 0.0
        %1121 = vmatpush1.msra.mxu0 %v1115
        %1122 = vmatprep.subr.mxu0 0.0
        %1123 = vmatpush1.msra.mxu0 0.0
        %1124 = vmatprep.subr.mxu0 0.0
        %1125 = vmatpush1.msra.mxu0 0.0
        %1126 = vmatprep.subr.mxu0 0.0
        %1127 = vmatpush1.msra.mxu0 0.0
        %1128 = vmatprep.subr.mxu0 0.0
        %1129 = vmatpush1.msra.mxu0 0.0
        %1130 = vmatprep.subr.mxu0 0.0
        %1131 = vmatpush1.msra.mxu0 0.0
        %1132 = vmatprep.subr.mxu0 0.0
        %1133 = vmatpush1.msra.mxu0 0.0
        %1134 = vmatprep.subr.mxu0 0.0
        %1135 = vmatpush1.msra.mxu0 0.0
        %1136 = vmatprep.subr.mxu0 0.0
        %1137 = vmatpush1.msra.mxu0 0.0
        %1138 = vmatprep.subr.mxu0 0.0
        %1139 = vmatpush1.msra.mxu0 0.0
        %1140 = vmatprep.subr.mxu0 0.0
        %1141 = vmatpush1.msra.mxu0 0.0
        %1142 = vmatprep.subr.mxu0 0.0
        %1143 = vmatpush1.msra.mxu0 0.0
        %1144 = vmatprep.subr.mxu0 0.0
        %1145 = vmatpush1.msra.mxu0 0.0
        %1146 = vmatprep.subr.mxu0 0.0
        %1147 = vmatpush1.msra.mxu0 0.0
        %1148 = vmatprep.subr.mxu0 0.0
        %1149 = vmatpush1.msra.mxu0 0.0
        %1150 = vmatprep.subr.mxu0 0.0
        %1151 = vmatpush1.msra.mxu0 0.0
        %1152 = vmatprep.subr.mxu0 0.0
        %1153 = vmatpush1.msra.mxu0 0.0
        %1154 = vmatprep.subr.mxu0 0.0
        %1155 = vmatpush1.msra.mxu0 0.0
        %1156 = vmatprep.subr.mxu0 0.0
        %1157 = vmatpush1.msra.mxu0 0.0
        %1158 = vmatprep.subr.mxu0 0.0
        %1159 = vmatpush1.msra.mxu0 0.0
        %1160 = vmatprep.subr.mxu0 0.0
        %1161 = vmatpush1.msra.mxu0 0.0
        %1162 = vmatprep.subr.mxu0 0.0
        %1163 = vmatpush1.msra.mxu0 0.0
        %1164 = vmatprep.subr.mxu0 0.0
        %1165 = vmatpush1.msra.mxu0 0.0
        %1166 = vmatprep.subr.mxu0 0.0
        %1167 = vmatpush1.msra.mxu0 0.0
        %1168 = vmatprep.subr.mxu0 0.0
        %1169 = vmatpush1.msra.mxu0 0.0
        %1170 = vmatprep.subr.mxu0 0.0
        %1171 = vmatpush1.msra.mxu0 0.0
        %1172 = vmatprep.subr.mxu0 0.0
        %1173 = vmatpush1.msra.mxu0 0.0
        %1174 = vmatprep.subr.mxu0 0.0
        %1175 = vmatpush1.msra.mxu0 0.0
        %1176 = vmatprep.subr.mxu0 0.0
        %1177 = vmatpush1.msra.mxu0 0.0
        %1178 = vmatprep.subr.mxu0 0.0
        %1179 = vmatpush1.msra.mxu0 0.0
        %1180 = vmatprep.subr.mxu0 0.0
        %1181 = vmatpush1.msra.mxu0 0.0
        %1182 = vmatprep.subr.mxu0 0.0
        %1183 = vmatpush1.msra.mxu0 0.0
        %1184 = vmatprep.mubr.f32.mxu0 0.0
        %1185 = vmatmul.mubr.f32.gmra.mrb[0].mxu0 %v1118
        %v1186 = vpop.f32.mrb[0].mxu0
        %v1187 = vadd.f32 0.0, %v1186
        %v1188 = vpop.f32.mrb[0].mxu0
        %1189 = vdwg.mxu0
        %1191 = vrot.lane.b32.xlu0 %v1187, 8
        %v1192 = vpop.permute.xlu0 %1191
        %vm1194 = vcmask 130112
        %1195 = vst.msk [vmem:[#allocation2] sm:$0xff] %vm1194, %v1192
        %1196 = vrot.lane.b32.xlu0 %v702, 112
        %v1197 = vpop.permute.xlu0 %1196
        %1198 = vrot.lane.b32.xlu0 %v778, 112
        %v1199 = vpop.permute.xlu0 %1198
        %v1200 = vsel %vm857, %v1197, 0
        %v1202 = vsel %vm857, %v1199, 0
        %1204 = vmatprep.subr.mxu0 0.0
        %1205 = vmatpush1.xpose.msra.mxu0 %v1202
        %1206 = vmatprep.subr.mxu0 0.0
        %1207 = vmatpush1.xpose.msra.mxu0 0.0
        %1208 = vmatprep.subr.mxu0 0.0
        %1209 = vmatpush1.xpose.msra.mxu0 0.0
        %1210 = vmatprep.subr.mxu0 0.0
        %1211 = vmatpush1.xpose.msra.mxu0 0.0
        %1212 = vmatprep.subr.mxu0 0.0
        %1213 = vmatpush1.xpose.msra.mxu0 0.0
        %1214 = vmatprep.subr.mxu0 0.0
        %1215 = vmatpush1.xpose.msra.mxu0 0.0
        %1216 = vmatprep.subr.mxu0 0.0
        %1217 = vmatpush1.xpose.msra.mxu0 0.0
        %1218 = vmatprep.subr.mxu0 0.0
        %1219 = vmatpush1.xpose.msra.mxu0 0.0
        %1220 = vmatprep.subr.mxu0 0.0
        %1221 = vmatpush1.xpose.msra.mxu0 0.0
        %1222 = vmatprep.subr.mxu0 0.0
        %1223 = vmatpush1.xpose.msra.mxu0 0.0
        %1224 = vmatprep.subr.mxu0 0.0
        %1225 = vmatpush1.xpose.msra.mxu0 0.0
        %1226 = vmatprep.subr.mxu0 0.0
        %1227 = vmatpush1.xpose.msra.mxu0 0.0
        %1228 = vmatprep.subr.mxu0 0.0
        %1229 = vmatpush1.xpose.msra.mxu0 0.0
        %1230 = vmatprep.subr.mxu0 0.0
        %1231 = vmatpush1.xpose.msra.mxu0 0.0
        %1232 = vmatprep.subr.mxu0 0.0
        %1233 = vmatpush1.xpose.msra.mxu0 0.0
        %1234 = vmatprep.subr.mxu0 0.0
        %1235 = vmatpush1.xpose.msra.mxu0 0.0
        %1236 = vmatprep.subr.mxu0 0.0
        %1237 = vmatpush1.xpose.msra.mxu0 0.0
        %1238 = vmatprep.subr.mxu0 0.0
        %1239 = vmatpush1.xpose.msra.mxu0 0.0
        %1240 = vmatprep.subr.mxu0 0.0
        %1241 = vmatpush1.xpose.msra.mxu0 0.0
        %1242 = vmatprep.subr.mxu0 0.0
        %1243 = vmatpush1.xpose.msra.mxu0 0.0
        %1244 = vmatprep.subr.mxu0 0.0
        %1245 = vmatpush1.xpose.msra.mxu0 0.0
        %1246 = vmatprep.subr.mxu0 0.0
        %1247 = vmatpush1.xpose.msra.mxu0 0.0
        %1248 = vmatprep.subr.mxu0 0.0
        %1249 = vmatpush1.xpose.msra.mxu0 0.0
        %1250 = vmatprep.subr.mxu0 0.0
        %1251 = vmatpush1.xpose.msra.mxu0 0.0
        %1252 = vmatprep.subr.mxu0 0.0
        %1253 = vmatpush1.xpose.msra.mxu0 0.0
        %1254 = vmatprep.subr.mxu0 0.0
        %1255 = vmatpush1.xpose.msra.mxu0 0.0
        %1256 = vmatprep.subr.mxu0 0.0
        %1257 = vmatpush1.xpose.msra.mxu0 0.0
        %1258 = vmatprep.subr.mxu0 0.0
        %1259 = vmatpush1.xpose.msra.mxu0 0.0
        %1260 = vmatprep.subr.mxu0 0.0
        %1261 = vmatpush1.xpose.msra.mxu0 0.0
        %1262 = vmatprep.subr.mxu0 0.0
        %1263 = vmatpush1.xpose.msra.mxu0 0.0
        %1264 = vmatprep.subr.mxu0 0.0
        %1265 = vmatpush1.xpose.msra.mxu0 0.0
        %1266 = vmatprep.subr.mxu0 0.0
        %1267 = vmatpush1.xpose.msra.mxu0 0.0
        %1268 = vmatprep.mubr.f32.mxu0 0.0
        %1269 = vmatmul.mubr.f32.gmra.mrb[0].mxu0 %v1200
        %v1270 = vpop.f32.mrb[0].mxu0
        %v1271 = vadd.f32 0.0, %v1270
        %v1272 = vpop.f32.mrb[0].mxu0
        %1273 = vdwg.mxu0
        %v1274 = vmul.f32 %v1271, 0.35355338
        %v1275 = vsel %vm935, %v1274, -1e+09
        %v1276 = vsel %vm857, %v1275, -inf
        %1277 = vmax.xlane.f32.xlu0 %v1276
        %v1278 = vpop.xlane.xlu0 %1277
        %v1279 = vsub.f32 %v1275, %v1278
        %v1280 = vmul.f32 %v1279, 1.442695
        %v1281 = vpow.pop %v1280
        %v1282 = vsel %vm857, %v1281, 0.0
        %1283 = vadd.xlane.f32.xlu0 %v1282
        %v1284 = vpop.xlane.xlu0 %1283
        %v1285 = vrcp.pop %v1284
        %v1286 = vmul.f32 %v1281, %v1285
        %1287 = vrot.lane.b32.xlu0 %v854, 112
        %v1288 = vpop.permute.xlu0 %1287
        %v1291 = vsel %vm857, %v1286, 0
        %1293 = vmatprep.subr.mxu0 0.0
        %1294 = vmatpush1.msra.mxu0 %v1288
        %1295 = vmatprep.subr.mxu0 0.0
        %1296 = vmatpush1.msra.mxu0 0.0
        %1297 = vmatprep.subr.mxu0 0.0
        %1298 = vmatpush1.msra.mxu0 0.0
        %1299 = vmatprep.subr.mxu0 0.0
        %1300 = vmatpush1.msra.mxu0 0.0
        %1301 = vmatprep.subr.mxu0 0.0
        %1302 = vmatpush1.msra.mxu0 0.0
        %1303 = vmatprep.subr.mxu0 0.0
        %1304 = vmatpush1.msra.mxu0 0.0
        %1305 = vmatprep.subr.mxu0 0.0
        %1306 = vmatpush1.msra.mxu0 0.0
        %1307 = vmatprep.subr.mxu0 0.0
        %1308 = vmatpush1.msra.mxu0 0.0
        %1309 = vmatprep.subr.mxu0 0.0
        %1310 = vmatpush1.msra.mxu0 0.0
        %1311 = vmatprep.subr.mxu0 0.0
        %1312 = vmatpush1.msra.mxu0 0.0
        %1313 = vmatprep.subr.mxu0 0.0
        %1314 = vmatpush1.msra.mxu0 0.0
        %1315 = vmatprep.subr.mxu0 0.0
        %1316 = vmatpush1.msra.mxu0 0.0
        %1317 = vmatprep.subr.mxu0 0.0
        %1318 = vmatpush1.msra.mxu0 0.0
        %1319 = vmatprep.subr.mxu0 0.0
        %1320 = vmatpush1.msra.mxu0 0.0
        %1321 = vmatprep.subr.mxu0 0.0
        %1322 = vmatpush1.msra.mxu0 0.0
        %1323 = vmatprep.subr.mxu0 0.0
        %1324 = vmatpush1.msra.mxu0 0.0
        %1325 = vmatprep.subr.mxu0 0.0
        %1326 = vmatpush1.msra.mxu0 0.0
        %1327 = vmatprep.subr.mxu0 0.0
        %1328 = vmatpush1.msra.mxu0 0.0
        %1329 = vmatprep.subr.mxu0 0.0
        %1330 = vmatpush1.msra.mxu0 0.0
        %1331 = vmatprep.subr.mxu0 0.0
        %1332 = vmatpush1.msra.mxu0 0.0
        %1333 = vmatprep.subr.mxu0 0.0
        %1334 = vmatpush1.msra.mxu0 0.0
        %1335 = vmatprep.subr.mxu0 0.0
        %1336 = vmatpush1.msra.mxu0 0.0
        %1337 = vmatprep.subr.mxu0 0.0
        %1338 = vmatpush1.msra.mxu0 0.0
        %1339 = vmatprep.subr.mxu0 0.0
        %1340 = vmatpush1.msra.mxu0 0.0
        %1341 = vmatprep.subr.mxu0 0.0
        %1342 = vmatpush1.msra.mxu0 0.0
        %1343 = vmatprep.subr.mxu0 0.0
        %1344 = vmatpush1.msra.mxu0 0.0
        %1345 = vmatprep.subr.mxu0 0.0
        %1346 = vmatpush1.msra.mxu0 0.0
        %1347 = vmatprep.subr.mxu0 0.0
        %1348 = vmatpush1.msra.mxu0 0.0
        %1349 = vmatprep.subr.mxu0 0.0
        %1350 = vmatpush1.msra.mxu0 0.0
        %1351 = vmatprep.subr.mxu0 0.0
        %1352 = vmatpush1.msra.mxu0 0.0
        %1353 = vmatprep.subr.mxu0 0.0
        %1354 = vmatpush1.msra.mxu0 0.0
        %1355 = vmatprep.subr.mxu0 0.0
        %1356 = vmatpush1.msra.mxu0 0.0
        %1357 = vmatprep.mubr.f32.mxu0 0.0
        %1358 = vmatmul.mubr.f32.gmra.mrb[0].mxu0 %v1291
        %v1359 = vpop.f32.mrb[0].mxu0
        %v1360 = vadd.f32 0.0, %v1359
        %v1361 = vpop.f32.mrb[0].mxu0
        %1362 = vdwg.mxu0
        %1364 = vrot.lane.b32.xlu0 %v1360, 16
        %v1365 = vpop.permute.xlu0 %1364
        %vm1367 = vcmask 195712
        %1368 = vst.msk [vmem:[#allocation2] sm:$0xff] %vm1367, %v1365
        %1369 = vrot.lane.b32.xlu0 %v702, 104
        %v1370 = vpop.permute.xlu0 %1369
        %1371 = vrot.lane.b32.xlu0 %v778, 104
        %v1372 = vpop.permute.xlu0 %1371
        %v1373 = vsel %vm857, %v1370, 0
        %v1375 = vsel %vm857, %v1372, 0
        %1377 = vmatprep.subr.mxu0 0.0
        %1378 = vmatpush1.xpose.msra.mxu0 %v1375
        %1379 = vmatprep.subr.mxu0 0.0
        %1380 = vmatpush1.xpose.msra.mxu0 0.0
        %1381 = vmatprep.subr.mxu0 0.0
        %1382 = vmatpush1.xpose.msra.mxu0 0.0
        %1383 = vmatprep.subr.mxu0 0.0
        %1384 = vmatpush1.xpose.msra.mxu0 0.0
        %1385 = vmatprep.subr.mxu0 0.0
        %1386 = vmatpush1.xpose.msra.mxu0 0.0
        %1387 = vmatprep.subr.mxu0 0.0
        %1388 = vmatpush1.xpose.msra.mxu0 0.0
        %1389 = vmatprep.subr.mxu0 0.0
        %1390 = vmatpush1.xpose.msra.mxu0 0.0
        %1391 = vmatprep.subr.mxu0 0.0
        %1392 = vmatpush1.xpose.msra.mxu0 0.0
        %1393 = vmatprep.subr.mxu0 0.0
        %1394 = vmatpush1.xpose.msra.mxu0 0.0
        %1395 = vmatprep.subr.mxu0 0.0
        %1396 = vmatpush1.xpose.msra.mxu0 0.0
        %1397 = vmatprep.subr.mxu0 0.0
        %1398 = vmatpush1.xpose.msra.mxu0 0.0
        %1399 = vmatprep.subr.mxu0 0.0
        %1400 = vmatpush1.xpose.msra.mxu0 0.0
        %1401 = vmatprep.subr.mxu0 0.0
        %1402 = vmatpush1.xpose.msra.mxu0 0.0
        %1403 = vmatprep.subr.mxu0 0.0
        %1404 = vmatpush1.xpose.msra.mxu0 0.0
        %1405 = vmatprep.subr.mxu0 0.0
        %1406 = vmatpush1.xpose.msra.mxu0 0.0
        %1407 = vmatprep.subr.mxu0 0.0
        %1408 = vmatpush1.xpose.msra.mxu0 0.0
        %1409 = vmatprep.subr.mxu0 0.0
        %1410 = vmatpush1.xpose.msra.mxu0 0.0
        %1411 = vmatprep.subr.mxu0 0.0
        %1412 = vmatpush1.xpose.msra.mxu0 0.0
        %1413 = vmatprep.subr.mxu0 0.0
        %1414 = vmatpush1.xpose.msra.mxu0 0.0
        %1415 = vmatprep.subr.mxu0 0.0
        %1416 = vmatpush1.xpose.msra.mxu0 0.0
        %1417 = vmatprep.subr.mxu0 0.0
        %1418 = vmatpush1.xpose.msra.mxu0 0.0
        %1419 = vmatprep.subr.mxu0 0.0
        %1420 = vmatpush1.xpose.msra.mxu0 0.0
        %1421 = vmatprep.subr.mxu0 0.0
        %1422 = vmatpush1.xpose.msra.mxu0 0.0
        %1423 = vmatprep.subr.mxu0 0.0
        %1424 = vmatpush1.xpose.msra.mxu0 0.0
        %1425 = vmatprep.subr.mxu0 0.0
        %1426 = vmatpush1.xpose.msra.mxu0 0.0
        %1427 = vmatprep.subr.mxu0 0.0
        %1428 = vmatpush1.xpose.msra.mxu0 0.0
        %1429 = vmatprep.subr.mxu0 0.0
        %1430 = vmatpush1.xpose.msra.mxu0 0.0
        %1431 = vmatprep.subr.mxu0 0.0
        %1432 = vmatpush1.xpose.msra.mxu0 0.0
        %1433 = vmatprep.subr.mxu0 0.0
        %1434 = vmatpush1.xpose.msra.mxu0 0.0
        %1435 = vmatprep.subr.mxu0 0.0
        %1436 = vmatpush1.xpose.msra.mxu0 0.0
        %1437 = vmatprep.subr.mxu0 0.0
        %1438 = vmatpush1.xpose.msra.mxu0 0.0
        %1439 = vmatprep.subr.mxu0 0.0
        %1440 = vmatpush1.xpose.msra.mxu0 0.0
        %1441 = vmatprep.mubr.f32.mxu0 0.0
        %1442 = vmatmul.mubr.f32.gmra.mrb[0].mxu0 %v1373
        %v1443 = vpop.f32.mrb[0].mxu0
        %v1444 = vadd.f32 0.0, %v1443
        %v1445 = vpop.f32.mrb[0].mxu0
        %1446 = vdwg.mxu0
        %v1447 = vmul.f32 %v1444, 0.35355338
        %v1448 = vsel %vm935, %v1447, -1e+09
        %v1449 = vsel %vm857, %v1448, -inf
        %1450 = vmax.xlane.f32.xlu0 %v1449
        %v1451 = vpop.xlane.xlu0 %1450
        %v1452 = vsub.f32 %v1448, %v1451
        %v1453 = vmul.f32 %v1452, 1.442695
        %v1454 = vpow.pop %v1453
        %v1455 = vsel %vm857, %v1454, 0.0
        %1456 = vadd.xlane.f32.xlu0 %v1455
        %v1457 = vpop.xlane.xlu0 %1456
        %v1458 = vrcp.pop %v1457
        %v1459 = vmul.f32 %v1454, %v1458
        %1460 = vrot.lane.b32.xlu0 %v854, 104
        %v1461 = vpop.permute.xlu0 %1460
        %v1464 = vsel %vm857, %v1459, 0
        %1466 = vmatprep.subr.mxu0 0.0
        %1467 = vmatpush1.msra.mxu0 %v1461
        %1468 = vmatprep.subr.mxu0 0.0
        %1469 = vmatpush1.msra.mxu0 0.0
        %1470 = vmatprep.subr.mxu0 0.0
        %1471 = vmatpush1.msra.mxu0 0.0
        %1472 = vmatprep.subr.mxu0 0.0
        %1473 = vmatpush1.msra.mxu0 0.0
        %1474 = vmatprep.subr.mxu0 0.0
        %1475 = vmatpush1.msra.mxu0 0.0
        %1476 = vmatprep.subr.mxu0 0.0
        %1477 = vmatpush1.msra.mxu0 0.0
        %1478 = vmatprep.subr.mxu0 0.0
        %1479 = vmatpush1.msra.mxu0 0.0
        %1480 = vmatprep.subr.mxu0 0.0
        %1481 = vmatpush1.msra.mxu0 0.0
        %1482 = vmatprep.subr.mxu0 0.0
        %1483 = vmatpush1.msra.mxu0 0.0
        %1484 = vmatprep.subr.mxu0 0.0
        %1485 = vmatpush1.msra.mxu0 0.0
        %1486 = vmatprep.subr.mxu0 0.0
        %1487 = vmatpush1.msra.mxu0 0.0
        %1488 = vmatprep.subr.mxu0 0.0
        %1489 = vmatpush1.msra.mxu0 0.0
        %1490 = vmatprep.subr.mxu0 0.0
        %1491 = vmatpush1.msra.mxu0 0.0
        %1492 = vmatprep.subr.mxu0 0.0
        %1493 = vmatpush1.msra.mxu0 0.0
        %1494 = vmatprep.subr.mxu0 0.0
        %1495 = vmatpush1.msra.mxu0 0.0
        %1496 = vmatprep.subr.mxu0 0.0
        %1497 = vmatpush1.msra.mxu0 0.0
        %1498 = vmatprep.subr.mxu0 0.0
        %1499 = vmatpush1.msra.mxu0 0.0
        %1500 = vmatprep.subr.mxu0 0.0
        %1501 = vmatpush1.msra.mxu0 0.0
        %1502 = vmatprep.subr.mxu0 0.0
        %1503 = vmatpush1.msra.mxu0 0.0
        %1504 = vmatprep.subr.mxu0 0.0
        %1505 = vmatpush1.msra.mxu0 0.0
        %1506 = vmatprep.subr.mxu0 0.0
        %1507 = vmatpush1.msra.mxu0 0.0
        %1508 = vmatprep.subr.mxu0 0.0
        %1509 = vmatpush1.msra.mxu0 0.0
        %1510 = vmatprep.subr.mxu0 0.0
        %1511 = vmatpush1.msra.mxu0 0.0
        %1512 = vmatprep.subr.mxu0 0.0
        %1513 = vmatpush1.msra.mxu0 0.0
        %1514 = vmatprep.subr.mxu0 0.0
        %1515 = vmatpush1.msra.mxu0 0.0
        %1516 = vmatprep.subr.mxu0 0.0
        %1517 = vmatpush1.msra.mxu0 0.0
        %1518 = vmatprep.subr.mxu0 0.0
        %1519 = vmatpush1.msra.mxu0 0.0
        %1520 = vmatprep.subr.mxu0 0.0
        %1521 = vmatpush1.msra.mxu0 0.0
        %1522 = vmatprep.subr.mxu0 0.0
        %1523 = vmatpush1.msra.mxu0 0.0
        %1524 = vmatprep.subr.mxu0 0.0
        %1525 = vmatpush1.msra.mxu0 0.0
        %1526 = vmatprep.subr.mxu0 0.0
        %1527 = vmatpush1.msra.mxu0 0.0
        %1528 = vmatprep.subr.mxu0 0.0
        %1529 = vmatpush1.msra.mxu0 0.0
        %1530 = vmatprep.mubr.f32.mxu0 0.0
        %1531 = vmatmul.mubr.f32.gmra.mrb[0].mxu0 %v1464
        %v1532 = vpop.f32.mrb[0].mxu0
        %v1533 = vadd.f32 0.0, %v1532
        %v1534 = vpop.f32.mrb[0].mxu0
        %1535 = vdwg.mxu0
        %1537 = vrot.lane.b32.xlu0 %v1533, 24
        %v1538 = vpop.permute.xlu0 %1537
        %vm1540 = vcmask 261312
        %1541 = vst.msk [vmem:[#allocation2] sm:$0xff] %vm1540, %v1538
        %v1542 = vld [vmem:[#allocation2] sm:$0xff]
        %v1543 = vld [vmem:[#allocation16] sm:$0xff]
        %v1544 = vld [vmem:[#allocation16 + $0x8] sm:$0xff]
        %v1545 = vld [vmem:[#allocation16 + $0x10] sm:$0xff]
        %v1546 = vld [vmem:[#allocation16 + $0x18] sm:$0xff]
        %v1548 = vsel %vm574, %v1542, 0
        %1550 = vmatprep.subr.mxu0 0.0
        %1551 = vmatpush1.msra.mxu0 %v1543
        %1552 = vmatprep.subr.mxu0 0.0
        %1553 = vmatpush1.msra.mxu0 %v1544
        %1554 = vmatprep.subr.mxu0 0.0
        %1555 = vmatpush1.msra.mxu0 %v1545
        %1556 = vmatprep.subr.mxu0 0.0
        %1557 = vmatpush1.msra.mxu0 %v1546
        %1558 = vmatprep.subr.mxu0 0.0
        %1559 = vmatpush1.msra.mxu0 0.0
        %1560 = vmatprep.subr.mxu0 0.0
        %1561 = vmatpush1.msra.mxu0 0.0
        %1562 = vmatprep.subr.mxu0 0.0
        %1563 = vmatpush1.msra.mxu0 0.0
        %1564 = vmatprep.subr.mxu0 0.0
        %1565 = vmatpush1.msra.mxu0 0.0
        %1566 = vmatprep.subr.mxu0 0.0
        %1567 = vmatpush1.msra.mxu0 0.0
        %1568 = vmatprep.subr.mxu0 0.0
        %1569 = vmatpush1.msra.mxu0 0.0
        %1570 = vmatprep.subr.mxu0 0.0
        %1571 = vmatpush1.msra.mxu0 0.0
        %1572 = vmatprep.subr.mxu0 0.0
        %1573 = vmatpush1.msra.mxu0 0.0
        %1574 = vmatprep.subr.mxu0 0.0
        %1575 = vmatpush1.msra.mxu0 0.0
        %1576 = vmatprep.subr.mxu0 0.0
        %1577 = vmatpush1.msra.mxu0 0.0
        %1578 = vmatprep.subr.mxu0 0.0
        %1579 = vmatpush1.msra.mxu0 0.0
        %1580 = vmatprep.subr.mxu0 0.0
        %1581 = vmatpush1.msra.mxu0 0.0
        %1582 = vmatprep.subr.mxu0 0.0
        %1583 = vmatpush1.msra.mxu0 0.0
        %1584 = vmatprep.subr.mxu0 0.0
        %1585 = vmatpush1.msra.mxu0 0.0
        %1586 = vmatprep.subr.mxu0 0.0
        %1587 = vmatpush1.msra.mxu0 0.0
        %1588 = vmatprep.subr.mxu0 0.0
        %1589 = vmatpush1.msra.mxu0 0.0
        %1590 = vmatprep.subr.mxu0 0.0
        %1591 = vmatpush1.msra.mxu0 0.0
        %1592 = vmatprep.subr.mxu0 0.0
        %1593 = vmatpush1.msra.mxu0 0.0
        %1594 = vmatprep.subr.mxu0 0.0
        %1595 = vmatpush1.msra.mxu0 0.0
        %1596 = vmatprep.subr.mxu0 0.0
        %1597 = vmatpush1.msra.mxu0 0.0
        %1598 = vmatprep.subr.mxu0 0.0
        %1599 = vmatpush1.msra.mxu0 0.0
        %1600 = vmatprep.subr.mxu0 0.0
        %1601 = vmatpush1.msra.mxu0 0.0
        %1602 = vmatprep.subr.mxu0 0.0
        %1603 = vmatpush1.msra.mxu0 0.0
        %1604 = vmatprep.subr.mxu0 0.0
        %1605 = vmatpush1.msra.mxu0 0.0
        %1606 = vmatprep.subr.mxu0 0.0
        %1607 = vmatpush1.msra.mxu0 0.0
        %1608 = vmatprep.subr.mxu0 0.0
        %1609 = vmatpush1.msra.mxu0 0.0
        %1610 = vmatprep.subr.mxu0 0.0
        %1611 = vmatpush1.msra.mxu0 0.0
        %1612 = vmatprep.subr.mxu0 0.0
        %1613 = vmatpush1.msra.mxu0 0.0
        %1614 = vmatprep.mubr.f32.mxu0 0.0
        %1615 = vmatmul.mubr.f32.gmra.mrb[0].mxu0 %v1548
        %v1616 = vpop.f32.mrb[0].mxu0
        %v1617 = vadd.f32 0.0, %v1616
        %v1618 = vpop.f32.mrb[0].mxu0
        %1619 = vdwg.mxu0
        %v1620 = vadd.f32 %v570, %v1617
        %v1621 = vld [vmem:[#allocation17] sm:$0x1]
        %v1623 = vlaneseq
        %v1624 = vshrl.u32 %v1623, 7
        %v1625 = vsub.s32 0, %v1624
        %v1626 = vrot.slane %v1621, %v1625
        %v1628 = vadd.f32 %v1620, %v1626
        %1629 = vst.msk [vmem:[%s569] sm:$0xff] %vm574, %v1628
        %p1630 = scmp.lt.s32.totalorder %s33, 1
        %s1631 = scalar_select %p1630, %s33, 1
        %s1632 = smul.addr %s1631, 8
        %s1633 = scalar_lea.vmem %s12, %s1632
        // Predicated region
        $region109: #{decoder_layer.3} parent=67 // pred_check
          %p1634 = pneg %p313
        $region110: #{decoder_layer.3} parent=67 // pred_check_branch
          %1636 = sbr.rel (%p1634) target = $region112
        $region111: #{decoder_layer.3} parent=67 // pred_region
          _
        $region112: #{decoder_layer.3} parent=67 // pred_fallthru
          _
      $region68: #{decoder_layer.3} parent=5 // pred_fallthru
        _
      %p1637 = scmp.le.s32.totalorder 2, %s28
      // Predicated region
      $region113: #{decoder_layer.3} parent=5 // pred_check
        %p1638 = pneg %p1637
      $region114: #{decoder_layer.3} parent=5 // pred_check_branch
        %1640 = sbr.rel (%p1638) target = $region116
      $region115: #{decoder_layer.3} parent=5 // pred_region
        %s1641 = ssub.s32 %s28, 2
        // Predicated region
        $region117: #{decoder_layer.3} parent=115 // pred_check
          %p1642 = pneg %p319
        $region118: #{decoder_layer.3} parent=115 // pred_check_branch
          %1644 = sbr.rel (%p1642) target = $region120
        $region119: #{decoder_layer.3} parent=115 // pred_region
          %p1645 = scmp.lt.s32.totalorder %s34, 1
          %s1646 = scalar_select %p1645, %s34, 1
          %s1647 = smul.addr %s1646, 8
          %s1648 = scalar_lea.vmem %s12, %s1647
        $region120: #{decoder_layer.3} parent=115 // pred_fallthru
          _
      $region116: #{decoder_layer.3} parent=5 // pred_fallthru
        _
    $region6: #{decoder_layer.3} parent=1 // loop_footer
      %s32 = sadd.s32 1, %s28
    $region7: #{decoder_layer.3} parent=1 // loop_footer_branch
      %27 = sbr.rel target = $region3
    $region8: #{decoder_layer.3} parent=1 // loop_exit
      _
    %1649 = vsyncpa [#allocation4], 1
    %s1650 = scalar_lea.sflag [#allocation4], 1
    %1651 = vsyncpa %s1650, 1
    %1652 = vsyncpa [#allocation6], 1
    %s1653 = scalar_lea.sflag [#allocation6], 1
    %1654 = vsyncpa %s1653, 1
    %1655 = vsyncpa [#allocation9], 1
    %1656 = vsyncpa [#allocation12], 1
    %1657 = vsyncpa [#allocation15], 1
    %1658 = vsyncpa [#allocation18], 1

// kernel: decoder_layer.4
$region0: #{decoder_layer.4}
  #allocation0 [shape = 'u32[]', space=smem, size = 0x4, offset = 0x4, fixed_abs, tag = 'smem constant byte address 0x4 - core index']
  #allocation1 [shape = 'u32[144,128]{1,0:T(1,128)}', space=vmem, size = 0x12000, scoped, tag = 'internal scratch']
  #allocation2 [shape = 'f32[8,32]{1,0:T(8,128)}', space=vmem, size = 0x1000, scoped, tag = 'scratch operand']
  %s0 = inlined_call_operand.vmem [shape: f32[2,8,32], index: 0, kind: input, shape index: {}]
  %s1 = inlined_call_operand.vmem [shape: f32[2,12,32], index: 1, kind: input, shape index: {}]
  %s2 = inlined_call_operand.vmem [shape: f32[2,1,12], index: 2, kind: input, shape index: {}]
  %s3 = inlined_call_operand.vmem [shape: f32[1,32], index: 3, kind: input, shape index: {}]
  %s4 = inlined_call_operand.vmem [shape: f32[1,32], index: 4, kind: input, shape index: {}]
  %s5 = inlined_call_operand.vmem [shape: f32[32,32], index: 5, kind: input, shape index: {}]
  %s6 = inlined_call_operand.vmem [shape: f32[1,32], index: 6, kind: input, shape index: {}]
  %s7 = inlined_call_operand.vmem [shape: f32[32,32], index: 7, kind: input, shape index: {}]
  %s8 = inlined_call_operand.vmem [shape: f32[1,32], index: 8, kind: input, shape index: {}]
  %s9 = inlined_call_operand.vmem [shape: f32[32,32], index: 9, kind: input, shape index: {}]
  %s10 = inlined_call_operand.vmem [shape: f32[1,32], index: 10, kind: input, shape index: {}]
  %s11 = inlined_call_operand.vmem [shape: f32[32,32], index: 11, kind: input, shape index: {}]
  %s12 = inlined_call_operand.vmem [shape: f32[1,32], index: 12, kind: input, shape index: {}]
  %s13 = inlined_call_operand.vmem [shape: f32[2,8,32], index: 13, kind: output, shape index: {}]
  %s14 = sld [smem:[#allocation0]]
  $region85: #{decoder_layer.4} parent=0
    _
  %s16 = ssub.s32 1, %s14
  %s17 = scalar_select 0, %s16, %s14
  loop: start=0, step=1, limit=4
  $region2: #{decoder_layer.4} parent=0 // loop_pre_header
    _
  $region3: #{decoder_layer.4} parent=0 // loop_header
    %s19 = sphi 0, %s23
    %p20 = scmp.ge.s32.totalorder %s19, 4
    %s29 = sphi 0, %s31
    %s32 = sphi 0, %s29
    %s33 = sphi 0, %s32
    %s49 = sphi 0, %s33
    %s55 = sphi 0, %s57
    %s58 = sphi 0, %s55
    %s59 = sphi 0, %s58
    %s75 = sphi 0, %s59
    %s81 = sphi 0, %s83
    %s84 = sphi 0, %s81
    %s85 = sphi 0, %s84
    %s101 = sphi 0, %s85
    %s105 = sphi 0, %s105
    %s107 = sphi 0, %s105
    %s108 = sphi 0, %s107
    %s122 = sphi 0, %s108
    %s126 = sphi 0, %s126
    %s128 = sphi 0, %s126
    %s129 = sphi 0, %s128
    %s143 = sphi 0, %s129
    %s147 = sphi 0, %s147
    %s149 = sphi 0, %s147
    %s150 = sphi 0, %s149
    %s164 = sphi 0, %s150
    %s168 = sphi 0, %s168
    %s170 = sphi 0, %s168
    %s171 = sphi 0, %s170
    %s185 = sphi 0, %s171
    %s189 = sphi 0, %s189
    %s191 = sphi 0, %s189
    %s192 = sphi 0, %s191
    %s206 = sphi 0, %s192
    %s210 = sphi 0, %s210
    %s212 = sphi 0, %s210
    %s213 = sphi 0, %s212
    %s227 = sphi 0, %s213
    %s231 = sphi 0, %s231
    %s233 = sphi 0, %s231
    %s234 = sphi 0, %s233
    %s248 = sphi 0, %s234
    %s252 = sphi 0, %s252
    %s254 = sphi 0, %s252
    %s255 = sphi 0, %s254
    %s269 = sphi 0, %s255
    %s273 = sphi 0, %s273
    %s275 = sphi 0, %s273
    %s276 = sphi 0, %s275
    %s290 = sphi 0, %s276
    %s294 = sphi 0, %s294
    %s296 = sphi 0, %s294
    %s297 = sphi 0, %s296
    %s311 = sphi 0, %s297
    %s317 = sphi 0, %s319
    %s320 = sphi 0, %s317
    %s321 = sphi 0, %s320
    %s337 = sphi 0, %s321
  $region4: #{decoder_layer.4} parent=0 // loop_header_branch
    %22 = sbr.rel (%p20) target = $region8
  $region5: #{decoder_layer.4} parent=0 // loop_body
    %s24 = ssub.s32 %s19, 1
    %s25 = ssub.s32 %s19, 2
    %s26 = sadd.s32 %s19, 1
    %s27 = ssub.s32 %s19, %s26
    %p28 = scmp.eq.s32.totalorder %s27, 0
    %s30 = sadd.s32 %s29, 1
    %s31 = scalar_select %p28, %s29, %s30
    %p34 = pneg %p28
    %p35 = scmp.eq.s32.totalorder %s19, 1
    %p36 = por %p34, %p35
    %p37 = scmp.ne.s32.totalorder %s29, %s32
    %p38 = scmp.eq.s32.totalorder %s19, 0
    %p39 = por %p37, %p38
    %p40 = scmp.ne.s32.totalorder %s29, %s32
    %p41 = scmp.eq.s32.totalorder %s24, 1
    %p42 = por %p40, %p41
    %p43 = scmp.ne.s32.totalorder %s32, %s33
    %p44 = scmp.eq.s32.totalorder %s24, 0
    %p45 = por %p43, %p44
    %p46 = scmp.ne.s32.totalorder %s32, %s33
    %p47 = scmp.eq.s32.totalorder %s25, 1
    %p48 = por %p46, %p47
    %p50 = scmp.ne.s32.totalorder %s33, %s49
    %p51 = scmp.eq.s32.totalorder %s25, 0
    %p52 = por %p50, %p51
    %s53 = ssub.s32 %s19, %s26
    %p54 = scmp.eq.s32.totalorder %s53, 0
    %s56 = sadd.s32 %s55, 1
    %s57 = scalar_select %p54, %s55, %s56
    %p60 = pneg %p54
    %p61 = scmp.eq.s32.totalorder %s19, 1
    %p62 = por %p60, %p61
    %p63 = scmp.ne.s32.totalorder %s55, %s58
    %p64 = scmp.eq.s32.totalorder %s19, 0
    %p65 = por %p63, %p64
    %p66 = scmp.ne.s32.totalorder %s55, %s58
    %p67 = scmp.eq.s32.totalorder %s24, 1
    %p68 = por %p66, %p67
    %p69 = scmp.ne.s32.totalorder %s58, %s59
    %p70 = scmp.eq.s32.totalorder %s24, 0
    %p71 = por %p69, %p70
    %p72 = scmp.ne.s32.totalorder %s58, %s59
    %p73 = scmp.eq.s32.totalorder %s25, 1
    %p74 = por %p72, %p73
    %p76 = scmp.ne.s32.totalorder %s59, %s75
    %p77 = scmp.eq.s32.totalorder %s25, 0
    %p78 = por %p76, %p77
    %s79 = ssub.s32 %s19, %s26
    %p80 = scmp.eq.s32.totalorder %s79, 0
    %s82 = sadd.s32 %s81, 1
    %s83 = scalar_select %p80, %s81, %s82
    %p86 = pneg %p80
    %p87 = scmp.eq.s32.totalorder %s19, 1
    %p88 = por %p86, %p87
    %p89 = scmp.ne.s32.totalorder %s81, %s84
    %p90 = scmp.eq.s32.totalorder %s19, 0
    %p91 = por %p89, %p90
    %p92 = scmp.ne.s32.totalorder %s81, %s84
    %p93 = scmp.eq.s32.totalorder %s24, 1
    %p94 = por %p92, %p93
    %p95 = scmp.ne.s32.totalorder %s84, %s85
    %p96 = scmp.eq.s32.totalorder %s24, 0
    %p97 = por %p95, %p96
    %p98 = scmp.ne.s32.totalorder %s84, %s85
    %p99 = scmp.eq.s32.totalorder %s25, 1
    %p100 = por %p98, %p99
    %p102 = scmp.ne.s32.totalorder %s85, %s101
    %p103 = scmp.eq.s32.totalorder %s25, 0
    %p104 = por %p102, %p103
    %s106 = sadd.s32 %s105, 1
    %p109 = scmp.eq.s32.totalorder %s19, 1
    %p110 = scmp.ne.s32.totalorder %s105, %s107
    %p111 = scmp.eq.s32.totalorder %s19, 0
    %p112 = por %p110, %p111
    %p113 = scmp.ne.s32.totalorder %s105, %s107
    %p114 = scmp.eq.s32.totalorder %s24, 1
    %p115 = por %p113, %p114
    %p116 = scmp.ne.s32.totalorder %s107, %s108
    %p117 = scmp.eq.s32.totalorder %s24, 0
    %p118 = por %p116, %p117
    %p119 = scmp.ne.s32.totalorder %s107, %s108
    %p120 = scmp.eq.s32.totalorder %s25, 1
    %p121 = por %p119, %p120
    %p123 = scmp.ne.s32.totalorder %s108, %s122
    %p124 = scmp.eq.s32.totalorder %s25, 0
    %p125 = por %p123, %p124
    %s127 = sadd.s32 %s126, 1
    %p130 = scmp.eq.s32.totalorder %s19, 1
    %p131 = scmp.ne.s32.totalorder %s126, %s128
    %p132 = scmp.eq.s32.totalorder %s19, 0
    %p133 = por %p131, %p132
    %p134 = scmp.ne.s32.totalorder %s126, %s128
    %p135 = scmp.eq.s32.totalorder %s24, 1
    %p136 = por %p134, %p135
    %p137 = scmp.ne.s32.totalorder %s128, %s129
    %p138 = scmp.eq.s32.totalorder %s24, 0
    %p139 = por %p137, %p138
    %p140 = scmp.ne.s32.totalorder %s128, %s129
    %p141 = scmp.eq.s32.totalorder %s25, 1
    %p142 = por %p140, %p141
    %p144 = scmp.ne.s32.totalorder %s129, %s143
    %p145 = scmp.eq.s32.totalorder %s25, 0
    %p146 = por %p144, %p145
    %s148 = sadd.s32 %s147, 1
    %p151 = scmp.eq.s32.totalorder %s19, 1
    %p152 = scmp.ne.s32.totalorder %s147, %s149
    %p153 = scmp.eq.s32.totalorder %s19, 0
    %p154 = por %p152, %p153
    %p155 = scmp.ne.s32.totalorder %s147, %s149
    %p156 = scmp.eq.s32.totalorder %s24, 1
    %p157 = por %p155, %p156
    %p158 = scmp.ne.s32.totalorder %s149, %s150
    %p159 = scmp.eq.s32.totalorder %s24, 0
    %p160 = por %p158, %p159
    %p161 = scmp.ne.s32.totalorder %s149, %s150
    %p162 = scmp.eq.s32.totalorder %s25, 1
    %p163 = por %p161, %p162
    %p165 = scmp.ne.s32.totalorder %s150, %s164
    %p166 = scmp.eq.s32.totalorder %s25, 0
    %p167 = por %p165, %p166
    %s169 = sadd.s32 %s168, 1
    %p172 = scmp.eq.s32.totalorder %s19, 1
    %p173 = scmp.ne.s32.totalorder %s168, %s170
    %p174 = scmp.eq.s32.totalorder %s19, 0
    %p175 = por %p173, %p174
    %p176 = scmp.ne.s32.totalorder %s168, %s170
    %p177 = scmp.eq.s32.totalorder %s24, 1
    %p178 = por %p176, %p177
    %p179 = scmp.ne.s32.totalorder %s170, %s171
    %p180 = scmp.eq.s32.totalorder %s24, 0
    %p181 = por %p179, %p180
    %p182 = scmp.ne.s32.totalorder %s170, %s171
    %p183 = scmp.eq.s32.totalorder %s25, 1
    %p184 = por %p182, %p183
    %p186 = scmp.ne.s32.totalorder %s171, %s185
    %p187 = scmp.eq.s32.totalorder %s25, 0
    %p188 = por %p186, %p187
    %s190 = sadd.s32 %s189, 1
    %p193 = scmp.eq.s32.totalorder %s19, 1
    %p194 = scmp.ne.s32.totalorder %s189, %s191
    %p195 = scmp.eq.s32.totalorder %s19, 0
    %p196 = por %p194, %p195
    %p197 = scmp.ne.s32.totalorder %s189, %s191
    %p198 = scmp.eq.s32.totalorder %s24, 1
    %p199 = por %p197, %p198
    %p200 = scmp.ne.s32.totalorder %s191, %s192
    %p201 = scmp.eq.s32.totalorder %s24, 0
    %p202 = por %p200, %p201
    %p203 = scmp.ne.s32.totalorder %s191, %s192
    %p204 = scmp.eq.s32.totalorder %s25, 1
    %p205 = por %p203, %p204
    %p207 = scmp.ne.s32.totalorder %s192, %s206
    %p208 = scmp.eq.s32.totalorder %s25, 0
    %p209 = por %p207, %p208
    %s211 = sadd.s32 %s210, 1
    %p214 = scmp.eq.s32.totalorder %s19, 1
    %p215 = scmp.ne.s32.totalorder %s210, %s212
    %p216 = scmp.eq.s32.totalorder %s19, 0
    %p217 = por %p215, %p216
    %p218 = scmp.ne.s32.totalorder %s210, %s212
    %p219 = scmp.eq.s32.totalorder %s24, 1
    %p220 = por %p218, %p219
    %p221 = scmp.ne.s32.totalorder %s212, %s213
    %p222 = scmp.eq.s32.totalorder %s24, 0
    %p223 = por %p221, %p222
    %p224 = scmp.ne.s32.totalorder %s212, %s213
    %p225 = scmp.eq.s32.totalorder %s25, 1
    %p226 = por %p224, %p225
    %p228 = scmp.ne.s32.totalorder %s213, %s227
    %p229 = scmp.eq.s32.totalorder %s25, 0
    %p230 = por %p228, %p229
    %s232 = sadd.s32 %s231, 1
    %p235 = scmp.eq.s32.totalorder %s19, 1
    %p236 = scmp.ne.s32.totalorder %s231, %s233
    %p237 = scmp.eq.s32.totalorder %s19, 0
    %p238 = por %p236, %p237
    %p239 = scmp.ne.s32.totalorder %s231, %s233
    %p240 = scmp.eq.s32.totalorder %s24, 1
    %p241 = por %p239, %p240
    %p242 = scmp.ne.s32.totalorder %s233, %s234
    %p243 = scmp.eq.s32.totalorder %s24, 0
    %p244 = por %p242, %p243
    %p245 = scmp.ne.s32.totalorder %s233, %s234
    %p246 = scmp.eq.s32.totalorder %s25, 1
    %p247 = por %p245, %p246
    %p249 = scmp.ne.s32.totalorder %s234, %s248
    %p250 = scmp.eq.s32.totalorder %s25, 0
    %p251 = por %p249, %p250
    %s253 = sadd.s32 %s252, 1
    %p256 = scmp.eq.s32.totalorder %s19, 1
    %p257 = scmp.ne.s32.totalorder %s252, %s254
    %p258 = scmp.eq.s32.totalorder %s19, 0
    %p259 = por %p257, %p258
    %p260 = scmp.ne.s32.totalorder %s252, %s254
    %p261 = scmp.eq.s32.totalorder %s24, 1
    %p262 = por %p260, %p261
    %p263 = scmp.ne.s32.totalorder %s254, %s255
    %p264 = scmp.eq.s32.totalorder %s24, 0
    %p265 = por %p263, %p264
    %p266 = scmp.ne.s32.totalorder %s254, %s255
    %p267 = scmp.eq.s32.totalorder %s25, 1
    %p268 = por %p266, %p267
    %p270 = scmp.ne.s32.totalorder %s255, %s269
    %p271 = scmp.eq.s32.totalorder %s25, 0
    %p272 = por %p270, %p271
    %s274 = sadd.s32 %s273, 1
    %p277 = scmp.eq.s32.totalorder %s19, 1
    %p278 = scmp.ne.s32.totalorder %s273, %s275
    %p279 = scmp.eq.s32.totalorder %s19, 0
    %p280 = por %p278, %p279
    %p281 = scmp.ne.s32.totalorder %s273, %s275
    %p282 = scmp.eq.s32.totalorder %s24, 1
    %p283 = por %p281, %p282
    %p284 = scmp.ne.s32.totalorder %s275, %s276
    %p285 = scmp.eq.s32.totalorder %s24, 0
    %p286 = por %p284, %p285
    %p287 = scmp.ne.s32.totalorder %s275, %s276
    %p288 = scmp.eq.s32.totalorder %s25, 1
    %p289 = por %p287, %p288
    %p291 = scmp.ne.s32.totalorder %s276, %s290
    %p292 = scmp.eq.s32.totalorder %s25, 0
    %p293 = por %p291, %p292
    %s295 = sadd.s32 %s294, 1
    %p298 = scmp.eq.s32.totalorder %s19, 1
    %p299 = scmp.ne.s32.totalorder %s294, %s296
    %p300 = scmp.eq.s32.totalorder %s19, 0
    %p301 = por %p299, %p300
    %p302 = scmp.ne.s32.totalorder %s294, %s296
    %p303 = scmp.eq.s32.totalorder %s24, 1
    %p304 = por %p302, %p303
    %p305 = scmp.ne.s32.totalorder %s296, %s297
    %p306 = scmp.eq.s32.totalorder %s24, 0
    %p307 = por %p305, %p306
    %p308 = scmp.ne.s32.totalorder %s296, %s297
    %p309 = scmp.eq.s32.totalorder %s25, 1
    %p310 = por %p308, %p309
    %p312 = scmp.ne.s32.totalorder %s297, %s311
    %p313 = scmp.eq.s32.totalorder %s25, 0
    %p314 = por %p312, %p313
    %s315 = ssub.s32 %s19, %s26
    %p316 = scmp.eq.s32.totalorder %s315, 0
    %s318 = sadd.s32 %s317, 1
    %s319 = scalar_select %p316, %s317, %s318
    %p322 = pneg %p316
    %p323 = scmp.eq.s32.totalorder %s19, 1
    %p324 = por %p322, %p323
    %p325 = scmp.ne.s32.totalorder %s317, %s320
    %p326 = scmp.eq.s32.totalorder %s19, 0
    %p327 = por %p325, %p326
    %p328 = scmp.ne.s32.totalorder %s317, %s320
    %p329 = scmp.eq.s32.totalorder %s24, 1
    %p330 = por %p328, %p329
    %p331 = scmp.ne.s32.totalorder %s320, %s321
    %p332 = scmp.eq.s32.totalorder %s24, 0
    %p333 = por %p331, %p332
    %p334 = scmp.ne.s32.totalorder %s320, %s321
    %p335 = scmp.eq.s32.totalorder %s25, 1
    %p336 = por %p334, %p335
    %p338 = scmp.ne.s32.totalorder %s321, %s337
    %p339 = scmp.eq.s32.totalorder %s25, 0
    %p340 = por %p338, %p339
    %p341 = scmp.le.s32.totalorder 1, %s19
    %p342 = scmp.lt.s32.totalorder %s19, 3
    %p343 = pnand %p341, %p342
    %p344 = pneg %p343
    // Predicated region
    $region9: #{decoder_layer.4} parent=5 // pred_check
      _
    $region10: #{decoder_layer.4} parent=5 // pred_check_branch
      %346 = sbr.rel (%p343) target = $region12
    $region11: #{decoder_layer.4} parent=5 // pred_region
      %s347 = ssub.s32 %s19, 1
      // Predicated region
      $region13: #{decoder_layer.4} parent=11 // pred_check
        %p348 = pneg %p118
      $region14: #{decoder_layer.4} parent=11 // pred_check_branch
        %350 = sbr.rel (%p348) target = $region16
      $region15: #{decoder_layer.4} parent=11 // pred_region
        _
      $region16: #{decoder_layer.4} parent=11 // pred_fallthru
        _
      // Predicated region
      $region17: #{decoder_layer.4} parent=11 // pred_check
        %p351 = pneg %p139
      $region18: #{decoder_layer.4} parent=11 // pred_check_branch
        %353 = sbr.rel (%p351) target = $region20
      $region19: #{decoder_layer.4} parent=11 // pred_region
        _
      $region20: #{decoder_layer.4} parent=11 // pred_fallthru
        _
      // Predicated region
      $region21: #{decoder_layer.4} parent=11 // pred_check
        %p354 = pneg %p160
      $region22: #{decoder_layer.4} parent=11 // pred_check_branch
        %356 = sbr.rel (%p354) target = $region24
      $region23: #{decoder_layer.4} parent=11 // pred_region
        _
      $region24: #{decoder_layer.4} parent=11 // pred_fallthru
        _
      // Predicated region
      $region25: #{decoder_layer.4} parent=11 // pred_check
        %p357 = pneg %p181
      $region26: #{decoder_layer.4} parent=11 // pred_check_branch
        %359 = sbr.rel (%p357) target = $region28
      $region27: #{decoder_layer.4} parent=11 // pred_region
        _
      $region28: #{decoder_layer.4} parent=11 // pred_fallthru
        _
      // Predicated region
      $region29: #{decoder_layer.4} parent=11 // pred_check
        %p360 = pneg %p202
      $region30: #{decoder_layer.4} parent=11 // pred_check_branch
        %362 = sbr.rel (%p360) target = $region32
      $region31: #{decoder_layer.4} parent=11 // pred_region
        _
      $region32: #{decoder_layer.4} parent=11 // pred_fallthru
        _
      // Predicated region
      $region33: #{decoder_layer.4} parent=11 // pred_check
        %p363 = pneg %p223
      $region34: #{decoder_layer.4} parent=11 // pred_check_branch
        %365 = sbr.rel (%p363) target = $region36
      $region35: #{decoder_layer.4} parent=11 // pred_region
        _
      $region36: #{decoder_layer.4} parent=11 // pred_fallthru
        _
      // Predicated region
      $region37: #{decoder_layer.4} parent=11 // pred_check
        %p366 = pneg %p244
      $region38: #{decoder_layer.4} parent=11 // pred_check_branch
        %368 = sbr.rel (%p366) target = $region40
      $region39: #{decoder_layer.4} parent=11 // pred_region
        _
      $region40: #{decoder_layer.4} parent=11 // pred_fallthru
        _
      // Predicated region
      $region41: #{decoder_layer.4} parent=11 // pred_check
        %p369 = pneg %p265
      $region42: #{decoder_layer.4} parent=11 // pred_check_branch
        %371 = sbr.rel (%p369) target = $region44
      $region43: #{decoder_layer.4} parent=11 // pred_region
        _
      $region44: #{decoder_layer.4} parent=11 // pred_fallthru
        _
      // Predicated region
      $region45: #{decoder_layer.4} parent=11 // pred_check
        %p372 = pneg %p286
      $region46: #{decoder_layer.4} parent=11 // pred_check_branch
        %374 = sbr.rel (%p372) target = $region48
      $region47: #{decoder_layer.4} parent=11 // pred_region
        _
      $region48: #{decoder_layer.4} parent=11 // pred_fallthru
        _
      // Predicated region
      $region49: #{decoder_layer.4} parent=11 // pred_check
        %p375 = pneg %p307
      $region50: #{decoder_layer.4} parent=11 // pred_check_branch
        %377 = sbr.rel (%p375) target = $region52
      $region51: #{decoder_layer.4} parent=11 // pred_region
        _
      $region52: #{decoder_layer.4} parent=11 // pred_fallthru
        _
    $region12: #{decoder_layer.4} parent=5 // pred_fallthru
      _
    %p378 = scmp.lt.s32.totalorder %s19, 2
    // Predicated region
    $region53: #{decoder_layer.4} parent=5 // pred_check
      %p379 = pneg %p378
    $region54: #{decoder_layer.4} parent=5 // pred_check_branch
      %381 = sbr.rel (%p379) target = $region56
    $region55: #{decoder_layer.4} parent=5 // pred_region
      // Predicated region
      $region57: #{decoder_layer.4} parent=55 // pred_check
        %p382 = pneg %p39
      $region58: #{decoder_layer.4} parent=55 // pred_check_branch
        %384 = sbr.rel (%p382) target = $region60
      $region59: #{decoder_layer.4} parent=55 // pred_region
        %p385 = scmp.lt.s32.totalorder %s19, 1
        %s386 = scalar_select %p385, %s19, 1
        %s387 = smul.addr %s386, 8
        %s388 = scalar_lea.vmem %s0, %s387
      $region60: #{decoder_layer.4} parent=55 // pred_fallthru
        _
      // Predicated region
      $region61: #{decoder_layer.4} parent=55 // pred_check
        %p389 = pneg %p65
      $region62: #{decoder_layer.4} parent=55 // pred_check_branch
        %391 = sbr.rel (%p389) target = $region64
      $region63: #{decoder_layer.4} parent=55 // pred_region
        %p392 = scmp.lt.s32.totalorder %s19, 1
        %s393 = scalar_select %p392, %s19, 1
        %s394 = smul.addr %s393, 2
        %s395 = smul.addr %s394, 8
        %s396 = scalar_lea.vmem %s1, %s395
      $region64: #{decoder_layer.4} parent=55 // pred_fallthru
        _
      // Predicated region
      $region65: #{decoder_layer.4} parent=55 // pred_check
        %p397 = pneg %p91
      $region66: #{decoder_layer.4} parent=55 // pred_check_branch
        %399 = sbr.rel (%p397) target = $region68
      $region67: #{decoder_layer.4} parent=55 // pred_region
        %p400 = scmp.lt.s32.totalorder %s19, 1
        %s401 = scalar_select %p400, %s19, 1
        %s402 = scalar_lea.vmem %s2, %s401
      $region68: #{decoder_layer.4} parent=55 // pred_fallthru
        _
    $region56: #{decoder_layer.4} parent=5 // pred_fallthru
      _
    %p403 = scmp.le.s32.totalorder 1, %s19
    %p404 = scmp.lt.s32.totalorder %s19, 3
    %p405 = pnand %p403, %p404
    %p406 = pneg %p405
    // Predicated region
    $region69: #{decoder_layer.4} parent=5 // pred_check
      _
    $region70: #{decoder_layer.4} parent=5 // pred_check_branch
      %408 = sbr.rel (%p405) target = $region72
    $region71: #{decoder_layer.4} parent=5 // pred_region
      %s409 = ssub.s32 %s19, 1
      %p410 = scmp.lt.s32.totalorder %s24, 1
      %s411 = scalar_select %p410, %s24, 1
      %s412 = smul.addr %s411, 8
      %s413 = scalar_lea.vmem %s0, %s412
      %p414 = pneg %p45
      %p415 = pneg %p42
      %p416 = scmp.lt.s32.totalorder %s24, 1
      %s417 = scalar_select %p416, %s24, 1
      %s418 = smul.addr %s417, 2
      %s419 = smul.addr %s418, 8
      %s420 = scalar_lea.vmem %s1, %s419
      %p421 = pneg %p71
      %p422 = pneg %p68
      %p423 = scmp.lt.s32.totalorder %s24, 1
      %s424 = scalar_select %p423, %s24, 1
      %s425 = scalar_lea.vmem %s2, %s424
      %p426 = pneg %p97
      %p427 = pneg %p94
      %p428 = pneg %p118
      %p429 = pneg %p115
      %p430 = pneg %p139
      %p431 = pneg %p136
      %p432 = pneg %p160
      %p433 = pneg %p157
      %p434 = pneg %p181
      %p435 = pneg %p178
      %p436 = pneg %p202
      %p437 = pneg %p199
      %p438 = pneg %p223
      %p439 = pneg %p220
      %p440 = pneg %p244
      %p441 = pneg %p241
      %p442 = pneg %p265
      %p443 = pneg %p262
      %p444 = pneg %p286
      %p445 = pneg %p283
      %p446 = pneg %p307
      %p447 = pneg %p304
      %p448 = pneg %p333
      %p449 = pneg %p330
      %p450 = scmp.lt.s32.totalorder %s24, 1
      %s451 = scalar_select %p450, %s24, 1
      %s452 = smul.addr %s451, 8
      %s453 = scalar_lea.vmem %s13, %s452
      %p454 = scmp.lt.s32.totalorder %s24, 1
      %s455 = scalar_select %p454, %s24, 1
      %s456 = smul.addr %s455, 8
      %s457 = scalar_lea.vmem %s0, %s456
      %p458 = scmp.lt.s32.totalorder %s24, 1
      %s459 = scalar_select %p458, %s24, 1
      %s460 = smul.addr %s459, 2
      %s461 = smul.addr %s460, 8
      %s462 = scalar_lea.vmem %s1, %s461
      %p463 = scmp.lt.s32.totalorder %s24, 1
      %s464 = scalar_select %p463, %s24, 1
      %s465 = scalar_lea.vmem %s2, %s464
      %p466 = scmp.lt.s32.totalorder %s24, 1
      %s467 = scalar_select %p466, %s24, 1
      %s468 = smul.addr %s467, 8
      %s469 = scalar_lea.vmem %s13, %s468
      %v470 = vld [vmem:[%s457] sm:$0xff]
      %v471 = vld [vmem:[%s462] sm:$0xff]
      %v472 = vld [vmem:[%s462 + $0x8] sm:$0xf]
      %v473 = vld [vmem:[%s465] sm:$0x1]
      %v474 = vld [vmem:[%s3] sm:$0x1]
      %v475 = vld [vmem:[%s4] sm:$0x1]
      %vm476 = vcmask 261120
      %v477 = vsel %vm476, %v470, 0.0
      %478 = vadd.xlane.f32.xlu0 %v477
      %v479 = vpop.xlane.xlu0 %478
      %v480 = vrcp.pop 32.0
      %v481 = vmul.f32 %v479, %v480
      %v482 = vsub.f32 %v470, %v481
      %v483 = vmul.f32 %v482, %v482
      %v484 = vsel %vm476, %v483, 0.0
      %485 = vadd.xlane.f32.xlu0 %v484
      %v486 = vpop.xlane.xlu0 %485
      %v487 = vrcp.pop 31.0
      %v488 = vmul.f32 %v486, %v487
      %v489 = vrsqrt.pop %v488
      %v490 = vmul.f32 %v488, %v489
      %vm491 = vcmp.eq.f32.partialorder %v488, inf
      %v492 = vsel %vm491, %v488, %v490
      %vm493 = vcmp.eq.f32.partialorder %v488, 0.0
      %v494 = vand.u32 %v488, 2147483648
      %v495 = vsel %vm493, %v494, %v492
      %v497 = vlaneseq
      %v498 = vshrl.u32 %v497, 7
      %v499 = vsub.s32 0, %v498
      %v500 = vrot.slane %v474, %v499
      %v502 = vmul.f32 %v500, %v482
      %v503 = vadd.f32 %v495, 1e-06
      %v504 = vrcp.pop %v503
      %v505 = vmul.f32 %v502, %v504
      %v507 = vlaneseq
      %v508 = vshrl.u32 %v507, 7
      %v509 = vsub.s32 0, %v508
      %v510 = vrot.slane %v475, %v509
      %v512 = vadd.f32 %v505, %v510
      %v513 = vld [vmem:[%s5] sm:$0xff]
      %v514 = vld [vmem:[%s5 + $0x8] sm:$0xff]
      %v515 = vld [vmem:[%s5 + $0x10] sm:$0xff]
      %v516 = vld [vmem:[%s5 + $0x18] sm:$0xff]
      %v517 = vld [vmem:[%s6] sm:$0x1]
      %v518 = vld [vmem:[%s7] sm:$0xff]
      %v519 = vld [vmem:[%s7 + $0x8] sm:$0xff]
      %v520 = vld [vmem:[%s7 + $0x10] sm:$0xff]
      %v521 = vld [vmem:[%s7 + $0x18] sm:$0xff]
      %v522 = vld [vmem:[%s8] sm:$0x1]
      %v523 = vld [vmem:[%s9] sm:$0xff]
      %v524 = vld [vmem:[%s9 + $0x8] sm:$0xff]
      %v525 = vld [vmem:[%s9 + $0x10] sm:$0xff]
      %v526 = vld [vmem:[%s9 + $0x18] sm:$0xff]
      %v527 = vld [vmem:[%s10] sm:$0x1]
      %v529 = vlaneseq
      %v530 = vshrl.u32 %v529, 7
      %v531 = vsub.s32 0, %v530
      %v532 = vrot.slane %v517, %v531
      %v535 = vsel %vm476, %v512, 0
      %537 = vmatprep.subr.mxu0 0.0
      %538 = vmatpush1.msra.mxu0 %v513
      %539 = vmatprep.subr.mxu0 0.0
      %540 = vmatpush1.msra.mxu0 %v514
      %541 = vmatprep.subr.mxu0 0.0
      %542 = vmatpush1.msra.mxu0 %v515
      %543 = vmatprep.subr.mxu0 0.0
      %544 = vmatpush1.msra.mxu0 %v516
      %545 = vmatprep.subr.mxu0 0.0
      %546 = vmatpush1.msra.mxu0 0.0
      %547 = vmatprep.subr.mxu0 0.0
      %548 = vmatpush1.msra.mxu0 0.0
      %549 = vmatprep.subr.mxu0 0.0
      %550 = vmatpush1.msra.mxu0 0.0
      %551 = vmatprep.subr.mxu0 0.0
      %552 = vmatpush1.msra.mxu0 0.0
      %553 = vmatprep.subr.mxu0 0.0
      %554 = vmatpush1.msra.mxu0 0.0
      %555 = vmatprep.subr.mxu0 0.0
      %556 = vmatpush1.msra.mxu0 0.0
      %557 = vmatprep.subr.mxu0 0.0
      %558 = vmatpush1.msra.mxu0 0.0
      %559 = vmatprep.subr.mxu0 0.0
      %560 = vmatpush1.msra.mxu0 0.0
      %561 = vmatprep.subr.mxu0 0.0
      %562 = vmatpush1.msra.mxu0 0.0
      %563 = vmatprep.subr.mxu0 0.0
      %564 = vmatpush1.msra.mxu0 0.0
      %565 = vmatprep.subr.mxu0 0.0
      %566 = vmatpush1.msra.mxu0 0.0
      %567 = vmatprep.subr.mxu0 0.0
      %568 = vmatpush1.msra.mxu0 0.0
      %569 = vmatprep.subr.mxu0 0.0
      %570 = vmatpush1.msra.mxu0 0.0
      %571 = vmatprep.subr.mxu0 0.0
      %572 = vmatpush1.msra.mxu0 0.0
      %573 = vmatprep.subr.mxu0 0.0
      %574 = vmatpush1.msra.mxu0 0.0
      %575 = vmatprep.subr.mxu0 0.0
      %576 = vmatpush1.msra.mxu0 0.0
      %577 = vmatprep.subr.mxu0 0.0
      %578 = vmatpush1.msra.mxu0 0.0
      %579 = vmatprep.subr.mxu0 0.0
      %580 = vmatpush1.msra.mxu0 0.0
      %581 = vmatprep.subr.mxu0 0.0
      %582 = vmatpush1.msra.mxu0 0.0
      %583 = vmatprep.subr.mxu0 0.0
      %584 = vmatpush1.msra.mxu0 0.0
      %585 = vmatprep.subr.mxu0 0.0
      %586 = vmatpush1.msra.mxu0 0.0
      %587 = vmatprep.subr.mxu0 0.0
      %588 = vmatpush1.msra.mxu0 0.0
      %589 = vmatprep.subr.mxu0 0.0
      %590 = vmatpush1.msra.mxu0 0.0
      %591 = vmatprep.subr.mxu0 0.0
      %592 = vmatpush1.msra.mxu0 0.0
      %593 = vmatprep.subr.mxu0 0.0
      %594 = vmatpush1.msra.mxu0 0.0
      %595 = vmatprep.subr.mxu0 0.0
      %596 = vmatpush1.msra.mxu0 0.0
      %597 = vmatprep.subr.mxu0 0.0
      %598 = vmatpush1.msra.mxu0 0.0
      %599 = vmatprep.subr.mxu0 0.0
      %600 = vmatpush1.msra.mxu0 0.0
      %601 = vmatprep.mubr.f32.mxu0 0.0
      %602 = vmatmul.mubr.f32.gmra.mrb[0].mxu0 %v535
      %v603 = vpop.f32.mrb[0].mxu0
      %v604 = vadd.f32 %v532, %v603
      %v605 = vpop.f32.mrb[0].mxu0
      %606 = vdwg.mxu0
      %v608 = vlaneseq
      %v609 = vshrl.u32 %v608, 7
      %v610 = vsub.s32 0, %v609
      %v611 = vrot.slane %v522, %v610
      %v614 = vsel %vm476, %v471, 0
      %v617 = vsel %vm476, %v472, 0
      %619 = vmatprep.subr.mxu0 0.0
      %620 = vmatpush1.msra.mxu0 %v518
      %621 = vmatprep.subr.mxu0 0.0
      %622 = vmatpush1.msra.mxu0 %v519
      %623 = vmatprep.subr.mxu0 0.0
      %624 = vmatpush1.msra.mxu0 %v520
      %625 = vmatprep.subr.mxu0 0.0
      %626 = vmatpush1.msra.mxu0 %v521
      %627 = vmatprep.subr.mxu0 0.0
      %628 = vmatpush1.msra.mxu0 0.0
      %629 = vmatprep.subr.mxu0 0.0
      %630 = vmatpush1.msra.mxu0 0.0
      %631 = vmatprep.subr.mxu0 0.0
      %632 = vmatpush1.msra.mxu0 0.0
      %633 = vmatprep.subr.mxu0 0.0
      %634 = vmatpush1.msra.mxu0 0.0
      %635 = vmatprep.subr.mxu0 0.0
      %636 = vmatpush1.msra.mxu0 0.0
      %637 = vmatprep.subr.mxu0 0.0
      %638 = vmatpush1.msra.mxu0 0.0
      %639 = vmatprep.subr.mxu0 0.0
      %640 = vmatpush1.msra.mxu0 0.0
      %641 = vmatprep.subr.mxu0 0.0
      %642 = vmatpush1.msra.mxu0 0.0
      %643 = vmatprep.subr.mxu0 0.0
      %644 = vmatpush1.msra.mxu0 0.0
      %645 = vmatprep.subr.mxu0 0.0
      %646 = vmatpush1.msra.mxu0 0.0
      %647 = vmatprep.subr.mxu0 0.0
      %648 = vmatpush1.msra.mxu0 0.0
      %649 = vmatprep.subr.mxu0 0.0
      %650 = vmatpush1.msra.mxu0 0.0
      %651 = vmatprep.subr.mxu0 0.0
      %652 = vmatpush1.msra.mxu0 0.0
      %653 = vmatprep.subr.mxu0 0.0
      %654 = vmatpush1.msra.mxu0 0.0
      %655 = vmatprep.subr.mxu0 0.0
      %656 = vmatpush1.msra.mxu0 0.0
      %657 = vmatprep.subr.mxu0 0.0
      %658 = vmatpush1.msra.mxu0 0.0
      %659 = vmatprep.subr.mxu0 0.0
      %660 = vmatpush1.msra.mxu0 0.0
      %661 = vmatprep.subr.mxu0 0.0
      %662 = vmatpush1.msra.mxu0 0.0
      %663 = vmatprep.subr.mxu0 0.0
      %664 = vmatpush1.msra.mxu0 0.0
      %665 = vmatprep.subr.mxu0 0.0
      %666 = vmatpush1.msra.mxu0 0.0
      %667 = vmatprep.subr.mxu0 0.0
      %668 = vmatpush1.msra.mxu0 0.0
      %669 = vmatprep.subr.mxu0 0.0
      %670 = vmatpush1.msra.mxu0 0.0
      %671 = vmatprep.subr.mxu0 0.0
      %672 = vmatpush1.msra.mxu0 0.0
      %673 = vmatprep.subr.mxu0 0.0
      %674 = vmatpush1.msra.mxu0 0.0
      %675 = vmatprep.subr.mxu0 0.0
      %676 = vmatpush1.msra.mxu0 0.0
      %677 = vmatprep.subr.mxu0 0.0
      %678 = vmatpush1.msra.mxu0 0.0
      %679 = vmatprep.subr.mxu0 0.0
      %680 = vmatpush1.msra.mxu0 0.0
      %681 = vmatprep.subr.mxu0 0.0
      %682 = vmatpush1.msra.mxu0 0.0
      %683 = vmatprep.mubr.f32.mxu0 0.0
      %684 = vmatmul.mubr.f32.gmra.mrb[0].mxu0 %v614
      %v685 = vpop.f32.mrb[0].mxu0
      %v686 = vadd.f32 %v611, %v685
      %v687 = vpop.f32.mrb[0].mxu0
      %688 = vmatprep.mubr.f32.mxu0 0.0
      %689 = vmatmul.mubr.f32.gmra.mrb[0].mxu0 %v617
      %v690 = vpop.f32.mrb[0].mxu0
      %v691 = vadd.f32 %v611, %v690
      %v692 = vpop.f32.mrb[0].mxu0
      %693 = vdwg.mxu0
      %v695 = vlaneseq
      %v696 = vshrl.u32 %v695, 7
      %v697 = vsub.s32 0, %v696
      %v698 = vrot.slane %v527, %v697
      %700 = vmatprep.subr.mxu0 0.0
      %701 = vmatpush1.msra.mxu0 %v523
      %702 = vmatprep.subr.mxu0 0.0
      %703 = vmatpush1.msra.mxu0 %v524
      %704 = vmatprep.subr.mxu0 0.0
      %705 = vmatpush1.msra.mxu0 %v525
      %706 = vmatprep.subr.mxu0 0.0
      %707 = vmatpush1.msra.mxu0 %v526
      %708 = vmatprep.subr.mxu0 0.0
      %709 = vmatpush1.msra.mxu0 0.0
      %710 = vmatprep.subr.mxu0 0.0
      %711 = vmatpush1.msra.mxu0 0.0
      %712 = vmatprep.subr.mxu0 0.0
      %713 = vmatpush1.msra.mxu0 0.0
      %714 = vmatprep.subr.mxu0 0.0
      %715 = vmatpush1.msra.mxu0 0.0
      %716 = vmatprep.subr.mxu0 0.0
      %717 = vmatpush1.msra.mxu0 0.0
      %718 = vmatprep.subr.mxu0 0.0
      %719 = vmatpush1.msra.mxu0 0.0
      %720 = vmatprep.subr.mxu0 0.0
      %721 = vmatpush1.msra.mxu0 0.0
      %722 = vmatprep.subr.mxu0 0.0
      %723 = vmatpush1.msra.mxu0 0.0
      %724 = vmatprep.subr.mxu0 0.0
      %725 = vmatpush1.msra.mxu0 0.0
      %726 = vmatprep.subr.mxu0 0.0
      %727 = vmatpush1.msra.mxu0 0.0
      %728 = vmatprep.subr.mxu0 0.0
      %729 = vmatpush1.msra.mxu0 0.0
      %730 = vmatprep.subr.mxu0 0.0
      %731 = vmatpush1.msra.mxu0 0.0
      %732 = vmatprep.subr.mxu0 0.0
      %733 = vmatpush1.msra.mxu0 0.0
      %734 = vmatprep.subr.mxu0 0.0
      %735 = vmatpush1.msra.mxu0 0.0
      %736 = vmatprep.subr.mxu0 0.0
      %737 = vmatpush1.msra.mxu0 0.0
      %738 = vmatprep.subr.mxu0 0.0
      %739 = vmatpush1.msra.mxu0 0.0
      %740 = vmatprep.subr.mxu0 0.0
      %741 = vmatpush1.msra.mxu0 0.0
      %742 = vmatprep.subr.mxu0 0.0
      %743 = vmatpush1.msra.mxu0 0.0
      %744 = vmatprep.subr.mxu0 0.0
      %745 = vmatpush1.msra.mxu0 0.0
      %746 = vmatprep.subr.mxu0 0.0
      %747 = vmatpush1.msra.mxu0 0.0
      %748 = vmatprep.subr.mxu0 0.0
      %749 = vmatpush1.msra.mxu0 0.0
      %750 = vmatprep.subr.mxu0 0.0
      %751 = vmatpush1.msra.mxu0 0.0
      %752 = vmatprep.subr.mxu0 0.0
      %753 = vmatpush1.msra.mxu0 0.0
      %754 = vmatprep.subr.mxu0 0.0
      %755 = vmatpush1.msra.mxu0 0.0
      %756 = vmatprep.subr.mxu0 0.0
      %757 = vmatpush1.msra.mxu0 0.0
      %758 = vmatprep.subr.mxu0 0.0
      %759 = vmatpush1.msra.mxu0 0.0
      %760 = vmatprep.subr.mxu0 0.0
      %761 = vmatpush1.msra.mxu0 0.0
      %762 = vmatprep.subr.mxu0 0.0
      %763 = vmatpush1.msra.mxu0 0.0
      %764 = vmatprep.mubr.f32.mxu0 0.0
      %765 = vmatmul.mubr.f32.gmra.mrb[0].mxu0 %v614
      %v766 = vpop.f32.mrb[0].mxu0
      %v767 = vadd.f32 %v698, %v766
      %v768 = vpop.f32.mrb[0].mxu0
      %769 = vmatprep.mubr.f32.mxu0 0.0
      %770 = vmatmul.mubr.f32.gmra.mrb[0].mxu0 %v617
      %v771 = vpop.f32.mrb[0].mxu0
      %v772 = vadd.f32 %v698, %v771
      %v773 = vpop.f32.mrb[0].mxu0
      %774 = vdwg.mxu0
      %vm775 = vcmask 64512
      %v777 = vsel %vm775, %v604, 0
      %v780 = vsel %vm775, %v686, 0
      %v783 = vsel %vm775, %v691, 0
      %785 = vmatprep.subr.mxu0 0.0
      %786 = vmatpush1.xpose.msra.mxu0 %v780
      %787 = vmatprep.subr.mxu0 0.0
      %788 = vmatpush1.xpose.msra.mxu0 %v783
      %789 = vmatprep.subr.mxu0 0.0
      %790 = vmatpush1.xpose.msra.mxu0 0.0
      %791 = vmatprep.subr.mxu0 0.0
      %792 = vmatpush1.xpose.msra.mxu0 0.0
      %793 = vmatprep.subr.mxu0 0.0
      %794 = vmatpush1.xpose.msra.mxu0 0.0
      %795 = vmatprep.subr.mxu0 0.0
      %796 = vmatpush1.xpose.msra.mxu0 0.0
      %797 = vmatprep.subr.mxu0 0.0
      %798 = vmatpush1.xpose.msra.mxu0 0.0
      %799 = vmatprep.subr.mxu0 0.0
      %800 = vmatpush1.xpose.msra.mxu0 0.0
      %801 = vmatprep.subr.mxu0 0.0
      %802 = vmatpush1.xpose.msra.mxu0 0.0
      %803 = vmatprep.subr.mxu0 0.0
      %804 = vmatpush1.xpose.msra.mxu0 0.0
      %805 = vmatprep.subr.mxu0 0.0
      %806 = vmatpush1.xpose.msra.mxu0 0.0
      %807 = vmatprep.subr.mxu0 0.0
      %808 = vmatpush1.xpose.msra.mxu0 0.0
      %809 = vmatprep.subr.mxu0 0.0
      %810 = vmatpush1.xpose.msra.mxu0 0.0
      %811 = vmatprep.subr.mxu0 0.0
      %812 = vmatpush1.xpose.msra.mxu0 0.0
      %813 = vmatprep.subr.mxu0 0.0
      %814 = vmatpush1.xpose.msra.mxu0 0.0
      %815 = vmatprep.subr.mxu0 0.0
      %816 = vmatpush1.xpose.msra.mxu0 0.0
      %817 = vmatprep.subr.mxu0 0.0
      %818 = vmatpush1.xpose.msra.mxu0 0.0
      %819 = vmatprep.subr.mxu0 0.0
      %820 = vmatpush1.xpose.msra.mxu0 0.0
      %821 = vmatprep.subr.mxu0 0.0
      %822 = vmatpush1.xpose.msra.mxu0 0.0
      %823 = vmatprep.subr.mxu0 0.0
      %824 = vmatpush1.xpose.msra.mxu0 0.0
      %825 = vmatprep.subr.mxu0 0.0
      %826 = vmatpush1.xpose.msra.mxu0 0.0
      %827 = vmatprep.subr.mxu0 0.0
      %828 = vmatpush1.xpose.msra.mxu0 0.0
      %829 = vmatprep.subr.mxu0 0.0
      %830 = vmatpush1.xpose.msra.mxu0 0.0
      %831 = vmatprep.subr.mxu0 0.0
      %832 = vmatpush1.xpose.msra.mxu0 0.0
      %833 = vmatprep.subr.mxu0 0.0
      %834 = vmatpush1.xpose.msra.mxu0 0.0
      %835 = vmatprep.subr.mxu0 0.0
      %836 = vmatpush1.xpose.msra.mxu0 0.0
      %837 = vmatprep.subr.mxu0 0.0
      %838 = vmatpush1.xpose.msra.mxu0 0.0
      %839 = vmatprep.subr.mxu0 0.0
      %840 = vmatpush1.xpose.msra.mxu0 0.0
      %841 = vmatprep.subr.mxu0 0.0
      %842 = vmatpush1.xpose.msra.mxu0 0.0
      %843 = vmatprep.subr.mxu0 0.0
      %844 = vmatpush1.xpose.msra.mxu0 0.0
      %845 = vmatprep.subr.mxu0 0.0
      %846 = vmatpush1.xpose.msra.mxu0 0.0
      %847 = vmatprep.subr.mxu0 0.0
      %848 = vmatpush1.xpose.msra.mxu0 0.0
      %849 = vmatprep.mubr.f32.mxu0 0.0
      %850 = vmatmul.mubr.f32.gmra.mrb[0].mxu0 %v777
      %v851 = vpop.f32.mrb[0].mxu0
      %v852 = vadd.f32 0.0, %v851
      %v853 = vpop.f32.mrb[0].mxu0
      %854 = vdwg.mxu0
      %v855 = vmul.f32 %v852, 0.35355338
      %vm856 = vcmp.gt.f32.partialorder %v473, 0.0
      %v857 = vsel %vm856, 1, 0
      %v858 = vlaneseq
      %v859 = vshrl.u32 %v858, 7
      %v860 = vsub.s32 0, %v859
      %v861 = vrot.slane %v857, %v860
      %vm862 = vcmp.eq.s32.totalorder %v861, 1
      %v863 = vsel %vm862, %v855, -1e+09
      %vm864 = vcmask 97280
      %v865 = vsel %vm864, %v863, -inf
      %866 = vmax.xlane.f32.xlu0 %v865
      %v867 = vpop.xlane.xlu0 %866
      %v868 = vsub.f32 %v863, %v867
      %v869 = vmul.f32 %v868, 1.442695
      %v870 = vpow.pop %v869
      %v871 = vsel %vm864, %v870, 0.0
      %872 = vadd.xlane.f32.xlu0 %v871
      %v873 = vpop.xlane.xlu0 %872
      %v874 = vrcp.pop %v873
      %v875 = vmul.f32 %v870, %v874
      %v877 = vsel %vm864, %v875, 0
      %vm879 = vcmask 1043456
      %v881 = vsel %vm879, %v772, 0
      %883 = vmatprep.subr.mxu0 0.0
      %884 = vmatpush1.msra.mxu0 %v767
      %885 = vmatprep.subr.mxu0 0.0
      %886 = vmatpush1.msra.mxu0 %v881
      %887 = vmatprep.subr.mxu0 0.0
      %888 = vmatpush1.msra.mxu0 0.0
      %889 = vmatprep.subr.mxu0 0.0
      %890 = vmatpush1.msra.mxu0 0.0
      %891 = vmatprep.subr.mxu0 0.0
      %892 = vmatpush1.msra.mxu0 0.0
      %893 = vmatprep.subr.mxu0 0.0
      %894 = vmatpush1.msra.mxu0 0.0
      %895 = vmatprep.subr.mxu0 0.0
      %896 = vmatpush1.msra.mxu0 0.0
      %897 = vmatprep.subr.mxu0 0.0
      %898 = vmatpush1.msra.mxu0 0.0
      %899 = vmatprep.subr.mxu0 0.0
      %900 = vmatpush1.msra.mxu0 0.0
      %901 = vmatprep.subr.mxu0 0.0
      %902 = vmatpush1.msra.mxu0 0.0
      %903 = vmatprep.subr.mxu0 0.0
      %904 = vmatpush1.msra.mxu0 0.0
      %905 = vmatprep.subr.mxu0 0.0
      %906 = vmatpush1.msra.mxu0 0.0
      %907 = vmatprep.subr.mxu0 0.0
      %908 = vmatpush1.msra.mxu0 0.0
      %909 = vmatprep.subr.mxu0 0.0
      %910 = vmatpush1.msra.mxu0 0.0
      %911 = vmatprep.subr.mxu0 0.0
      %912 = vmatpush1.msra.mxu0 0.0
      %913 = vmatprep.subr.mxu0 0.0
      %914 = vmatpush1.msra.mxu0 0.0
      %915 = vmatprep.subr.mxu0 0.0
      %916 = vmatpush1.msra.mxu0 0.0
      %917 = vmatprep.subr.mxu0 0.0
      %918 = vmatpush1.msra.mxu0 0.0
      %919 = vmatprep.subr.mxu0 0.0
      %920 = vmatpush1.msra.mxu0 0.0
      %921 = vmatprep.subr.mxu0 0.0
      %922 = vmatpush1.msra.mxu0 0.0
      %923 = vmatprep.subr.mxu0 0.0
      %924 = vmatpush1.msra.mxu0 0.0
      %925 = vmatprep.subr.mxu0 0.0
      %926 = vmatpush1.msra.mxu0 0.0
      %927 = vmatprep.subr.mxu0 0.0
      %928 = vmatpush1.msra.mxu0 0.0
      %929 = vmatprep.subr.mxu0 0.0
      %930 = vmatpush1.msra.mxu0 0.0
      %931 = vmatprep.subr.mxu0 0.0
      %932 = vmatpush1.msra.mxu0 0.0
      %933 = vmatprep.subr.mxu0 0.0
      %934 = vmatpush1.msra.mxu0 0.0
      %935 = vmatprep.subr.mxu0 0.0
      %936 = vmatpush1.msra.mxu0 0.0
      %937 = vmatprep.subr.mxu0 0.0
      %938 = vmatpush1.msra.mxu0 0.0
      %939 = vmatprep.subr.mxu0 0.0
      %940 = vmatpush1.msra.mxu0 0.0
      %941 = vmatprep.subr.mxu0 0.0
      %942 = vmatpush1.msra.mxu0 0.0
      %943 = vmatprep.subr.mxu0 0.0
      %944 = vmatpush1.msra.mxu0 0.0
      %945 = vmatprep.subr.mxu0 0.0
      %946 = vmatpush1.msra.mxu0 0.0
      %947 = vmatprep.mubr.f32.mxu0 0.0
      %948 = vmatmul.mubr.f32.gmra.mrb[0].mxu0 %v877
      %v949 = vpop.f32.mrb[0].mxu0
      %v950 = vadd.f32 0.0, %v949
      %v951 = vpop.f32.mrb[0].mxu0
      %952 = vdwg.mxu0
      %953 = vst.msk [vmem:[#allocation2] sm:$0xff] %vm775, %v950
      %954 = vrot.lane.b32.xlu0 %v604, 120
      %v955 = vpop.permute.xlu0 %954
      %956 = vrot.lane.b32.xlu0 %v686, 120
      %v957 = vpop.permute.xlu0 %956
      %958 = vrot.lane.b32.xlu0 %v691, 120
      %v959 = vpop.permute.xlu0 %958
      %v960 = vsel %vm775, %v955, 0
      %v962 = vsel %vm775, %v957, 0
      %v964 = vsel %vm775, %v959, 0
      %966 = vmatprep.subr.mxu0 0.0
      %967 = vmatpush1.xpose.msra.mxu0 %v962
      %968 = vmatprep.subr.mxu0 0.0
      %969 = vmatpush1.xpose.msra.mxu0 %v964
      %970 = vmatprep.subr.mxu0 0.0
      %971 = vmatpush1.xpose.msra.mxu0 0.0
      %972 = vmatprep.subr.mxu0 0.0
      %973 = vmatpush1.xpose.msra.mxu0 0.0
      %974 = vmatprep.subr.mxu0 0.0
      %975 = vmatpush1.xpose.msra.mxu0 0.0
      %976 = vmatprep.subr.mxu0 0.0
      %977 = vmatpush1.xpose.msra.mxu0 0.0
      %978 = vmatprep.subr.mxu0 0.0
      %979 = vmatpush1.xpose.msra.mxu0 0.0
      %980 = vmatprep.subr.mxu0 0.0
      %981 = vmatpush1.xpose.msra.mxu0 0.0
      %982 = vmatprep.subr.mxu0 0.0
      %983 = vmatpush1.xpose.msra.mxu0 0.0
      %984 = vmatprep.subr.mxu0 0.0
      %985 = vmatpush1.xpose.msra.mxu0 0.0
      %986 = vmatprep.subr.mxu0 0.0
      %987 = vmatpush1.xpose.msra.mxu0 0.0
      %988 = vmatprep.subr.mxu0 0.0
      %989 = vmatpush1.xpose.msra.mxu0 0.0
      %990 = vmatprep.subr.mxu0 0.0
      %991 = vmatpush1.xpose.msra.mxu0 0.0
      %992 = vmatprep.subr.mxu0 0.0
      %993 = vmatpush1.xpose.msra.mxu0 0.0
      %994 = vmatprep.subr.mxu0 0.0
      %995 = vmatpush1.xpose.msra.mxu0 0.0
      %996 = vmatprep.subr.mxu0 0.0
      %997 = vmatpush1.xpose.msra.mxu0 0.0
      %998 = vmatprep.subr.mxu0 0.0
      %999 = vmatpush1.xpose.msra.mxu0 0.0
      %1000 = vmatprep.subr.mxu0 0.0
      %1001 = vmatpush1.xpose.msra.mxu0 0.0
      %1002 = vmatprep.subr.mxu0 0.0
      %1003 = vmatpush1.xpose.msra.mxu0 0.0
      %1004 = vmatprep.subr.mxu0 0.0
      %1005 = vmatpush1.xpose.msra.mxu0 0.0
      %1006 = vmatprep.subr.mxu0 0.0
      %1007 = vmatpush1.xpose.msra.mxu0 0.0
      %1008 = vmatprep.subr.mxu0 0.0
      %1009 = vmatpush1.xpose.msra.mxu0 0.0
      %1010 = vmatprep.subr.mxu0 0.0
      %1011 = vmatpush1.xpose.msra.mxu0 0.0
      %1012 = vmatprep.subr.mxu0 0.0
      %1013 = vmatpush1.xpose.msra.mxu0 0.0
      %1014 = vmatprep.subr.mxu0 0.0
      %1015 = vmatpush1.xpose.msra.mxu0 0.0
      %1016 = vmatprep.subr.mxu0 0.0
      %1017 = vmatpush1.xpose.msra.mxu0 0.0
      %1018 = vmatprep.subr.mxu0 0.0
      %1019 = vmatpush1.xpose.msra.mxu0 0.0
      %1020 = vmatprep.subr.mxu0 0.0
      %1021 = vmatpush1.xpose.msra.mxu0 0.0
      %1022 = vmatprep.subr.mxu0 0.0
      %1023 = vmatpush1.xpose.msra.mxu0 0.0
      %1024 = vmatprep.subr.mxu0 0.0
      %1025 = vmatpush1.xpose.msra.mxu0 0.0
      %1026 = vmatprep.subr.mxu0 0.0
      %1027 = vmatpush1.xpose.msra.mxu0 0.0
      %1028 = vmatprep.subr.mxu0 0.0
      %1029 = vmatpush1.xpose.msra.mxu0 0.0
      %1030 = vmatprep.mubr.f32.mxu0 0.0
      %1031 = vmatmul.mubr.f32.gmra.mrb[0].mxu0 %v960
      %v1032 = vpop.f32.mrb[0].mxu0
      %v1033 = vadd.f32 0.0, %v1032
      %v1034 = vpop.f32.mrb[0].mxu0
      %1035 = vdwg.mxu0
      %v1036 = vmul.f32 %v1033, 0.35355338
      %v1037 = vsel %vm862, %v1036, -1e+09
      %v1038 = vsel %vm864, %v1037, -inf
      %1039 = vmax.xlane.f32.xlu0 %v1038
      %v1040 = vpop.xlane.xlu0 %1039
      %v1041 = vsub.f32 %v1037, %v1040
      %v1042 = vmul.f32 %v1041, 1.442695
      %v1043 = vpow.pop %v1042
      %v1044 = vsel %vm864, %v1043, 0.0
      %1045 = vadd.xlane.f32.xlu0 %v1044
      %v1046 = vpop.xlane.xlu0 %1045
      %v1047 = vrcp.pop %v1046
      %v1048 = vmul.f32 %v1043, %v1047
      %1050 = vrot.lane.b32.xlu0 %v767, 120
      %v1051 = vpop.permute.xlu0 %1050
      %1052 = vrot.lane.b32.xlu0 %v772, 120
      %v1053 = vpop.permute.xlu0 %1052
      %v1056 = vsel %vm864, %v1048, 0
      %v1058 = vsel %vm879, %v1053, 0
      %1060 = vmatprep.subr.mxu0 0.0
      %1061 = vmatpush1.msra.mxu0 %v1051
      %1062 = vmatprep.subr.mxu0 0.0
      %1063 = vmatpush1.msra.mxu0 %v1058
      %1064 = vmatprep.subr.mxu0 0.0
      %1065 = vmatpush1.msra.mxu0 0.0
      %1066 = vmatprep.subr.mxu0 0.0
      %1067 = vmatpush1.msra.mxu0 0.0
      %1068 = vmatprep.subr.mxu0 0.0
      %1069 = vmatpush1.msra.mxu0 0.0
      %1070 = vmatprep.subr.mxu0 0.0
      %1071 = vmatpush1.msra.mxu0 0.0
      %1072 = vmatprep.subr.mxu0 0.0
      %1073 = vmatpush1.msra.mxu0 0.0
      %1074 = vmatprep.subr.mxu0 0.0
      %1075 = vmatpush1.msra.mxu0 0.0
      %1076 = vmatprep.subr.mxu0 0.0
      %1077 = vmatpush1.msra.mxu0 0.0
      %1078 = vmatprep.subr.mxu0 0.0
      %1079 = vmatpush1.msra.mxu0 0.0
      %1080 = vmatprep.subr.mxu0 0.0
      %1081 = vmatpush1.msra.mxu0 0.0
      %1082 = vmatprep.subr.mxu0 0.0
      %1083 = vmatpush1.msra.mxu0 0.0
      %1084 = vmatprep.subr.mxu0 0.0
      %1085 = vmatpush1.msra.mxu0 0.0
      %1086 = vmatprep.subr.mxu0 0.0
      %1087 = vmatpush1.msra.mxu0 0.0
      %1088 = vmatprep.subr.mxu0 0.0
      %1089 = vmatpush1.msra.mxu0 0.0
      %1090 = vmatprep.subr.mxu0 0.0
      %1091 = vmatpush1.msra.mxu0 0.0
      %1092 = vmatprep.subr.mxu0 0.0
      %1093 = vmatpush1.msra.mxu0 0.0
      %1094 = vmatprep.subr.mxu0 0.0
      %1095 = vmatpush1.msra.mxu0 0.0
      %1096 = vmatprep.subr.mxu0 0.0
      %1097 = vmatpush1.msra.mxu0 0.0
      %1098 = vmatprep.subr.mxu0 0.0
      %1099 = vmatpush1.msra.mxu0 0.0
      %1100 = vmatprep.subr.mxu0 0.0
      %1101 = vmatpush1.msra.mxu0 0.0
      %1102 = vmatprep.subr.mxu0 0.0
      %1103 = vmatpush1.msra.mxu0 0.0
      %1104 = vmatprep.subr.mxu0 0.0
      %1105 = vmatpush1.msra.mxu0 0.0
      %1106 = vmatprep.subr.mxu0 0.0
      %1107 = vmatpush1.msra.mxu0 0.0
      %1108 = vmatprep.subr.mxu0 0.0
      %1109 = vmatpush1.msra.mxu0 0.0
      %1110 = vmatprep.subr.mxu0 0.0
      %1111 = vmatpush1.msra.mxu0 0.0
      %1112 = vmatprep.subr.mxu0 0.0
      %1113 = vmatpush1.msra.mxu0 0.0
      %1114 = vmatprep.subr.mxu0 0.0
      %1115 = vmatpush1.msra.mxu0 0.0
      %1116 = vmatprep.subr.mxu0 0.0
      %1117 = vmatpush1.msra.mxu0 0.0
      %1118 = vmatprep.subr.mxu0 0.0
      %1119 = vmatpush1.msra.mxu0 0.0
      %1120 = vmatprep.subr.mxu0 0.0
      %1121 = vmatpush1.msra.mxu0 0.0
      %1122 = vmatprep.subr.mxu0 0.0
      %1123 = vmatpush1.msra.mxu0 0.0
      %1124 = vmatprep.mubr.f32.mxu0 0.0
      %1125 = vmatmul.mubr.f32.gmra.mrb[0].mxu0 %v1056
      %v1126 = vpop.f32.mrb[0].mxu0
      %v1127 = vadd.f32 0.0, %v1126
      %v1128 = vpop.f32.mrb[0].mxu0
      %1129 = vdwg.mxu0
      %1131 = vrot.lane.b32.xlu0 %v1127, 8
      %v1132 = vpop.permute.xlu0 %1131
      %vm1134 = vcmask 130112
      %1135 = vst.msk [vmem:[#allocation2] sm:$0xff] %vm1134, %v1132
      %1136 = vrot.lane.b32.xlu0 %v604, 112
      %v1137 = vpop.permute.xlu0 %1136
      %1138 = vrot.lane.b32.xlu0 %v686, 112
      %v1139 = vpop.permute.xlu0 %1138
      %1140 = vrot.lane.b32.xlu0 %v691, 112
      %v1141 = vpop.permute.xlu0 %1140
      %v1142 = vsel %vm775, %v1137, 0
      %v1144 = vsel %vm775, %v1139, 0
      %v1146 = vsel %vm775, %v1141, 0
      %1148 = vmatprep.subr.mxu0 0.0
      %1149 = vmatpush1.xpose.msra.mxu0 %v1144
      %1150 = vmatprep.subr.mxu0 0.0
      %1151 = vmatpush1.xpose.msra.mxu0 %v1146
      %1152 = vmatprep.subr.mxu0 0.0
      %1153 = vmatpush1.xpose.msra.mxu0 0.0
      %1154 = vmatprep.subr.mxu0 0.0
      %1155 = vmatpush1.xpose.msra.mxu0 0.0
      %1156 = vmatprep.subr.mxu0 0.0
      %1157 = vmatpush1.xpose.msra.mxu0 0.0
      %1158 = vmatprep.subr.mxu0 0.0
      %1159 = vmatpush1.xpose.msra.mxu0 0.0
      %1160 = vmatprep.subr.mxu0 0.0
      %1161 = vmatpush1.xpose.msra.mxu0 0.0
      %1162 = vmatprep.subr.mxu0 0.0
      %1163 = vmatpush1.xpose.msra.mxu0 0.0
      %1164 = vmatprep.subr.mxu0 0.0
      %1165 = vmatpush1.xpose.msra.mxu0 0.0
      %1166 = vmatprep.subr.mxu0 0.0
      %1167 = vmatpush1.xpose.msra.mxu0 0.0
      %1168 = vmatprep.subr.mxu0 0.0
      %1169 = vmatpush1.xpose.msra.mxu0 0.0
      %1170 = vmatprep.subr.mxu0 0.0
      %1171 = vmatpush1.xpose.msra.mxu0 0.0
      %1172 = vmatprep.subr.mxu0 0.0
      %1173 = vmatpush1.xpose.msra.mxu0 0.0
      %1174 = vmatprep.subr.mxu0 0.0
      %1175 = vmatpush1.xpose.msra.mxu0 0.0
      %1176 = vmatprep.subr.mxu0 0.0
      %1177 = vmatpush1.xpose.msra.mxu0 0.0
      %1178 = vmatprep.subr.mxu0 0.0
      %1179 = vmatpush1.xpose.msra.mxu0 0.0
      %1180 = vmatprep.subr.mxu0 0.0
      %1181 = vmatpush1.xpose.msra.mxu0 0.0
      %1182 = vmatprep.subr.mxu0 0.0
      %1183 = vmatpush1.xpose.msra.mxu0 0.0
      %1184 = vmatprep.subr.mxu0 0.0
      %1185 = vmatpush1.xpose.msra.mxu0 0.0
      %1186 = vmatprep.subr.mxu0 0.0
      %1187 = vmatpush1.xpose.msra.mxu0 0.0
      %1188 = vmatprep.subr.mxu0 0.0
      %1189 = vmatpush1.xpose.msra.mxu0 0.0
      %1190 = vmatprep.subr.mxu0 0.0
      %1191 = vmatpush1.xpose.msra.mxu0 0.0
      %1192 = vmatprep.subr.mxu0 0.0
      %1193 = vmatpush1.xpose.msra.mxu0 0.0
      %1194 = vmatprep.subr.mxu0 0.0
      %1195 = vmatpush1.xpose.msra.mxu0 0.0
      %1196 = vmatprep.subr.mxu0 0.0
      %1197 = vmatpush1.xpose.msra.mxu0 0.0
      %1198 = vmatprep.subr.mxu0 0.0
      %1199 = vmatpush1.xpose.msra.mxu0 0.0
      %1200 = vmatprep.subr.mxu0 0.0
      %1201 = vmatpush1.xpose.msra.mxu0 0.0
      %1202 = vmatprep.subr.mxu0 0.0
      %1203 = vmatpush1.xpose.msra.mxu0 0.0
      %1204 = vmatprep.subr.mxu0 0.0
      %1205 = vmatpush1.xpose.msra.mxu0 0.0
      %1206 = vmatprep.subr.mxu0 0.0
      %1207 = vmatpush1.xpose.msra.mxu0 0.0
      %1208 = vmatprep.subr.mxu0 0.0
      %1209 = vmatpush1.xpose.msra.mxu0 0.0
      %1210 = vmatprep.subr.mxu0 0.0
      %1211 = vmatpush1.xpose.msra.mxu0 0.0
      %1212 = vmatprep.mubr.f32.mxu0 0.0
      %1213 = vmatmul.mubr.f32.gmra.mrb[0].mxu0 %v1142
      %v1214 = vpop.f32.mrb[0].mxu0
      %v1215 = vadd.f32 0.0, %v1214
      %v1216 = vpop.f32.mrb[0].mxu0
      %1217 = vdwg.mxu0
      %v1218 = vmul.f32 %v1215, 0.35355338
      %v1219 = vsel %vm862, %v1218, -1e+09
      %v1220 = vsel %vm864, %v1219, -inf
      %1221 = vmax.xlane.f32.xlu0 %v1220
      %v1222 = vpop.xlane.xlu0 %1221
      %v1223 = vsub.f32 %v1219, %v1222
      %v1224 = vmul.f32 %v1223, 1.442695
      %v1225 = vpow.pop %v1224
      %v1226 = vsel %vm864, %v1225, 0.0
      %1227 = vadd.xlane.f32.xlu0 %v1226
      %v1228 = vpop.xlane.xlu0 %1227
      %v1229 = vrcp.pop %v1228
      %v1230 = vmul.f32 %v1225, %v1229
      %1231 = vrot.lane.b32.xlu0 %v767, 112
      %v1232 = vpop.permute.xlu0 %1231
      %1233 = vrot.lane.b32.xlu0 %v772, 112
      %v1234 = vpop.permute.xlu0 %1233
      %v1237 = vsel %vm864, %v1230, 0
      %v1239 = vsel %vm879, %v1234, 0
      %1241 = vmatprep.subr.mxu0 0.0
      %1242 = vmatpush1.msra.mxu0 %v1232
      %1243 = vmatprep.subr.mxu0 0.0
      %1244 = vmatpush1.msra.mxu0 %v1239
      %1245 = vmatprep.subr.mxu0 0.0
      %1246 = vmatpush1.msra.mxu0 0.0
      %1247 = vmatprep.subr.mxu0 0.0
      %1248 = vmatpush1.msra.mxu0 0.0
      %1249 = vmatprep.subr.mxu0 0.0
      %1250 = vmatpush1.msra.mxu0 0.0
      %1251 = vmatprep.subr.mxu0 0.0
      %1252 = vmatpush1.msra.mxu0 0.0
      %1253 = vmatprep.subr.mxu0 0.0
      %1254 = vmatpush1.msra.mxu0 0.0
      %1255 = vmatprep.subr.mxu0 0.0
      %1256 = vmatpush1.msra.mxu0 0.0
      %1257 = vmatprep.subr.mxu0 0.0
      %1258 = vmatpush1.msra.mxu0 0.0
      %1259 = vmatprep.subr.mxu0 0.0
      %1260 = vmatpush1.msra.mxu0 0.0
      %1261 = vmatprep.subr.mxu0 0.0
      %1262 = vmatpush1.msra.mxu0 0.0
      %1263 = vmatprep.subr.mxu0 0.0
      %1264 = vmatpush1.msra.mxu0 0.0
      %1265 = vmatprep.subr.mxu0 0.0
      %1266 = vmatpush1.msra.mxu0 0.0
      %1267 = vmatprep.subr.mxu0 0.0
      %1268 = vmatpush1.msra.mxu0 0.0
      %1269 = vmatprep.subr.mxu0 0.0
      %1270 = vmatpush1.msra.mxu0 0.0
      %1271 = vmatprep.subr.mxu0 0.0
      %1272 = vmatpush1.msra.mxu0 0.0
      %1273 = vmatprep.subr.mxu0 0.0
      %1274 = vmatpush1.msra.mxu0 0.0
      %1275 = vmatprep.subr.mxu0 0.0
      %1276 = vmatpush1.msra.mxu0 0.0
      %1277 = vmatprep.subr.mxu0 0.0
      %1278 = vmatpush1.msra.mxu0 0.0
      %1279 = vmatprep.subr.mxu0 0.0
      %1280 = vmatpush1.msra.mxu0 0.0
      %1281 = vmatprep.subr.mxu0 0.0
      %1282 = vmatpush1.msra.mxu0 0.0
      %1283 = vmatprep.subr.mxu0 0.0
      %1284 = vmatpush1.msra.mxu0 0.0
      %1285 = vmatprep.subr.mxu0 0.0
      %1286 = vmatpush1.msra.mxu0 0.0
      %1287 = vmatprep.subr.mxu0 0.0
      %1288 = vmatpush1.msra.mxu0 0.0
      %1289 = vmatprep.subr.mxu0 0.0
      %1290 = vmatpush1.msra.mxu0 0.0
      %1291 = vmatprep.subr.mxu0 0.0
      %1292 = vmatpush1.msra.mxu0 0.0
      %1293 = vmatprep.subr.mxu0 0.0
      %1294 = vmatpush1.msra.mxu0 0.0
      %1295 = vmatprep.subr.mxu0 0.0
      %1296 = vmatpush1.msra.mxu0 0.0
      %1297 = vmatprep.subr.mxu0 0.0
      %1298 = vmatpush1.msra.mxu0 0.0
      %1299 = vmatprep.subr.mxu0 0.0
      %1300 = vmatpush1.msra.mxu0 0.0
      %1301 = vmatprep.subr.mxu0 0.0
      %1302 = vmatpush1.msra.mxu0 0.0
      %1303 = vmatprep.subr.mxu0 0.0
      %1304 = vmatpush1.msra.mxu0 0.0
      %1305 = vmatprep.mubr.f32.mxu0 0.0
      %1306 = vmatmul.mubr.f32.gmra.mrb[0].mxu0 %v1237
      %v1307 = vpop.f32.mrb[0].mxu0
      %v1308 = vadd.f32 0.0, %v1307
      %v1309 = vpop.f32.mrb[0].mxu0
      %1310 = vdwg.mxu0
      %1312 = vrot.lane.b32.xlu0 %v1308, 16
      %v1313 = vpop.permute.xlu0 %1312
      %vm1315 = vcmask 195712
      %1316 = vst.msk [vmem:[#allocation2] sm:$0xff] %vm1315, %v1313
      %1317 = vrot.lane.b32.xlu0 %v604, 104
      %v1318 = vpop.permute.xlu0 %1317
      %1319 = vrot.lane.b32.xlu0 %v686, 104
      %v1320 = vpop.permute.xlu0 %1319
      %1321 = vrot.lane.b32.xlu0 %v691, 104
      %v1322 = vpop.permute.xlu0 %1321
      %v1323 = vsel %vm775, %v1318, 0
      %v1325 = vsel %vm775, %v1320, 0
      %v1327 = vsel %vm775, %v1322, 0
      %1329 = vmatprep.subr.mxu0 0.0
      %1330 = vmatpush1.xpose.msra.mxu0 %v1325
      %1331 = vmatprep.subr.mxu0 0.0
      %1332 = vmatpush1.xpose.msra.mxu0 %v1327
      %1333 = vmatprep.subr.mxu0 0.0
      %1334 = vmatpush1.xpose.msra.mxu0 0.0
      %1335 = vmatprep.subr.mxu0 0.0
      %1336 = vmatpush1.xpose.msra.mxu0 0.0
      %1337 = vmatprep.subr.mxu0 0.0
      %1338 = vmatpush1.xpose.msra.mxu0 0.0
      %1339 = vmatprep.subr.mxu0 0.0
      %1340 = vmatpush1.xpose.msra.mxu0 0.0
      %1341 = vmatprep.subr.mxu0 0.0
      %1342 = vmatpush1.xpose.msra.mxu0 0.0
      %1343 = vmatprep.subr.mxu0 0.0
      %1344 = vmatpush1.xpose.msra.mxu0 0.0
      %1345 = vmatprep.subr.mxu0 0.0
      %1346 = vmatpush1.xpose.msra.mxu0 0.0
      %1347 = vmatprep.subr.mxu0 0.0
      %1348 = vmatpush1.xpose.msra.mxu0 0.0
      %1349 = vmatprep.subr.mxu0 0.0
      %1350 = vmatpush1.xpose.msra.mxu0 0.0
      %1351 = vmatprep.subr.mxu0 0.0
      %1352 = vmatpush1.xpose.msra.mxu0 0.0
      %1353 = vmatprep.subr.mxu0 0.0
      %1354 = vmatpush1.xpose.msra.mxu0 0.0
      %1355 = vmatprep.subr.mxu0 0.0
      %1356 = vmatpush1.xpose.msra.mxu0 0.0
      %1357 = vmatprep.subr.mxu0 0.0
      %1358 = vmatpush1.xpose.msra.mxu0 0.0
      %1359 = vmatprep.subr.mxu0 0.0
      %1360 = vmatpush1.xpose.msra.mxu0 0.0
      %1361 = vmatprep.subr.mxu0 0.0
      %1362 = vmatpush1.xpose.msra.mxu0 0.0
      %1363 = vmatprep.subr.mxu0 0.0
      %1364 = vmatpush1.xpose.msra.mxu0 0.0
      %1365 = vmatprep.subr.mxu0 0.0
      %1366 = vmatpush1.xpose.msra.mxu0 0.0
      %1367 = vmatprep.subr.mxu0 0.0
      %1368 = vmatpush1.xpose.msra.mxu0 0.0
      %1369 = vmatprep.subr.mxu0 0.0
      %1370 = vmatpush1.xpose.msra.mxu0 0.0
      %1371 = vmatprep.subr.mxu0 0.0
      %1372 = vmatpush1.xpose.msra.mxu0 0.0
      %1373 = vmatprep.subr.mxu0 0.0
      %1374 = vmatpush1.xpose.msra.mxu0 0.0
      %1375 = vmatprep.subr.mxu0 0.0
      %1376 = vmatpush1.xpose.msra.mxu0 0.0
      %1377 = vmatprep.subr.mxu0 0.0
      %1378 = vmatpush1.xpose.msra.mxu0 0.0
      %1379 = vmatprep.subr.mxu0 0.0
      %1380 = vmatpush1.xpose.msra.mxu0 0.0
      %1381 = vmatprep.subr.mxu0 0.0
      %1382 = vmatpush1.xpose.msra.mxu0 0.0
      %1383 = vmatprep.subr.mxu0 0.0
      %1384 = vmatpush1.xpose.msra.mxu0 0.0
      %1385 = vmatprep.subr.mxu0 0.0
      %1386 = vmatpush1.xpose.msra.mxu0 0.0
      %1387 = vmatprep.subr.mxu0 0.0
      %1388 = vmatpush1.xpose.msra.mxu0 0.0
      %1389 = vmatprep.subr.mxu0 0.0
      %1390 = vmatpush1.xpose.msra.mxu0 0.0
      %1391 = vmatprep.subr.mxu0 0.0
      %1392 = vmatpush1.xpose.msra.mxu0 0.0
      %1393 = vmatprep.mubr.f32.mxu0 0.0
      %1394 = vmatmul.mubr.f32.gmra.mrb[0].mxu0 %v1323
      %v1395 = vpop.f32.mrb[0].mxu0
      %v1396 = vadd.f32 0.0, %v1395
      %v1397 = vpop.f32.mrb[0].mxu0
      %1398 = vdwg.mxu0
      %v1399 = vmul.f32 %v1396, 0.35355338
      %v1400 = vsel %vm862, %v1399, -1e+09
      %v1401 = vsel %vm864, %v1400, -inf
      %1402 = vmax.xlane.f32.xlu0 %v1401
      %v1403 = vpop.xlane.xlu0 %1402
      %v1404 = vsub.f32 %v1400, %v1403
      %v1405 = vmul.f32 %v1404, 1.442695
      %v1406 = vpow.pop %v1405
      %v1407 = vsel %vm864, %v1406, 0.0
      %1408 = vadd.xlane.f32.xlu0 %v1407
      %v1409 = vpop.xlane.xlu0 %1408
      %v1410 = vrcp.pop %v1409
      %v1411 = vmul.f32 %v1406, %v1410
      %1412 = vrot.lane.b32.xlu0 %v767, 104
      %v1413 = vpop.permute.xlu0 %1412
      %1414 = vrot.lane.b32.xlu0 %v772, 104
      %v1415 = vpop.permute.xlu0 %1414
      %v1418 = vsel %vm864, %v1411, 0
      %v1420 = vsel %vm879, %v1415, 0
      %1422 = vmatprep.subr.mxu0 0.0
      %1423 = vmatpush1.msra.mxu0 %v1413
      %1424 = vmatprep.subr.mxu0 0.0
      %1425 = vmatpush1.msra.mxu0 %v1420
      %1426 = vmatprep.subr.mxu0 0.0
      %1427 = vmatpush1.msra.mxu0 0.0
      %1428 = vmatprep.subr.mxu0 0.0
      %1429 = vmatpush1.msra.mxu0 0.0
      %1430 = vmatprep.subr.mxu0 0.0
      %1431 = vmatpush1.msra.mxu0 0.0
      %1432 = vmatprep.subr.mxu0 0.0
      %1433 = vmatpush1.msra.mxu0 0.0
      %1434 = vmatprep.subr.mxu0 0.0
      %1435 = vmatpush1.msra.mxu0 0.0
      %1436 = vmatprep.subr.mxu0 0.0
      %1437 = vmatpush1.msra.mxu0 0.0
      %1438 = vmatprep.subr.mxu0 0.0
      %1439 = vmatpush1.msra.mxu0 0.0
      %1440 = vmatprep.subr.mxu0 0.0
      %1441 = vmatpush1.msra.mxu0 0.0
      %1442 = vmatprep.subr.mxu0 0.0
      %1443 = vmatpush1.msra.mxu0 0.0
      %1444 = vmatprep.subr.mxu0 0.0
      %1445 = vmatpush1.msra.mxu0 0.0
      %1446 = vmatprep.subr.mxu0 0.0
      %1447 = vmatpush1.msra.mxu0 0.0
      %1448 = vmatprep.subr.mxu0 0.0
      %1449 = vmatpush1.msra.mxu0 0.0
      %1450 = vmatprep.subr.mxu0 0.0
      %1451 = vmatpush1.msra.mxu0 0.0
      %1452 = vmatprep.subr.mxu0 0.0
      %1453 = vmatpush1.msra.mxu0 0.0
      %1454 = vmatprep.subr.mxu0 0.0
      %1455 = vmatpush1.msra.mxu0 0.0
      %1456 = vmatprep.subr.mxu0 0.0
      %1457 = vmatpush1.msra.mxu0 0.0
      %1458 = vmatprep.subr.mxu0 0.0
      %1459 = vmatpush1.msra.mxu0 0.0
      %1460 = vmatprep.subr.mxu0 0.0
      %1461 = vmatpush1.msra.mxu0 0.0
      %1462 = vmatprep.subr.mxu0 0.0
      %1463 = vmatpush1.msra.mxu0 0.0
      %1464 = vmatprep.subr.mxu0 0.0
      %1465 = vmatpush1.msra.mxu0 0.0
      %1466 = vmatprep.subr.mxu0 0.0
      %1467 = vmatpush1.msra.mxu0 0.0
      %1468 = vmatprep.subr.mxu0 0.0
      %1469 = vmatpush1.msra.mxu0 0.0
      %1470 = vmatprep.subr.mxu0 0.0
      %1471 = vmatpush1.msra.mxu0 0.0
      %1472 = vmatprep.subr.mxu0 0.0
      %1473 = vmatpush1.msra.mxu0 0.0
      %1474 = vmatprep.subr.mxu0 0.0
      %1475 = vmatpush1.msra.mxu0 0.0
      %1476 = vmatprep.subr.mxu0 0.0
      %1477 = vmatpush1.msra.mxu0 0.0
      %1478 = vmatprep.subr.mxu0 0.0
      %1479 = vmatpush1.msra.mxu0 0.0
      %1480 = vmatprep.subr.mxu0 0.0
      %1481 = vmatpush1.msra.mxu0 0.0
      %1482 = vmatprep.subr.mxu0 0.0
      %1483 = vmatpush1.msra.mxu0 0.0
      %1484 = vmatprep.subr.mxu0 0.0
      %1485 = vmatpush1.msra.mxu0 0.0
      %1486 = vmatprep.mubr.f32.mxu0 0.0
      %1487 = vmatmul.mubr.f32.gmra.mrb[0].mxu0 %v1418
      %v1488 = vpop.f32.mrb[0].mxu0
      %v1489 = vadd.f32 0.0, %v1488
      %v1490 = vpop.f32.mrb[0].mxu0
      %1491 = vdwg.mxu0
      %1493 = vrot.lane.b32.xlu0 %v1489, 24
      %v1494 = vpop.permute.xlu0 %1493
      %vm1496 = vcmask 261312
      %1497 = vst.msk [vmem:[#allocation2] sm:$0xff] %vm1496, %v1494
      %v1498 = vld [vmem:[#allocation2] sm:$0xff]
      %v1499 = vld [vmem:[%s11] sm:$0xff]
      %v1500 = vld [vmem:[%s11 + $0x8] sm:$0xff]
      %v1501 = vld [vmem:[%s11 + $0x10] sm:$0xff]
      %v1502 = vld [vmem:[%s11 + $0x18] sm:$0xff]
      %v1504 = vsel %vm476, %v1498, 0
      %1506 = vmatprep.subr.mxu0 0.0
      %1507 = vmatpush1.msra.mxu0 %v1499
      %1508 = vmatprep.subr.mxu0 0.0
      %1509 = vmatpush1.msra.mxu0 %v1500
      %1510 = vmatprep.subr.mxu0 0.0
      %1511 = vmatpush1.msra.mxu0 %v1501
      %1512 = vmatprep.subr.mxu0 0.0
      %1513 = vmatpush1.msra.mxu0 %v1502
      %1514 = vmatprep.subr.mxu0 0.0
      %1515 = vmatpush1.msra.mxu0 0.0
      %1516 = vmatprep.subr.mxu0 0.0
      %1517 = vmatpush1.msra.mxu0 0.0
      %1518 = vmatprep.subr.mxu0 0.0
      %1519 = vmatpush1.msra.mxu0 0.0
      %1520 = vmatprep.subr.mxu0 0.0
      %1521 = vmatpush1.msra.mxu0 0.0
      %1522 = vmatprep.subr.mxu0 0.0
      %1523 = vmatpush1.msra.mxu0 0.0
      %1524 = vmatprep.subr.mxu0 0.0
      %1525 = vmatpush1.msra.mxu0 0.0
      %1526 = vmatprep.subr.mxu0 0.0
      %1527 = vmatpush1.msra.mxu0 0.0
      %1528 = vmatprep.subr.mxu0 0.0
      %1529 = vmatpush1.msra.mxu0 0.0
      %1530 = vmatprep.subr.mxu0 0.0
      %1531 = vmatpush1.msra.mxu0 0.0
      %1532 = vmatprep.subr.mxu0 0.0
      %1533 = vmatpush1.msra.mxu0 0.0
      %1534 = vmatprep.subr.mxu0 0.0
      %1535 = vmatpush1.msra.mxu0 0.0
      %1536 = vmatprep.subr.mxu0 0.0
      %1537 = vmatpush1.msra.mxu0 0.0
      %1538 = vmatprep.subr.mxu0 0.0
      %1539 = vmatpush1.msra.mxu0 0.0
      %1540 = vmatprep.subr.mxu0 0.0
      %1541 = vmatpush1.msra.mxu0 0.0
      %1542 = vmatprep.subr.mxu0 0.0
      %1543 = vmatpush1.msra.mxu0 0.0
      %1544 = vmatprep.subr.mxu0 0.0
      %1545 = vmatpush1.msra.mxu0 0.0
      %1546 = vmatprep.subr.mxu0 0.0
      %1547 = vmatpush1.msra.mxu0 0.0
      %1548 = vmatprep.subr.mxu0 0.0
      %1549 = vmatpush1.msra.mxu0 0.0
      %1550 = vmatprep.subr.mxu0 0.0
      %1551 = vmatpush1.msra.mxu0 0.0
      %1552 = vmatprep.subr.mxu0 0.0
      %1553 = vmatpush1.msra.mxu0 0.0
      %1554 = vmatprep.subr.mxu0 0.0
      %1555 = vmatpush1.msra.mxu0 0.0
      %1556 = vmatprep.subr.mxu0 0.0
      %1557 = vmatpush1.msra.mxu0 0.0
      %1558 = vmatprep.subr.mxu0 0.0
      %1559 = vmatpush1.msra.mxu0 0.0
      %1560 = vmatprep.subr.mxu0 0.0
      %1561 = vmatpush1.msra.mxu0 0.0
      %1562 = vmatprep.subr.mxu0 0.0
      %1563 = vmatpush1.msra.mxu0 0.0
      %1564 = vmatprep.subr.mxu0 0.0
      %1565 = vmatpush1.msra.mxu0 0.0
      %1566 = vmatprep.subr.mxu0 0.0
      %1567 = vmatpush1.msra.mxu0 0.0
      %1568 = vmatprep.subr.mxu0 0.0
      %1569 = vmatpush1.msra.mxu0 0.0
      %1570 = vmatprep.mubr.f32.mxu0 0.0
      %1571 = vmatmul.mubr.f32.gmra.mrb[0].mxu0 %v1504
      %v1572 = vpop.f32.mrb[0].mxu0
      %v1573 = vadd.f32 0.0, %v1572
      %v1574 = vpop.f32.mrb[0].mxu0
      %1575 = vdwg.mxu0
      %v1576 = vadd.f32 %v470, %v1573
      %v1577 = vld [vmem:[%s12] sm:$0x1]
      %v1579 = vlaneseq
      %v1580 = vshrl.u32 %v1579, 7
      %v1581 = vsub.s32 0, %v1580
      %v1582 = vrot.slane %v1577, %v1581
      %v1584 = vadd.f32 %v1576, %v1582
      %1585 = vst.msk [vmem:[%s469] sm:$0xff] %vm476, %v1584
      %p1586 = scmp.lt.s32.totalorder %s24, 1
      %s1587 = scalar_select %p1586, %s24, 1
      %s1588 = smul.addr %s1587, 8
      %s1589 = scalar_lea.vmem %s13, %s1588
      // Predicated region
      $region73: #{decoder_layer.4} parent=71 // pred_check
        %p1590 = pneg %p330
      $region74: #{decoder_layer.4} parent=71 // pred_check_branch
        %1592 = sbr.rel (%p1590) target = $region76
      $region75: #{decoder_layer.4} parent=71 // pred_region
        _
      $region76: #{decoder_layer.4} parent=71 // pred_fallthru
        _
    $region72: #{decoder_layer.4} parent=5 // pred_fallthru
      _
    %p1593 = scmp.le.s32.totalorder 2, %s19
    // Predicated region
    $region77: #{decoder_layer.4} parent=5 // pred_check
      %p1594 = pneg %p1593
    $region78: #{decoder_layer.4} parent=5 // pred_check_branch
      %1596 = sbr.rel (%p1594) target = $region80
    $region79: #{decoder_layer.4} parent=5 // pred_region
      %s1597 = ssub.s32 %s19, 2
      // Predicated region
      $region81: #{decoder_layer.4} parent=79 // pred_check
        %p1598 = pneg %p336
      $region82: #{decoder_layer.4} parent=79 // pred_check_branch
        %1600 = sbr.rel (%p1598) target = $region84
      $region83: #{decoder_layer.4} parent=79 // pred_region
        %p1601 = scmp.lt.s32.totalorder %s25, 1
        %s1602 = scalar_select %p1601, %s25, 1
        %s1603 = smul.addr %s1602, 8
        %s1604 = scalar_lea.vmem %s13, %s1603
      $region84: #{decoder_layer.4} parent=79 // pred_fallthru
        _
    $region80: #{decoder_layer.4} parent=5 // pred_fallthru
      _
  $region6: #{decoder_layer.4} parent=0 // loop_footer
    %s23 = sadd.s32 1, %s19
  $region7: #{decoder_layer.4} parent=0 // loop_footer_branch
    %18 = sbr.rel target = $region3
  $region8: #{decoder_layer.4} parent=0 // loop_exit
    _

</llo_original>
